<compile_context>
chip_gen: v5e
topology: v5e:2x2
jax: 0.10.0
libtpu: 0.0.40
codegen_flags: <defaults>
</compile_context>

<pallas_src>
import functools

import jax
import jax.numpy as jnp
from jax import lax
from jax.experimental import pallas as pl
from jax.experimental.pallas import tpu as pltpu


# ----------------------------------------------------------------------------
# Small helpers
# ----------------------------------------------------------------------------
def _round_up(n, m):
    return (n + m - 1) // m * m


def _pick_time_chunk(T, cap=16):
    """Largest divisor of T that is <= cap (amortizes per-grid-step overhead)."""
    for c in range(min(T, cap), 0, -1):
        if T % c == 0:
            return c
    return 1


# ----------------------------------------------------------------------------
# Fused per-chunk GRU body.
# Gate math matches torch.nn.GRU (gate order r, z, n):
#   xp       = x @ Wi_fused + [b_ir+b_hr | b_iz+b_hz | b_in]      (chunk matmul)
#   g        = h @ Wh_fused                                        (per step)
#   r        = sigmoid(xp_r + g_r)
#   z        = sigmoid(xp_z + g_z)
#   n        = tanh   (xp_n + r * (g_n + b_hn))
#   h'       = (1 - z) * n + z * h
# ----------------------------------------------------------------------------
def _gru_chunk_fused(x_ref, wi_ref, b_ref, wh_ref, bhn_ref, out_ref, h0,
                     tc, H):
    tc_, Bp, in_dim = x_ref.shape
    # Chunk-level input projection: one dense MXU matmul for all Tc steps.
    x_chunk = x_ref[...]                                   # (Tc, Bp, in)
    xp = jnp.dot(x_chunk.reshape(tc * Bp, in_dim), wi_ref[...],
                 preferred_element_type=jnp.float32) + b_ref[...]
    xp = xp.reshape(tc, Bp, 3 * H)

    wh = wh_ref[...]                                       # (H, 3H)
    bhn = bhn_ref[...]                                     # (1, H)

    h = h0
    for i in range(tc):                                    # static unroll
        xpi = xp[i]                                        # (Bp, 3H), static slice
        g = jnp.dot(h, wh, preferred_element_type=jnp.float32)
        r = jax.nn.sigmoid(xpi[:, 0:H] + g[:, 0:H])
        z = jax.nn.sigmoid(xpi[:, H:2 * H] + g[:, H:2 * H])
        n = jnp.tanh(xpi[:, 2 * H:3 * H] + r * (g[:, 2 * H:3 * H] + bhn))
        h = (1.0 - z) * n + z * h
        if out_ref is not None:
            out_ref[i] = h
    return h


# ----------------------------------------------------------------------------
# Kernel 1: GRU layer (input projection + recurrence fused), emits (T, B, H).
# ----------------------------------------------------------------------------
def gru_layer_kernel(x_ref, wi_ref, b_ref, wh_ref, bhn_ref, out_ref, h_scr,
                     *, tc, hidden):
    @pl.when(pl.program_id(0) == 0)
    def _():
        h_scr[...] = jnp.zeros_like(h_scr)

    h_final = _gru_chunk_fused(x_ref, wi_ref, b_ref, wh_ref, bhn_ref,
                               out_ref, h_scr[...], tc, hidden)
    h_scr[...] = h_final


def run_gru_layer(x_tbi, wi_fused, b_in_side, wh_fused, b_hn, *, hidden):
    """x_tbi: (T, Bp, in) -> (T, Bp, H)."""
    T, Bp, in_dim = x_tbi.shape
    G = 3 * hidden
    tc = _pick_time_chunk(T)
    kernel = functools.partial(gru_layer_kernel, tc=tc, hidden=hidden)
    return pl.pallas_call(
        kernel,
        out_shape=jax.ShapeDtypeStruct((T, Bp, hidden), jnp.float32),
        grid=(T // tc,),
        in_specs=[
            pl.BlockSpec((tc, Bp, in_dim), lambda c: (c, 0, 0)),
            pl.BlockSpec((in_dim, G), lambda c: (0, 0)),     # time-invariant
            pl.BlockSpec((1, G), lambda c: (0, 0)),
            pl.BlockSpec((hidden, G), lambda c: (0, 0)),
            pl.BlockSpec((1, hidden), lambda c: (0, 0)),
        ],
        out_specs=pl.BlockSpec((tc, Bp, hidden), lambda c: (c, 0, 0)),
        scratch_shapes=[pltpu.VMEM((Bp, hidden), jnp.float32)],
        compiler_params=pltpu.CompilerParams(
            dimension_semantics=("arbitrary",)),             # recurrence: serial
    )(x_tbi, wi_fused, b_in_side, wh_fused, b_hn)


# ----------------------------------------------------------------------------
# Kernel 2: last GRU layer + fused MLP head; emits only (B, output_size).
# ----------------------------------------------------------------------------
def gru_last_layer_head_kernel(x_ref, wi_ref, b_ref, wh_ref, bhn_ref,
                               w1_ref, b1_ref, w2_ref, b2_ref,
                               out_ref, h_scr, *, tc, hidden):
    @pl.when(pl.program_id(0) == 0)
    def _():
        h_scr[...] = jnp.zeros_like(h_scr)

    # No (T, B, H) writeback for the last layer: only h_final is needed.
    h_final = _gru_chunk_fused(x_ref, wi_ref, b_ref, wh_ref, bhn_ref,
                               None, h_scr[...], tc, hidden)
    h_scr[...] = h_final

    @pl.when(pl.program_id(0) == pl.num_programs(0) - 1)
    def _():
        mid = jnp.dot(h_final, w1_ref[...],
                      preferred_element_type=jnp.float32) + b1_ref[...]
        out_ref[...] = jnp.dot(mid, w2_ref[...],
                               preferred_element_type=jnp.float32) + b2_ref[...]


def run_gru_last_layer_with_head(x_tbi, wi_fused, b_in_side, wh_fused, b_hn,
                                 w1_t, b1, w2_t, b2, *, hidden):
    """x_tbi: (T, Bp, in) -> (Bp, O); MLP head fused into final grid step."""
    T, Bp, in_dim = x_tbi.shape
    G = 3 * hidden
    O = w2_t.shape[1]
    tc = _pick_time_chunk(T)
    kernel = functools.partial(gru_last_layer_head_kernel, tc=tc, hidden=hidden)
    return pl.pallas_call(
        kernel,
        out_shape=jax.ShapeDtypeStruct((Bp, O), jnp.float32),
        grid=(T // tc,),
        in_specs=[
            pl.BlockSpec((tc, Bp, in_dim), lambda c: (c, 0, 0)),
            pl.BlockSpec((in_dim, G), lambda c: (0, 0)),
            pl.BlockSpec((1, G), lambda c: (0, 0)),
            pl.BlockSpec((hidden, G), lambda c: (0, 0)),
            pl.BlockSpec((1, hidden), lambda c: (0, 0)),
            pl.BlockSpec(w1_t.shape, lambda c: (0, 0)),
            pl.BlockSpec(b1.shape, lambda c: (0, 0)),
            pl.BlockSpec(w2_t.shape, lambda c: (0, 0)),
            pl.BlockSpec(b2.shape, lambda c: (0, 0)),
        ],
        out_specs=pl.BlockSpec((Bp, O), lambda c: (0, 0)),   # resident output
        scratch_shapes=[pltpu.VMEM((Bp, hidden), jnp.float32)],
        compiler_params=pltpu.CompilerParams(
            dimension_semantics=("arbitrary",)),
    )(x_tbi, wi_fused, b_in_side, wh_fused, b_hn, w1_t, b1, w2_t, b2)


# ----------------------------------------------------------------------------
# Parameters: torch-layout raw weights + host-side packing for the kernels.
# ----------------------------------------------------------------------------
def init_params_raw(key, input_size, hidden_size, num_layers, output_size,
                    midlayer_size):
    H = hidden_size
    scale = 1.0 / jnp.sqrt(jnp.float32(H))
    raw = {"layers": []}
    for layer in range(num_layers):
        in_dim = input_size if layer == 0 else hidden_size
        key, k_ih, k_hh, k_bih, k_bhh = jax.random.split(key, 5)
        raw["layers"].append({
            # torch layout: weight_ih (3H, in_dim), gate order [r, z, n]
            "w_ih": jax.random.uniform(k_ih, (3 * H, in_dim), jnp.float32,
                                       -scale, scale),
            "w_hh": jax.random.uniform(k_hh, (3 * H, H), jnp.float32,
                                       -scale, scale),
            "b_ih": jax.random.uniform(k_bih, (3 * H,), jnp.float32,
                                       -scale, scale),
            "b_hh": jax.random.uniform(k_bhh, (3 * H,), jnp.float32,
                                       -scale, scale),
        })

    key, k1w, k1b, k2w, k2b = jax.random.split(key, 5)
    s1 = 1.0 / jnp.sqrt(jnp.float32(H))
    s2 = 1.0 / jnp.sqrt(jnp.float32(midlayer_size))
    raw["w1"] = jax.random.uniform(k1w, (midlayer_size, H), jnp.float32, -s1, s1)
    raw["b1"] = jax.random.uniform(k1b, (midlayer_size,), jnp.float32, -s1, s1)
    raw["w2"] = jax.random.uniform(k2w, (output_size, midlayer_size),
                                   jnp.float32, -s2, s2)
    raw["b2"] = jax.random.uniform(k2b, (output_size,), jnp.float32, -s2, s2)
    return raw


def pack_params(raw):
    """Host-side packing: fused weights, pre-summed biases (b_hn kept separate)."""
    packed = {"layers": []}
    for lp in raw["layers"]:
        w_ih, w_hh, b_ih, b_hh = lp["w_ih"], lp["w_hh"], lp["b_ih"], lp["b_hh"]
        H = w_hh.shape[1]
        b_in_side = jnp.concatenate([
            b_ih[0:H] + b_hh[0:H],          # r: b_ir + b_hr
            b_ih[H:2 * H] + b_hh[H:2 * H],  # z: b_iz + b_hz
            b_ih[2 * H:3 * H],              # n: b_in only (b_hn is scaled by r)
        ]).reshape(1, 3 * H)
        packed["layers"].append({
            "wi_fused": w_ih.T,                           # (in_dim, 3H)
            "wh_fused": w_hh.T,                           # (H, 3H)
            "b_in_side": b_in_side,                       # (1, 3H)
            "b_hn": b_hh[2 * H:3 * H].reshape(1, H),      # (1, H)
        })
    packed["w1_t"] = raw["w1"].T                          # (H, M)
    packed["b1"] = raw["b1"].reshape(1, -1)
    packed["w2_t"] = raw["w2"].T                          # (M, O)
    packed["b2"] = raw["b2"].reshape(1, -1)
    return packed


# ----------------------------------------------------------------------------
# Full forward: x (B, T, I) batch_first -> (B * output_size,) like torch.
# ----------------------------------------------------------------------------
def hal_gru_forward(packed, x_bti):
    B, T, _ = x_bti.shape
    Bp = _round_up(B, 8)                                      # sublane-align batch
    x = jnp.transpose(x_bti, (1, 0, 2)).astype(jnp.float32)   # (T, B, I)
    if Bp != B:
        x = jnp.pad(x, ((0, 0), (0, Bp - B), (0, 0)))

    n_layers = len(packed["layers"])
    out_p = None
    for idx, lp in enumerate(packed["layers"]):
        H = lp["wh_fused"].shape[0]
        if idx < n_layers - 1:
            x = run_gru_layer(x, lp["wi_fused"], lp["b_in_side"],
                              lp["wh_fused"], lp["b_hn"], hidden=H)
        else:
            out_p = run_gru_last_layer_with_head(
                x, lp["wi_fused"], lp["b_in_side"], lp["wh_fused"], lp["b_hn"],
                packed["w1_t"], packed["b1"], packed["w2_t"], packed["b2"],
                hidden=H)

    return out_p[:B].reshape(-1)                              # .flatten()


# ----------------------------------------------------------------------------
# Pure-JAX reference (torch.nn.GRU math, unfused) for sanity checking.
# ----------------------------------------------------------------------------
def hal_gru_reference(raw, x_bti):
    x = jnp.transpose(x_bti, (1, 0, 2)).astype(jnp.float32)   # (T, B, I)
    T, B, _ = x.shape
    for lp in raw["layers"]:
        H = lp["w_hh"].shape[1]
        h = jnp.zeros((B, H), jnp.float32)
        outs = []
        for t in range(T):
            gi = x[t] @ lp["w_ih"].T + lp["b_ih"]
            gh = h @ lp["w_hh"].T + lp["b_hh"]
            r = jax.nn.sigmoid(gi[:, 0:H] + gh[:, 0:H])
            z = jax.nn.sigmoid(gi[:, H:2 * H] + gh[:, H:2 * H])
            n = jnp.tanh(gi[:, 2 * H:3 * H] + r * gh[:, 2 * H:3 * H])
            h = (1.0 - z) * n + z * h
            outs.append(h)
        x = jnp.stack(outs, axis=0)
    h_last = x[-1]
    mid = h_last @ raw["w1"].T + raw["b1"]
    out = mid @ raw["w2"].T + raw["b2"]
    return out.reshape(-1)


if __name__ == "__main__":
    # Small shapes consistent with the module's forward.  T=32 exercises the
    # multi-chunk (carried hidden state) path; B=4 exercises batch padding.
    B, T = 4, 32
    input_size, hidden_size, num_layers = 16, 32, 2
    midlayer_size, output_size = 5, 1

    key = jax.random.PRNGKey(0)
    key, kx, kp = jax.random.split(key, 3)

    x = jax.random.normal(kx, (B, T, input_size), jnp.float32)
    raw = init_params_raw(kp, input_size, hidden_size, num_layers,
                          output_size, midlayer_size)
    packed = pack_params(raw)

    fwd = jax.jit(hal_gru_forward)
    out = jax.block_until_ready(fwd(packed, x))
    ref = jax.block_until_ready(hal_gru_reference(raw, x))

    assert out.shape == (B * output_size,), out.shape
    assert jnp.allclose(out, ref, atol=1e-4, rtol=1e-4), (out, ref)

    print("KERNEL_OK")
</pallas_src>

<mosaic_0001>
module attributes {stable_mosaic.version = 11 : i64} {
  func.func @gru_layer_kernel(%arg0: i32, %arg1: memref<16x8x16xf32, #tpu.memory_space<vmem>>, %arg2: memref<16x96xf32, #tpu.memory_space<vmem>>, %arg3: memref<1x96xf32, #tpu.memory_space<vmem>>, %arg4: memref<32x96xf32, #tpu.memory_space<vmem>>, %arg5: memref<1x32xf32, #tpu.memory_space<vmem>>, %arg6: memref<16x8x32xf32, #tpu.memory_space<vmem>>, %arg7: memref<8x32xf32, #tpu.memory_space<vmem>>) attributes {dimension_semantics = [#tpu.dimension_semantics<arbitrary>], iteration_bounds = array<i64: 2>, scalar_prefetch = 0 : i64, scratch_operands = 1 : i64, tpu.core_type = #tpu.core_type<tc>, window_params = [{transform_indices = @transform_0, window_bounds = array<i64: 16, 8, 16>}, {pipeline_mode = #tpu.pipeline_mode<synchronous>, transform_indices = @transform_1, window_bounds = array<i64: 16, 96>}, {pipeline_mode = #tpu.pipeline_mode<synchronous>, transform_indices = @transform_2, window_bounds = array<i64: 1, 96>}, {pipeline_mode = #tpu.pipeline_mode<synchronous>, transform_indices = @transform_3, window_bounds = array<i64: 32, 96>}, {pipeline_mode = #tpu.pipeline_mode<synchronous>, transform_indices = @transform_4, window_bounds = array<i64: 1, 32>}, {transform_indices = @transform_5, window_bounds = array<i64: 16, 8, 32>}]} {
    %c0_i32 = arith.constant 0 : i32
    %0 = arith.cmpi eq, %arg0, %c0_i32 : i32
    %1 = arith.extui %0 : i1 to i32
    %c0_i32_0 = arith.constant 0 : i32
    %2 = arith.cmpi ne, %1, %c0_i32_0 : i32
    scf.if %2 {
      %cst_112 = arith.constant 0.000000e+00 : f32
      %559 = vector.broadcast %cst_112 : f32 to vector<8x32xf32>
      %c0_113 = arith.constant 0 : index
      %c0_114 = arith.constant 0 : index
      %560 = vector.load %arg7[%c0_113, %c0_114] : memref<8x32xf32, #tpu.memory_space<vmem>>, vector<8x32xf32>
      tpu.vector_store %arg7[%c0_113, %c0_114], %559 {strides = array<i32>} : memref<8x32xf32, #tpu.memory_space<vmem>>, vector<8x32xf32>,
    } else {
    }
    %c0 = arith.constant 0 : index
    %c0_1 = arith.constant 0 : index
    %3 = vector.load %arg7[%c0, %c0_1] : memref<8x32xf32, #tpu.memory_space<vmem>>, vector<8x32xf32>
    %c0_2 = arith.constant 0 : index
    %c0_3 = arith.constant 0 : index
    %c0_4 = arith.constant 0 : index
    %4 = vector.load %arg1[%c0_2, %c0_3, %c0_4] : memref<16x8x16xf32, #tpu.memory_space<vmem>>, vector<16x8x16xf32>
    %5 = vector.shape_cast %4 : vector<16x8x16xf32> to vector<128x16xf32>
    %c0_5 = arith.constant 0 : index
    %c0_6 = arith.constant 0 : index
    %6 = vector.load %arg2[%c0_5, %c0_6] : memref<16x96xf32, #tpu.memory_space<vmem>>, vector<16x96xf32>
    %cst = arith.constant dense<0.000000e+00> : vector<128x96xf32>
    %7 = tpu.matmul %5, %6, %cst {dimension_numbers = #tpu.dot_dimension_numbers<[1], [0], [0], [1], [0, 0, 1, 1], [], []>} : vector<128x16xf32>, vector<16x96xf32>, vector<128x96xf32> -> vector<128x96xf32>
    %c0_7 = arith.constant 0 : index
    %c0_8 = arith.constant 0 : index
    %8 = vector.load %arg3[%c0_7, %c0_8] : memref<1x96xf32, #tpu.memory_space<vmem>>, vector<1x96xf32>
    %9 = vector.broadcast %8 : vector<1x96xf32> to vector<128x96xf32>
    %10 = arith.addf %7, %9 : vector<128x96xf32>
    %11 = vector.shape_cast %10 : vector<128x96xf32> to vector<16x8x96xf32>
    %c0_9 = arith.constant 0 : index
    %c0_10 = arith.constant 0 : index
    %12 = vector.load %arg4[%c0_9, %c0_10] : memref<32x96xf32, #tpu.memory_space<vmem>>, vector<32x96xf32>
    %c0_11 = arith.constant 0 : index
    %c0_12 = arith.constant 0 : index
    %13 = vector.load %arg5[%c0_11, %c0_12] : memref<1x32xf32, #tpu.memory_space<vmem>>, vector<1x32xf32>
    %14 = vector.extract_strided_slice %11 {offsets = [0, 0, 0], sizes = [1, 8, 96], strides = [1, 1, 1]} : vector<16x8x96xf32> to vector<1x8x96xf32>
    %15 = vector.shape_cast %14 : vector<1x8x96xf32> to vector<8x96xf32>
    %cst_13 = arith.constant dense<0.000000e+00> : vector<8x96xf32>
    %16 = tpu.matmul %3, %12, %cst_13 {dimension_numbers = #tpu.dot_dimension_numbers<[1], [0], [0], [1], [0, 0, 1, 1], [], []>} : vector<8x32xf32>, vector<32x96xf32>, vector<8x96xf32> -> vector<8x96xf32>
    %17 = vector.extract_strided_slice %15 {offsets = [0, 0], sizes = [8, 32], strides = [1, 1]} : vector<8x96xf32> to vector<8x32xf32>
    %18 = vector.extract_strided_slice %16 {offsets = [0, 0], sizes = [8, 32], strides = [1, 1]} : vector<8x96xf32> to vector<8x32xf32>
    %19 = arith.addf %17, %18 : vector<8x32xf32>
    %20 = arith.negf %19 : vector<8x32xf32>
    %21 = math.exp %20 : vector<8x32xf32>
    %cst_14 = arith.constant 1.000000e+00 : f32
    %22 = vector.broadcast %cst_14 : f32 to vector<8x32xf32>
    %23 = arith.addf %22, %21 : vector<8x32xf32>
    %24 = arith.divf %22, %23 : vector<8x32xf32>
    %25 = vector.extract_strided_slice %15 {offsets = [0, 32], sizes = [8, 32], strides = [1, 1]} : vector<8x96xf32> to vector<8x32xf32>
    %26 = vector.extract_strided_slice %16 {offsets = [0, 32], sizes = [8, 32], strides = [1, 1]} : vector<8x96xf32> to vector<8x32xf32>
    %27 = arith.addf %25, %26 : vector<8x32xf32>
    %28 = arith.negf %27 : vector<8x32xf32>
    %29 = math.exp %28 : vector<8x32xf32>
    %cst_15 = arith.constant 1.000000e+00 : f32
    %30 = vector.broadcast %cst_15 : f32 to vector<8x32xf32>
    %31 = arith.addf %30, %29 : vector<8x32xf32>
    %32 = arith.divf %30, %31 : vector<8x32xf32>
    %33 = vector.extract_strided_slice %15 {offsets = [0, 64], sizes = [8, 32], strides = [1, 1]} : vector<8x96xf32> to vector<8x32xf32>
    %34 = vector.extract_strided_slice %16 {offsets = [0, 64], sizes = [8, 32], strides = [1, 1]} : vector<8x96xf32> to vector<8x32xf32>
    %35 = vector.broadcast %13 : vector<1x32xf32> to vector<8x32xf32>
    %36 = arith.addf %34, %35 : vector<8x32xf32>
    %37 = arith.mulf %24, %36 : vector<8x32xf32>
    %38 = arith.addf %33, %37 : vector<8x32xf32>
    %39 = math.tanh %38 : vector<8x32xf32>
    %cst_16 = arith.constant 1.000000e+00 : f32
    %40 = vector.broadcast %cst_16 : f32 to vector<8x32xf32>
    %41 = arith.subf %40, %32 : vector<8x32xf32>
    %42 = arith.mulf %41, %39 : vector<8x32xf32>
    %43 = arith.mulf %32, %3 : vector<8x32xf32>
    %44 = arith.addf %42, %43 : vector<8x32xf32>
    %c0_17 = arith.constant 0 : index
    %c0_18 = arith.constant 0 : index
    %c0_19 = arith.constant 0 : index
    %45 = vector.load %arg6[%c0_17, %c0_18, %c0_19] : memref<16x8x32xf32, #tpu.memory_space<vmem>>, vector<1x8x32xf32>
    %46 = vector.shape_cast %45 : vector<1x8x32xf32> to vector<8x32xf32>
    %47 = vector.shape_cast %44 : vector<8x32xf32> to vector<1x8x32xf32>
    tpu.vector_store %arg6[%c0_17, %c0_18, %c0_19], %47 {strides = array<i32>} : memref<16x8x32xf32, #tpu.memory_space<vmem>>, vector<1x8x32xf32>,
    %48 = vector.extract_strided_slice %11 {offsets = [1, 0, 0], sizes = [1, 8, 96], strides = [1, 1, 1]} : vector<16x8x96xf32> to vector<1x8x96xf32>
    %49 = vector.shape_cast %48 : vector<1x8x96xf32> to vector<8x96xf32>
    %cst_20 = arith.constant dense<0.000000e+00> : vector<8x96xf32>
    %50 = tpu.matmul %44, %12, %cst_20 {dimension_numbers = #tpu.dot_dimension_numbers<[1], [0], [0], [1], [0, 0, 1, 1], [], []>} : vector<8x32xf32>, vector<32x96xf32>, vector<8x96xf32> -> vector<8x96xf32>
    %51 = vector.extract_strided_slice %49 {offsets = [0, 0], sizes = [8, 32], strides = [1, 1]} : vector<8x96xf32> to vector<8x32xf32>
    %52 = vector.extract_strided_slice %50 {offsets = [0, 0], sizes = [8, 32], strides = [1, 1]} : vector<8x96xf32> to vector<8x32xf32>
    %53 = arith.addf %51, %52 : vector<8x32xf32>
    %54 = arith.negf %53 : vector<8x32xf32>
    %55 = math.exp %54 : vector<8x32xf32>
    %cst_21 = arith.constant 1.000000e+00 : f32
    %56 = vector.broadcast %cst_21 : f32 to vector<8x32xf32>
    %57 = arith.addf %56, %55 : vector<8x32xf32>
    %58 = arith.divf %56, %57 : vector<8x32xf32>
    %59 = vector.extract_strided_slice %49 {offsets = [0, 32], sizes = [8, 32], strides = [1, 1]} : vector<8x96xf32> to vector<8x32xf32>
    %60 = vector.extract_strided_slice %50 {offsets = [0, 32], sizes = [8, 32], strides = [1, 1]} : vector<8x96xf32> to vector<8x32xf32>
    %61 = arith.addf %59, %60 : vector<8x32xf32>
    %62 = arith.negf %61 : vector<8x32xf32>
    %63 = math.exp %62 : vector<8x32xf32>
    %cst_22 = arith.constant 1.000000e+00 : f32
    %64 = vector.broadcast %cst_22 : f32 to vector<8x32xf32>
    %65 = arith.addf %64, %63 : vector<8x32xf32>
    %66 = arith.divf %64, %65 : vector<8x32xf32>
    %67 = vector.extract_strided_slice %49 {offsets = [0, 64], sizes = [8, 32], strides = [1, 1]} : vector<8x96xf32> to vector<8x32xf32>
    %68 = vector.extract_strided_slice %50 {offsets = [0, 64], sizes = [8, 32], strides = [1, 1]} : vector<8x96xf32> to vector<8x32xf32>
    %69 = vector.broadcast %13 : vector<1x32xf32> to vector<8x32xf32>
    %70 = arith.addf %68, %69 : vector<8x32xf32>
    %71 = arith.mulf %58, %70 : vector<8x32xf32>
    %72 = arith.addf %67, %71 : vector<8x32xf32>
    %73 = math.tanh %72 : vector<8x32xf32>
    %cst_23 = arith.constant 1.000000e+00 : f32
    %74 = vector.broadcast %cst_23 : f32 to vector<8x32xf32>
    %75 = arith.subf %74, %66 : vector<8x32xf32>
    %76 = arith.mulf %75, %73 : vector<8x32xf32>
    %77 = arith.mulf %66, %44 : vector<8x32xf32>
    %78 = arith.addf %76, %77 : vector<8x32xf32>
    %c1 = arith.constant 1 : index
    %c0_24 = arith.constant 0 : index
    %c0_25 = arith.constant 0 : index
    %79 = vector.load %arg6[%c1, %c0_24, %c0_25] : memref<16x8x32xf32, #tpu.memory_space<vmem>>, vector<1x8x32xf32>
    %80 = vector.shape_cast %79 : vector<1x8x32xf32> to vector<8x32xf32>
    %81 = vector.shape_cast %78 : vector<8x32xf32> to vector<1x8x32xf32>
    tpu.vector_store %arg6[%c1, %c0_24, %c0_25], %81 {strides = array<i32>} : memref<16x8x32xf32, #tpu.memory_space<vmem>>, vector<1x8x32xf32>,
    %82 = vector.extract_strided_slice %11 {offsets = [2, 0, 0], sizes = [1, 8, 96], strides = [1, 1, 1]} : vector<16x8x96xf32> to vector<1x8x96xf32>
    %83 = vector.shape_cast %82 : vector<1x8x96xf32> to vector<8x96xf32>
    %cst_26 = arith.constant dense<0.000000e+00> : vector<8x96xf32>
    %84 = tpu.matmul %78, %12, %cst_26 {dimension_numbers = #tpu.dot_dimension_numbers<[1], [0], [0], [1], [0, 0, 1, 1], [], []>} : vector<8x32xf32>, vector<32x96xf32>, vector<8x96xf32> -> vector<8x96xf32>
    %85 = vector.extract_strided_slice %83 {offsets = [0, 0], sizes = [8, 32], strides = [1, 1]} : vector<8x96xf32> to vector<8x32xf32>
    %86 = vector.extract_strided_slice %84 {offsets = [0, 0], sizes = [8, 32], strides = [1, 1]} : vector<8x96xf32> to vector<8x32xf32>
    %87 = arith.addf %85, %86 : vector<8x32xf32>
    %88 = arith.negf %87 : vector<8x32xf32>
    %89 = math.exp %88 : vector<8x32xf32>
    %cst_27 = arith.constant 1.000000e+00 : f32
    %90 = vector.broadcast %cst_27 : f32 to vector<8x32xf32>
    %91 = arith.addf %90, %89 : vector<8x32xf32>
    %92 = arith.divf %90, %91 : vector<8x32xf32>
    %93 = vector.extract_strided_slice %83 {offsets = [0, 32], sizes = [8, 32], strides = [1, 1]} : vector<8x96xf32> to vector<8x32xf32>
    %94 = vector.extract_strided_slice %84 {offsets = [0, 32], sizes = [8, 32], strides = [1, 1]} : vector<8x96xf32> to vector<8x32xf32>
    %95 = arith.addf %93, %94 : vector<8x32xf32>
    %96 = arith.negf %95 : vector<8x32xf32>
    %97 = math.exp %96 : vector<8x32xf32>
    %cst_28 = arith.constant 1.000000e+00 : f32
    %98 = vector.broadcast %cst_28 : f32 to vector<8x32xf32>
    %99 = arith.addf %98, %97 : vector<8x32xf32>
    %100 = arith.divf %98, %99 : vector<8x32xf32>
    %101 = vector.extract_strided_slice %83 {offsets = [0, 64], sizes = [8, 32], strides = [1, 1]} : vector<8x96xf32> to vector<8x32xf32>
    %102 = vector.extract_strided_slice %84 {offsets = [0, 64], sizes = [8, 32], strides = [1, 1]} : vector<8x96xf32> to vector<8x32xf32>
    %103 = vector.broadcast %13 : vector<1x32xf32> to vector<8x32xf32>
    %104 = arith.addf %102, %103 : vector<8x32xf32>
    %105 = arith.mulf %92, %104 : vector<8x32xf32>
    %106 = arith.addf %101, %105 : vector<8x32xf32>
    %107 = math.tanh %106 : vector<8x32xf32>
    %cst_29 = arith.constant 1.000000e+00 : f32
    %108 = vector.broadcast %cst_29 : f32 to vector<8x32xf32>
    %109 = arith.subf %108, %100 : vector<8x32xf32>
    %110 = arith.mulf %109, %107 : vector<8x32xf32>
    %111 = arith.mulf %100, %78 : vector<8x32xf32>
    %112 = arith.addf %110, %111 : vector<8x32xf32>
    %c2 = arith.constant 2 : index
    %c0_30 = arith.constant 0 : index
    %c0_31 = arith.constant 0 : index
    %113 = vector.load %arg6[%c2, %c0_30, %c0_31] : memref<16x8x32xf32, #tpu.memory_space<vmem>>, vector<1x8x32xf32>
    %114 = vector.shape_cast %113 : vector<1x8x32xf32> to vector<8x32xf32>
    %115 = vector.shape_cast %112 : vector<8x32xf32> to vector<1x8x32xf32>
    tpu.vector_store %arg6[%c2, %c0_30, %c0_31], %115 {strides = array<i32>} : memref<16x8x32xf32, #tpu.memory_space<vmem>>, vector<1x8x32xf32>,
    %116 = vector.extract_strided_slice %11 {offsets = [3, 0, 0], sizes = [1, 8, 96], strides = [1, 1, 1]} : vector<16x8x96xf32> to vector<1x8x96xf32>
    %117 = vector.shape_cast %116 : vector<1x8x96xf32> to vector<8x96xf32>
    %cst_32 = arith.constant dense<0.000000e+00> : vector<8x96xf32>
    %118 = tpu.matmul %112, %12, %cst_32 {dimension_numbers = #tpu.dot_dimension_numbers<[1], [0], [0], [1], [0, 0, 1, 1], [], []>} : vector<8x32xf32>, vector<32x96xf32>, vector<8x96xf32> -> vector<8x96xf32>
    %119 = vector.extract_strided_slice %117 {offsets = [0, 0], sizes = [8, 32], strides = [1, 1]} : vector<8x96xf32> to vector<8x32xf32>
    %120 = vector.extract_strided_slice %118 {offsets = [0, 0], sizes = [8, 32], strides = [1, 1]} : vector<8x96xf32> to vector<8x32xf32>
    %121 = arith.addf %119, %120 : vector<8x32xf32>
    %122 = arith.negf %121 : vector<8x32xf32>
    %123 = math.exp %122 : vector<8x32xf32>
    %cst_33 = arith.constant 1.000000e+00 : f32
    %124 = vector.broadcast %cst_33 : f32 to vector<8x32xf32>
    %125 = arith.addf %124, %123 : vector<8x32xf32>
    %126 = arith.divf %124, %125 : vector<8x32xf32>
    %127 = vector.extract_strided_slice %117 {offsets = [0, 32], sizes = [8, 32], strides = [1, 1]} : vector<8x96xf32> to vector<8x32xf32>
    %128 = vector.extract_strided_slice %118 {offsets = [0, 32], sizes = [8, 32], strides = [1, 1]} : vector<8x96xf32> to vector<8x32xf32>
    %129 = arith.addf %127, %128 : vector<8x32xf32>
    %130 = arith.negf %129 : vector<8x32xf32>
    %131 = math.exp %130 : vector<8x32xf32>
    %cst_34 = arith.constant 1.000000e+00 : f32
    %132 = vector.broadcast %cst_34 : f32 to vector<8x32xf32>
    %133 = arith.addf %132, %131 : vector<8x32xf32>
    %134 = arith.divf %132, %133 : vector<8x32xf32>
    %135 = vector.extract_strided_slice %117 {offsets = [0, 64], sizes = [8, 32], strides = [1, 1]} : vector<8x96xf32> to vector<8x32xf32>
    %136 = vector.extract_strided_slice %118 {offsets = [0, 64], sizes = [8, 32], strides = [1, 1]} : vector<8x96xf32> to vector<8x32xf32>
    %137 = vector.broadcast %13 : vector<1x32xf32> to vector<8x32xf32>
    %138 = arith.addf %136, %137 : vector<8x32xf32>
    %139 = arith.mulf %126, %138 : vector<8x32xf32>
    %140 = arith.addf %135, %139 : vector<8x32xf32>
    %141 = math.tanh %140 : vector<8x32xf32>
    %cst_35 = arith.constant 1.000000e+00 : f32
    %142 = vector.broadcast %cst_35 : f32 to vector<8x32xf32>
    %143 = arith.subf %142, %134 : vector<8x32xf32>
    %144 = arith.mulf %143, %141 : vector<8x32xf32>
    %145 = arith.mulf %134, %112 : vector<8x32xf32>
    %146 = arith.addf %144, %145 : vector<8x32xf32>
    %c3 = arith.constant 3 : index
    %c0_36 = arith.constant 0 : index
    %c0_37 = arith.constant 0 : index
    %147 = vector.load %arg6[%c3, %c0_36, %c0_37] : memref<16x8x32xf32, #tpu.memory_space<vmem>>, vector<1x8x32xf32>
    %148 = vector.shape_cast %147 : vector<1x8x32xf32> to vector<8x32xf32>
    %149 = vector.shape_cast %146 : vector<8x32xf32> to vector<1x8x32xf32>
    tpu.vector_store %arg6[%c3, %c0_36, %c0_37], %149 {strides = array<i32>} : memref<16x8x32xf32, #tpu.memory_space<vmem>>, vector<1x8x32xf32>,
    %150 = vector.extract_strided_slice %11 {offsets = [4, 0, 0], sizes = [1, 8, 96], strides = [1, 1, 1]} : vector<16x8x96xf32> to vector<1x8x96xf32>
    %151 = vector.shape_cast %150 : vector<1x8x96xf32> to vector<8x96xf32>
    %cst_38 = arith.constant dense<0.000000e+00> : vector<8x96xf32>
    %152 = tpu.matmul %146, %12, %cst_38 {dimension_numbers = #tpu.dot_dimension_numbers<[1], [0], [0], [1], [0, 0, 1, 1], [], []>} : vector<8x32xf32>, vector<32x96xf32>, vector<8x96xf32> -> vector<8x96xf32>
    %153 = vector.extract_strided_slice %151 {offsets = [0, 0], sizes = [8, 32], strides = [1, 1]} : vector<8x96xf32> to vector<8x32xf32>
    %154 = vector.extract_strided_slice %152 {offsets = [0, 0], sizes = [8, 32], strides = [1, 1]} : vector<8x96xf32> to vector<8x32xf32>
    %155 = arith.addf %153, %154 : vector<8x32xf32>
    %156 = arith.negf %155 : vector<8x32xf32>
    %157 = math.exp %156 : vector<8x32xf32>
    %cst_39 = arith.constant 1.000000e+00 : f32
    %158 = vector.broadcast %cst_39 : f32 to vector<8x32xf32>
    %159 = arith.addf %158, %157 : vector<8x32xf32>
    %160 = arith.divf %158, %159 : vector<8x32xf32>
    %161 = vector.extract_strided_slice %151 {offsets = [0, 32], sizes = [8, 32], strides = [1, 1]} : vector<8x96xf32> to vector<8x32xf32>
    %162 = vector.extract_strided_slice %152 {offsets = [0, 32], sizes = [8, 32], strides = [1, 1]} : vector<8x96xf32> to vector<8x32xf32>
    %163 = arith.addf %161, %162 : vector<8x32xf32>
    %164 = arith.negf %163 : vector<8x32xf32>
    %165 = math.exp %164 : vector<8x32xf32>
    %cst_40 = arith.constant 1.000000e+00 : f32
    %166 = vector.broadcast %cst_40 : f32 to vector<8x32xf32>
    %167 = arith.addf %166, %165 : vector<8x32xf32>
    %168 = arith.divf %166, %167 : vector<8x32xf32>
    %169 = vector.extract_strided_slice %151 {offsets = [0, 64], sizes = [8, 32], strides = [1, 1]} : vector<8x96xf32> to vector<8x32xf32>
    %170 = vector.extract_strided_slice %152 {offsets = [0, 64], sizes = [8, 32], strides = [1, 1]} : vector<8x96xf32> to vector<8x32xf32>
    %171 = vector.broadcast %13 : vector<1x32xf32> to vector<8x32xf32>
    %172 = arith.addf %170, %171 : vector<8x32xf32>
    %173 = arith.mulf %160, %172 : vector<8x32xf32>
    %174 = arith.addf %169, %173 : vector<8x32xf32>
    %175 = math.tanh %174 : vector<8x32xf32>
    %cst_41 = arith.constant 1.000000e+00 : f32
    %176 = vector.broadcast %cst_41 : f32 to vector<8x32xf32>
    %177 = arith.subf %176, %168 : vector<8x32xf32>
    %178 = arith.mulf %177, %175 : vector<8x32xf32>
    %179 = arith.mulf %168, %146 : vector<8x32xf32>
    %180 = arith.addf %178, %179 : vector<8x32xf32>
    %c4 = arith.constant 4 : index
    %c0_42 = arith.constant 0 : index
    %c0_43 = arith.constant 0 : index
    %181 = vector.load %arg6[%c4, %c0_42, %c0_43] : memref<16x8x32xf32, #tpu.memory_space<vmem>>, vector<1x8x32xf32>
    %182 = vector.shape_cast %181 : vector<1x8x32xf32> to vector<8x32xf32>
    %183 = vector.shape_cast %180 : vector<8x32xf32> to vector<1x8x32xf32>
    tpu.vector_store %arg6[%c4, %c0_42, %c0_43], %183 {strides = array<i32>} : memref<16x8x32xf32, #tpu.memory_space<vmem>>, vector<1x8x32xf32>,
    %184 = vector.extract_strided_slice %11 {offsets = [5, 0, 0], sizes = [1, 8, 96], strides = [1, 1, 1]} : vector<16x8x96xf32> to vector<1x8x96xf32>
    %185 = vector.shape_cast %184 : vector<1x8x96xf32> to vector<8x96xf32>
    %cst_44 = arith.constant dense<0.000000e+00> : vector<8x96xf32>
    %186 = tpu.matmul %180, %12, %cst_44 {dimension_numbers = #tpu.dot_dimension_numbers<[1], [0], [0], [1], [0, 0, 1, 1], [], []>} : vector<8x32xf32>, vector<32x96xf32>, vector<8x96xf32> -> vector<8x96xf32>
    %187 = vector.extract_strided_slice %185 {offsets = [0, 0], sizes = [8, 32], strides = [1, 1]} : vector<8x96xf32> to vector<8x32xf32>
    %188 = vector.extract_strided_slice %186 {offsets = [0, 0], sizes = [8, 32], strides = [1, 1]} : vector<8x96xf32> to vector<8x32xf32>
    %189 = arith.addf %187, %188 : vector<8x32xf32>
    %190 = arith.negf %189 : vector<8x32xf32>
    %191 = math.exp %190 : vector<8x32xf32>
    %cst_45 = arith.constant 1.000000e+00 : f32
    %192 = vector.broadcast %cst_45 : f32 to vector<8x32xf32>
    %193 = arith.addf %192, %191 : vector<8x32xf32>
    %194 = arith.divf %192, %193 : vector<8x32xf32>
    %195 = vector.extract_strided_slice %185 {offsets = [0, 32], sizes = [8, 32], strides = [1, 1]} : vector<8x96xf32> to vector<8x32xf32>
    %196 = vector.extract_strided_slice %186 {offsets = [0, 32], sizes = [8, 32], strides = [1, 1]} : vector<8x96xf32> to vector<8x32xf32>
    %197 = arith.addf %195, %196 : vector<8x32xf32>
    %198 = arith.negf %197 : vector<8x32xf32>
    %199 = math.exp %198 : vector<8x32xf32>
    %cst_46 = arith.constant 1.000000e+00 : f32
    %200 = vector.broadcast %cst_46 : f32 to vector<8x32xf32>
    %201 = arith.addf %200, %199 : vector<8x32xf32>
    %202 = arith.divf %200, %201 : vector<8x32xf32>
    %203 = vector.extract_strided_slice %185 {offsets = [0, 64], sizes = [8, 32], strides = [1, 1]} : vector<8x96xf32> to vector<8x32xf32>
    %204 = vector.extract_strided_slice %186 {offsets = [0, 64], sizes = [8, 32], strides = [1, 1]} : vector<8x96xf32> to vector<8x32xf32>
    %205 = vector.broadcast %13 : vector<1x32xf32> to vector<8x32xf32>
    %206 = arith.addf %204, %205 : vector<8x32xf32>
    %207 = arith.mulf %194, %206 : vector<8x32xf32>
    %208 = arith.addf %203, %207 : vector<8x32xf32>
    %209 = math.tanh %208 : vector<8x32xf32>
    %cst_47 = arith.constant 1.000000e+00 : f32
    %210 = vector.broadcast %cst_47 : f32 to vector<8x32xf32>
    %211 = arith.subf %210, %202 : vector<8x32xf32>
    %212 = arith.mulf %211, %209 : vector<8x32xf32>
    %213 = arith.mulf %202, %180 : vector<8x32xf32>
    %214 = arith.addf %212, %213 : vector<8x32xf32>
    %c5 = arith.constant 5 : index
    %c0_48 = arith.constant 0 : index
    %c0_49 = arith.constant 0 : index
    %215 = vector.load %arg6[%c5, %c0_48, %c0_49] : memref<16x8x32xf32, #tpu.memory_space<vmem>>, vector<1x8x32xf32>
    %216 = vector.shape_cast %215 : vector<1x8x32xf32> to vector<8x32xf32>
    %217 = vector.shape_cast %214 : vector<8x32xf32> to vector<1x8x32xf32>
    tpu.vector_store %arg6[%c5, %c0_48, %c0_49], %217 {strides = array<i32>} : memref<16x8x32xf32, #tpu.memory_space<vmem>>, vector<1x8x32xf32>,
    %218 = vector.extract_strided_slice %11 {offsets = [6, 0, 0], sizes = [1, 8, 96], strides = [1, 1, 1]} : vector<16x8x96xf32> to vector<1x8x96xf32>
    %219 = vector.shape_cast %218 : vector<1x8x96xf32> to vector<8x96xf32>
    %cst_50 = arith.constant dense<0.000000e+00> : vector<8x96xf32>
    %220 = tpu.matmul %214, %12, %cst_50 {dimension_numbers = #tpu.dot_dimension_numbers<[1], [0], [0], [1], [0, 0, 1, 1], [], []>} : vector<8x32xf32>, vector<32x96xf32>, vector<8x96xf32> -> vector<8x96xf32>
    %221 = vector.extract_strided_slice %219 {offsets = [0, 0], sizes = [8, 32], strides = [1, 1]} : vector<8x96xf32> to vector<8x32xf32>
    %222 = vector.extract_strided_slice %220 {offsets = [0, 0], sizes = [8, 32], strides = [1, 1]} : vector<8x96xf32> to vector<8x32xf32>
    %223 = arith.addf %221, %222 : vector<8x32xf32>
    %224 = arith.negf %223 : vector<8x32xf32>
    %225 = math.exp %224 : vector<8x32xf32>
    %cst_51 = arith.constant 1.000000e+00 : f32
    %226 = vector.broadcast %cst_51 : f32 to vector<8x32xf32>
    %227 = arith.addf %226, %225 : vector<8x32xf32>
    %228 = arith.divf %226, %227 : vector<8x32xf32>
    %229 = vector.extract_strided_slice %219 {offsets = [0, 32], sizes = [8, 32], strides = [1, 1]} : vector<8x96xf32> to vector<8x32xf32>
    %230 = vector.extract_strided_slice %220 {offsets = [0, 32], sizes = [8, 32], strides = [1, 1]} : vector<8x96xf32> to vector<8x32xf32>
    %231 = arith.addf %229, %230 : vector<8x32xf32>
    %232 = arith.negf %231 : vector<8x32xf32>
    %233 = math.exp %232 : vector<8x32xf32>
    %cst_52 = arith.constant 1.000000e+00 : f32
    %234 = vector.broadcast %cst_52 : f32 to vector<8x32xf32>
    %235 = arith.addf %234, %233 : vector<8x32xf32>
    %236 = arith.divf %234, %235 : vector<8x32xf32>
    %237 = vector.extract_strided_slice %219 {offsets = [0, 64], sizes = [8, 32], strides = [1, 1]} : vector<8x96xf32> to vector<8x32xf32>
    %238 = vector.extract_strided_slice %220 {offsets = [0, 64], sizes = [8, 32], strides = [1, 1]} : vector<8x96xf32> to vector<8x32xf32>
    %239 = vector.broadcast %13 : vector<1x32xf32> to vector<8x32xf32>
    %240 = arith.addf %238, %239 : vector<8x32xf32>
    %241 = arith.mulf %228, %240 : vector<8x32xf32>
    %242 = arith.addf %237, %241 : vector<8x32xf32>
    %243 = math.tanh %242 : vector<8x32xf32>
    %cst_53 = arith.constant 1.000000e+00 : f32
    %244 = vector.broadcast %cst_53 : f32 to vector<8x32xf32>
    %245 = arith.subf %244, %236 : vector<8x32xf32>
    %246 = arith.mulf %245, %243 : vector<8x32xf32>
    %247 = arith.mulf %236, %214 : vector<8x32xf32>
    %248 = arith.addf %246, %247 : vector<8x32xf32>
    %c6 = arith.constant 6 : index
    %c0_54 = arith.constant 0 : index
    %c0_55 = arith.constant 0 : index
    %249 = vector.load %arg6[%c6, %c0_54, %c0_55] : memref<16x8x32xf32, #tpu.memory_space<vmem>>, vector<1x8x32xf32>
    %250 = vector.shape_cast %249 : vector<1x8x32xf32> to vector<8x32xf32>
    %251 = vector.shape_cast %248 : vector<8x32xf32> to vector<1x8x32xf32>
    tpu.vector_store %arg6[%c6, %c0_54, %c0_55], %251 {strides = array<i32>} : memref<16x8x32xf32, #tpu.memory_space<vmem>>, vector<1x8x32xf32>,
    %252 = vector.extract_strided_slice %11 {offsets = [7, 0, 0], sizes = [1, 8, 96], strides = [1, 1, 1]} : vector<16x8x96xf32> to vector<1x8x96xf32>
    %253 = vector.shape_cast %252 : vector<1x8x96xf32> to vector<8x96xf32>
    %cst_56 = arith.constant dense<0.000000e+00> : vector<8x96xf32>
    %254 = tpu.matmul %248, %12, %cst_56 {dimension_numbers = #tpu.dot_dimension_numbers<[1], [0], [0], [1], [0, 0, 1, 1], [], []>} : vector<8x32xf32>, vector<32x96xf32>, vector<8x96xf32> -> vector<8x96xf32>
    %255 = vector.extract_strided_slice %253 {offsets = [0, 0], sizes = [8, 32], strides = [1, 1]} : vector<8x96xf32> to vector<8x32xf32>
    %256 = vector.extract_strided_slice %254 {offsets = [0, 0], sizes = [8, 32], strides = [1, 1]} : vector<8x96xf32> to vector<8x32xf32>
    %257 = arith.addf %255, %256 : vector<8x32xf32>
    %258 = arith.negf %257 : vector<8x32xf32>
    %259 = math.exp %258 : vector<8x32xf32>
    %cst_57 = arith.constant 1.000000e+00 : f32
    %260 = vector.broadcast %cst_57 : f32 to vector<8x32xf32>
    %261 = arith.addf %260, %259 : vector<8x32xf32>
    %262 = arith.divf %260, %261 : vector<8x32xf32>
    %263 = vector.extract_strided_slice %253 {offsets = [0, 32], sizes = [8, 32], strides = [1, 1]} : vector<8x96xf32> to vector<8x32xf32>
    %264 = vector.extract_strided_slice %254 {offsets = [0, 32], sizes = [8, 32], strides = [1, 1]} : vector<8x96xf32> to vector<8x32xf32>
    %265 = arith.addf %263, %264 : vector<8x32xf32>
    %266 = arith.negf %265 : vector<8x32xf32>
    %267 = math.exp %266 : vector<8x32xf32>
    %cst_58 = arith.constant 1.000000e+00 : f32
    %268 = vector.broadcast %cst_58 : f32 to vector<8x32xf32>
    %269 = arith.addf %268, %267 : vector<8x32xf32>
    %270 = arith.divf %268, %269 : vector<8x32xf32>
    %271 = vector.extract_strided_slice %253 {offsets = [0, 64], sizes = [8, 32], strides = [1, 1]} : vector<8x96xf32> to vector<8x32xf32>
    %272 = vector.extract_strided_slice %254 {offsets = [0, 64], sizes = [8, 32], strides = [1, 1]} : vector<8x96xf32> to vector<8x32xf32>
    %273 = vector.broadcast %13 : vector<1x32xf32> to vector<8x32xf32>
    %274 = arith.addf %272, %273 : vector<8x32xf32>
    %275 = arith.mulf %262, %274 : vector<8x32xf32>
    %276 = arith.addf %271, %275 : vector<8x32xf32>
    %277 = math.tanh %276 : vector<8x32xf32>
    %cst_59 = arith.constant 1.000000e+00 : f32
    %278 = vector.broadcast %cst_59 : f32 to vector<8x32xf32>
    %279 = arith.subf %278, %270 : vector<8x32xf32>
    %280 = arith.mulf %279, %277 : vector<8x32xf32>
    %281 = arith.mulf %270, %248 : vector<8x32xf32>
    %282 = arith.addf %280, %281 : vector<8x32xf32>
    %c7 = arith.constant 7 : index
    %c0_60 = arith.constant 0 : index
    %c0_61 = arith.constant 0 : index
    %283 = vector.load %arg6[%c7, %c0_60, %c0_61] : memref<16x8x32xf32, #tpu.memory_space<vmem>>, vector<1x8x32xf32>
    %284 = vector.shape_cast %283 : vector<1x8x32xf32> to vector<8x32xf32>
    %285 = vector.shape_cast %282 : vector<8x32xf32> to vector<1x8x32xf32>
    tpu.vector_store %arg6[%c7, %c0_60, %c0_61], %285 {strides = array<i32>} : memref<16x8x32xf32, #tpu.memory_space<vmem>>, vector<1x8x32xf32>,
    %286 = vector.extract_strided_slice %11 {offsets = [8, 0, 0], sizes = [1, 8, 96], strides = [1, 1, 1]} : vector<16x8x96xf32> to vector<1x8x96xf32>
    %287 = vector.shape_cast %286 : vector<1x8x96xf32> to vector<8x96xf32>
    %cst_62 = arith.constant dense<0.000000e+00> : vector<8x96xf32>
    %288 = tpu.matmul %282, %12, %cst_62 {dimension_numbers = #tpu.dot_dimension_numbers<[1], [0], [0], [1], [0, 0, 1, 1], [], []>} : vector<8x32xf32>, vector<32x96xf32>, vector<8x96xf32> -> vector<8x96xf32>
    %289 = vector.extract_strided_slice %287 {offsets = [0, 0], sizes = [8, 32], strides = [1, 1]} : vector<8x96xf32> to vector<8x32xf32>
    %290 = vector.extract_strided_slice %288 {offsets = [0, 0], sizes = [8, 32], strides = [1, 1]} : vector<8x96xf32> to vector<8x32xf32>
    %291 = arith.addf %289, %290 : vector<8x32xf32>
    %292 = arith.negf %291 : vector<8x32xf32>
    %293 = math.exp %292 : vector<8x32xf32>
    %cst_63 = arith.constant 1.000000e+00 : f32
    %294 = vector.broadcast %cst_63 : f32 to vector<8x32xf32>
    %295 = arith.addf %294, %293 : vector<8x32xf32>
    %296 = arith.divf %294, %295 : vector<8x32xf32>
    %297 = vector.extract_strided_slice %287 {offsets = [0, 32], sizes = [8, 32], strides = [1, 1]} : vector<8x96xf32> to vector<8x32xf32>
    %298 = vector.extract_strided_slice %288 {offsets = [0, 32], sizes = [8, 32], strides = [1, 1]} : vector<8x96xf32> to vector<8x32xf32>
    %299 = arith.addf %297, %298 : vector<8x32xf32>
    %300 = arith.negf %299 : vector<8x32xf32>
    %301 = math.exp %300 : vector<8x32xf32>
    %cst_64 = arith.constant 1.000000e+00 : f32
    %302 = vector.broadcast %cst_64 : f32 to vector<8x32xf32>
    %303 = arith.addf %302, %301 : vector<8x32xf32>
    %304 = arith.divf %302, %303 : vector<8x32xf32>
    %305 = vector.extract_strided_slice %287 {offsets = [0, 64], sizes = [8, 32], strides = [1, 1]} : vector<8x96xf32> to vector<8x32xf32>
    %306 = vector.extract_strided_slice %288 {offsets = [0, 64], sizes = [8, 32], strides = [1, 1]} : vector<8x96xf32> to vector<8x32xf32>
    %307 = vector.broadcast %13 : vector<1x32xf32> to vector<8x32xf32>
    %308 = arith.addf %306, %307 : vector<8x32xf32>
    %309 = arith.mulf %296, %308 : vector<8x32xf32>
    %310 = arith.addf %305, %309 : vector<8x32xf32>
    %311 = math.tanh %310 : vector<8x32xf32>
    %cst_65 = arith.constant 1.000000e+00 : f32
    %312 = vector.broadcast %cst_65 : f32 to vector<8x32xf32>
    %313 = arith.subf %312, %304 : vector<8x32xf32>
    %314 = arith.mulf %313, %311 : vector<8x32xf32>
    %315 = arith.mulf %304, %282 : vector<8x32xf32>
    %316 = arith.addf %314, %315 : vector<8x32xf32>
    %c8 = arith.constant 8 : index
    %c0_66 = arith.constant 0 : index
    %c0_67 = arith.constant 0 : index
    %317 = vector.load %arg6[%c8, %c0_66, %c0_67] : memref<16x8x32xf32, #tpu.memory_space<vmem>>, vector<1x8x32xf32>
    %318 = vector.shape_cast %317 : vector<1x8x32xf32> to vector<8x32xf32>
    %319 = vector.shape_cast %316 : vector<8x32xf32> to vector<1x8x32xf32>
    tpu.vector_store %arg6[%c8, %c0_66, %c0_67], %319 {strides = array<i32>} : memref<16x8x32xf32, #tpu.memory_space<vmem>>, vector<1x8x32xf32>,
    %320 = vector.extract_strided_slice %11 {offsets = [9, 0, 0], sizes = [1, 8, 96], strides = [1, 1, 1]} : vector<16x8x96xf32> to vector<1x8x96xf32>
    %321 = vector.shape_cast %320 : vector<1x8x96xf32> to vector<8x96xf32>
    %cst_68 = arith.constant dense<0.000000e+00> : vector<8x96xf32>
    %322 = tpu.matmul %316, %12, %cst_68 {dimension_numbers = #tpu.dot_dimension_numbers<[1], [0], [0], [1], [0, 0, 1, 1], [], []>} : vector<8x32xf32>, vector<32x96xf32>, vector<8x96xf32> -> vector<8x96xf32>
    %323 = vector.extract_strided_slice %321 {offsets = [0, 0], sizes = [8, 32], strides = [1, 1]} : vector<8x96xf32> to vector<8x32xf32>
    %324 = vector.extract_strided_slice %322 {offsets = [0, 0], sizes = [8, 32], strides = [1, 1]} : vector<8x96xf32> to vector<8x32xf32>
    %325 = arith.addf %323, %324 : vector<8x32xf32>
    %326 = arith.negf %325 : vector<8x32xf32>
    %327 = math.exp %326 : vector<8x32xf32>
    %cst_69 = arith.constant 1.000000e+00 : f32
    %328 = vector.broadcast %cst_69 : f32 to vector<8x32xf32>
    %329 = arith.addf %328, %327 : vector<8x32xf32>
    %330 = arith.divf %328, %329 : vector<8x32xf32>
    %331 = vector.extract_strided_slice %321 {offsets = [0, 32], sizes = [8, 32], strides = [1, 1]} : vector<8x96xf32> to vector<8x32xf32>
    %332 = vector.extract_strided_slice %322 {offsets = [0, 32], sizes = [8, 32], strides = [1, 1]} : vector<8x96xf32> to vector<8x32xf32>
    %333 = arith.addf %331, %332 : vector<8x32xf32>
    %334 = arith.negf %333 : vector<8x32xf32>
    %335 = math.exp %334 : vector<8x32xf32>
    %cst_70 = arith.constant 1.000000e+00 : f32
    %336 = vector.broadcast %cst_70 : f32 to vector<8x32xf32>
    %337 = arith.addf %336, %335 : vector<8x32xf32>
    %338 = arith.divf %336, %337 : vector<8x32xf32>
    %339 = vector.extract_strided_slice %321 {offsets = [0, 64], sizes = [8, 32], strides = [1, 1]} : vector<8x96xf32> to vector<8x32xf32>
    %340 = vector.extract_strided_slice %322 {offsets = [0, 64], sizes = [8, 32], strides = [1, 1]} : vector<8x96xf32> to vector<8x32xf32>
    %341 = vector.broadcast %13 : vector<1x32xf32> to vector<8x32xf32>
    %342 = arith.addf %340, %341 : vector<8x32xf32>
    %343 = arith.mulf %330, %342 : vector<8x32xf32>
    %344 = arith.addf %339, %343 : vector<8x32xf32>
    %345 = math.tanh %344 : vector<8x32xf32>
    %cst_71 = arith.constant 1.000000e+00 : f32
    %346 = vector.broadcast %cst_71 : f32 to vector<8x32xf32>
    %347 = arith.subf %346, %338 : vector<8x32xf32>
    %348 = arith.mulf %347, %345 : vector<8x32xf32>
    %349 = arith.mulf %338, %316 : vector<8x32xf32>
    %350 = arith.addf %348, %349 : vector<8x32xf32>
    %c9 = arith.constant 9 : index
    %c0_72 = arith.constant 0 : index
    %c0_73 = arith.constant 0 : index
    %351 = vector.load %arg6[%c9, %c0_72, %c0_73] : memref<16x8x32xf32, #tpu.memory_space<vmem>>, vector<1x8x32xf32>
    %352 = vector.shape_cast %351 : vector<1x8x32xf32> to vector<8x32xf32>
    %353 = vector.shape_cast %350 : vector<8x32xf32> to vector<1x8x32xf32>
    tpu.vector_store %arg6[%c9, %c0_72, %c0_73], %353 {strides = array<i32>} : memref<16x8x32xf32, #tpu.memory_space<vmem>>, vector<1x8x32xf32>,
    %354 = vector.extract_strided_slice %11 {offsets = [10, 0, 0], sizes = [1, 8, 96], strides = [1, 1, 1]} : vector<16x8x96xf32> to vector<1x8x96xf32>
    %355 = vector.shape_cast %354 : vector<1x8x96xf32> to vector<8x96xf32>
    %cst_74 = arith.constant dense<0.000000e+00> : vector<8x96xf32>
    %356 = tpu.matmul %350, %12, %cst_74 {dimension_numbers = #tpu.dot_dimension_numbers<[1], [0], [0], [1], [0, 0, 1, 1], [], []>} : vector<8x32xf32>, vector<32x96xf32>, vector<8x96xf32> -> vector<8x96xf32>
    %357 = vector.extract_strided_slice %355 {offsets = [0, 0], sizes = [8, 32], strides = [1, 1]} : vector<8x96xf32> to vector<8x32xf32>
    %358 = vector.extract_strided_slice %356 {offsets = [0, 0], sizes = [8, 32], strides = [1, 1]} : vector<8x96xf32> to vector<8x32xf32>
    %359 = arith.addf %357, %358 : vector<8x32xf32>
    %360 = arith.negf %359 : vector<8x32xf32>
    %361 = math.exp %360 : vector<8x32xf32>
    %cst_75 = arith.constant 1.000000e+00 : f32
    %362 = vector.broadcast %cst_75 : f32 to vector<8x32xf32>
    %363 = arith.addf %362, %361 : vector<8x32xf32>
    %364 = arith.divf %362, %363 : vector<8x32xf32>
    %365 = vector.extract_strided_slice %355 {offsets = [0, 32], sizes = [8, 32], strides = [1, 1]} : vector<8x96xf32> to vector<8x32xf32>
    %366 = vector.extract_strided_slice %356 {offsets = [0, 32], sizes = [8, 32], strides = [1, 1]} : vector<8x96xf32> to vector<8x32xf32>
    %367 = arith.addf %365, %366 : vector<8x32xf32>
    %368 = arith.negf %367 : vector<8x32xf32>
    %369 = math.exp %368 : vector<8x32xf32>
    %cst_76 = arith.constant 1.000000e+00 : f32
    %370 = vector.broadcast %cst_76 : f32 to vector<8x32xf32>
    %371 = arith.addf %370, %369 : vector<8x32xf32>
    %372 = arith.divf %370, %371 : vector<8x32xf32>
    %373 = vector.extract_strided_slice %355 {offsets = [0, 64], sizes = [8, 32], strides = [1, 1]} : vector<8x96xf32> to vector<8x32xf32>
    %374 = vector.extract_strided_slice %356 {offsets = [0, 64], sizes = [8, 32], strides = [1, 1]} : vector<8x96xf32> to vector<8x32xf32>
    %375 = vector.broadcast %13 : vector<1x32xf32> to vector<8x32xf32>
    %376 = arith.addf %374, %375 : vector<8x32xf32>
    %377 = arith.mulf %364, %376 : vector<8x32xf32>
    %378 = arith.addf %373, %377 : vector<8x32xf32>
    %379 = math.tanh %378 : vector<8x32xf32>
    %cst_77 = arith.constant 1.000000e+00 : f32
    %380 = vector.broadcast %cst_77 : f32 to vector<8x32xf32>
    %381 = arith.subf %380, %372 : vector<8x32xf32>
    %382 = arith.mulf %381, %379 : vector<8x32xf32>
    %383 = arith.mulf %372, %350 : vector<8x32xf32>
    %384 = arith.addf %382, %383 : vector<8x32xf32>
    %c10 = arith.constant 10 : index
    %c0_78 = arith.constant 0 : index
    %c0_79 = arith.constant 0 : index
    %385 = vector.load %arg6[%c10, %c0_78, %c0_79] : memref<16x8x32xf32, #tpu.memory_space<vmem>>, vector<1x8x32xf32>
    %386 = vector.shape_cast %385 : vector<1x8x32xf32> to vector<8x32xf32>
    %387 = vector.shape_cast %384 : vector<8x32xf32> to vector<1x8x32xf32>
    tpu.vector_store %arg6[%c10, %c0_78, %c0_79], %387 {strides = array<i32>} : memref<16x8x32xf32, #tpu.memory_space<vmem>>, vector<1x8x32xf32>,
    %388 = vector.extract_strided_slice %11 {offsets = [11, 0, 0], sizes = [1, 8, 96], strides = [1, 1, 1]} : vector<16x8x96xf32> to vector<1x8x96xf32>
    %389 = vector.shape_cast %388 : vector<1x8x96xf32> to vector<8x96xf32>
    %cst_80 = arith.constant dense<0.000000e+00> : vector<8x96xf32>
    %390 = tpu.matmul %384, %12, %cst_80 {dimension_numbers = #tpu.dot_dimension_numbers<[1], [0], [0], [1], [0, 0, 1, 1], [], []>} : vector<8x32xf32>, vector<32x96xf32>, vector<8x96xf32> -> vector<8x96xf32>
    %391 = vector.extract_strided_slice %389 {offsets = [0, 0], sizes = [8, 32], strides = [1, 1]} : vector<8x96xf32> to vector<8x32xf32>
    %392 = vector.extract_strided_slice %390 {offsets = [0, 0], sizes = [8, 32], strides = [1, 1]} : vector<8x96xf32> to vector<8x32xf32>
    %393 = arith.addf %391, %392 : vector<8x32xf32>
    %394 = arith.negf %393 : vector<8x32xf32>
    %395 = math.exp %394 : vector<8x32xf32>
    %cst_81 = arith.constant 1.000000e+00 : f32
    %396 = vector.broadcast %cst_81 : f32 to vector<8x32xf32>
    %397 = arith.addf %396, %395 : vector<8x32xf32>
    %398 = arith.divf %396, %397 : vector<8x32xf32>
    %399 = vector.extract_strided_slice %389 {offsets = [0, 32], sizes = [8, 32], strides = [1, 1]} : vector<8x96xf32> to vector<8x32xf32>
    %400 = vector.extract_strided_slice %390 {offsets = [0, 32], sizes = [8, 32], strides = [1, 1]} : vector<8x96xf32> to vector<8x32xf32>
    %401 = arith.addf %399, %400 : vector<8x32xf32>
    %402 = arith.negf %401 : vector<8x32xf32>
    %403 = math.exp %402 : vector<8x32xf32>
    %cst_82 = arith.constant 1.000000e+00 : f32
    %404 = vector.broadcast %cst_82 : f32 to vector<8x32xf32>
    %405 = arith.addf %404, %403 : vector<8x32xf32>
    %406 = arith.divf %404, %405 : vector<8x32xf32>
    %407 = vector.extract_strided_slice %389 {offsets = [0, 64], sizes = [8, 32], strides = [1, 1]} : vector<8x96xf32> to vector<8x32xf32>
    %408 = vector.extract_strided_slice %390 {offsets = [0, 64], sizes = [8, 32], strides = [1, 1]} : vector<8x96xf32> to vector<8x32xf32>
    %409 = vector.broadcast %13 : vector<1x32xf32> to vector<8x32xf32>
    %410 = arith.addf %408, %409 : vector<8x32xf32>
    %411 = arith.mulf %398, %410 : vector<8x32xf32>
    %412 = arith.addf %407, %411 : vector<8x32xf32>
    %413 = math.tanh %412 : vector<8x32xf32>
    %cst_83 = arith.constant 1.000000e+00 : f32
    %414 = vector.broadcast %cst_83 : f32 to vector<8x32xf32>
    %415 = arith.subf %414, %406 : vector<8x32xf32>
    %416 = arith.mulf %415, %413 : vector<8x32xf32>
    %417 = arith.mulf %406, %384 : vector<8x32xf32>
    %418 = arith.addf %416, %417 : vector<8x32xf32>
    %c11 = arith.constant 11 : index
    %c0_84 = arith.constant 0 : index
    %c0_85 = arith.constant 0 : index
    %419 = vector.load %arg6[%c11, %c0_84, %c0_85] : memref<16x8x32xf32, #tpu.memory_space<vmem>>, vector<1x8x32xf32>
    %420 = vector.shape_cast %419 : vector<1x8x32xf32> to vector<8x32xf32>
    %421 = vector.shape_cast %418 : vector<8x32xf32> to vector<1x8x32xf32>
    tpu.vector_store %arg6[%c11, %c0_84, %c0_85], %421 {strides = array<i32>} : memref<16x8x32xf32, #tpu.memory_space<vmem>>, vector<1x8x32xf32>,
    %422 = vector.extract_strided_slice %11 {offsets = [12, 0, 0], sizes = [1, 8, 96], strides = [1, 1, 1]} : vector<16x8x96xf32> to vector<1x8x96xf32>
    %423 = vector.shape_cast %422 : vector<1x8x96xf32> to vector<8x96xf32>
    %cst_86 = arith.constant dense<0.000000e+00> : vector<8x96xf32>
    %424 = tpu.matmul %418, %12, %cst_86 {dimension_numbers = #tpu.dot_dimension_numbers<[1], [0], [0], [1], [0, 0, 1, 1], [], []>} : vector<8x32xf32>, vector<32x96xf32>, vector<8x96xf32> -> vector<8x96xf32>
    %425 = vector.extract_strided_slice %423 {offsets = [0, 0], sizes = [8, 32], strides = [1, 1]} : vector<8x96xf32> to vector<8x32xf32>
    %426 = vector.extract_strided_slice %424 {offsets = [0, 0], sizes = [8, 32], strides = [1, 1]} : vector<8x96xf32> to vector<8x32xf32>
    %427 = arith.addf %425, %426 : vector<8x32xf32>
    %428 = arith.negf %427 : vector<8x32xf32>
    %429 = math.exp %428 : vector<8x32xf32>
    %cst_87 = arith.constant 1.000000e+00 : f32
    %430 = vector.broadcast %cst_87 : f32 to vector<8x32xf32>
    %431 = arith.addf %430, %429 : vector<8x32xf32>
    %432 = arith.divf %430, %431 : vector<8x32xf32>
    %433 = vector.extract_strided_slice %423 {offsets = [0, 32], sizes = [8, 32], strides = [1, 1]} : vector<8x96xf32> to vector<8x32xf32>
    %434 = vector.extract_strided_slice %424 {offsets = [0, 32], sizes = [8, 32], strides = [1, 1]} : vector<8x96xf32> to vector<8x32xf32>
    %435 = arith.addf %433, %434 : vector<8x32xf32>
    %436 = arith.negf %435 : vector<8x32xf32>
    %437 = math.exp %436 : vector<8x32xf32>
    %cst_88 = arith.constant 1.000000e+00 : f32
    %438 = vector.broadcast %cst_88 : f32 to vector<8x32xf32>
    %439 = arith.addf %438, %437 : vector<8x32xf32>
    %440 = arith.divf %438, %439 : vector<8x32xf32>
    %441 = vector.extract_strided_slice %423 {offsets = [0, 64], sizes = [8, 32], strides = [1, 1]} : vector<8x96xf32> to vector<8x32xf32>
    %442 = vector.extract_strided_slice %424 {offsets = [0, 64], sizes = [8, 32], strides = [1, 1]} : vector<8x96xf32> to vector<8x32xf32>
    %443 = vector.broadcast %13 : vector<1x32xf32> to vector<8x32xf32>
    %444 = arith.addf %442, %443 : vector<8x32xf32>
    %445 = arith.mulf %432, %444 : vector<8x32xf32>
    %446 = arith.addf %441, %445 : vector<8x32xf32>
    %447 = math.tanh %446 : vector<8x32xf32>
    %cst_89 = arith.constant 1.000000e+00 : f32
    %448 = vector.broadcast %cst_89 : f32 to vector<8x32xf32>
    %449 = arith.subf %448, %440 : vector<8x32xf32>
    %450 = arith.mulf %449, %447 : vector<8x32xf32>
    %451 = arith.mulf %440, %418 : vector<8x32xf32>
    %452 = arith.addf %450, %451 : vector<8x32xf32>
    %c12 = arith.constant 12 : index
    %c0_90 = arith.constant 0 : index
    %c0_91 = arith.constant 0 : index
    %453 = vector.load %arg6[%c12, %c0_90, %c0_91] : memref<16x8x32xf32, #tpu.memory_space<vmem>>, vector<1x8x32xf32>
    %454 = vector.shape_cast %453 : vector<1x8x32xf32> to vector<8x32xf32>
    %455 = vector.shape_cast %452 : vector<8x32xf32> to vector<1x8x32xf32>
    tpu.vector_store %arg6[%c12, %c0_90, %c0_91], %455 {strides = array<i32>} : memref<16x8x32xf32, #tpu.memory_space<vmem>>, vector<1x8x32xf32>,
    %456 = vector.extract_strided_slice %11 {offsets = [13, 0, 0], sizes = [1, 8, 96], strides = [1, 1, 1]} : vector<16x8x96xf32> to vector<1x8x96xf32>
    %457 = vector.shape_cast %456 : vector<1x8x96xf32> to vector<8x96xf32>
    %cst_92 = arith.constant dense<0.000000e+00> : vector<8x96xf32>
    %458 = tpu.matmul %452, %12, %cst_92 {dimension_numbers = #tpu.dot_dimension_numbers<[1], [0], [0], [1], [0, 0, 1, 1], [], []>} : vector<8x32xf32>, vector<32x96xf32>, vector<8x96xf32> -> vector<8x96xf32>
    %459 = vector.extract_strided_slice %457 {offsets = [0, 0], sizes = [8, 32], strides = [1, 1]} : vector<8x96xf32> to vector<8x32xf32>
    %460 = vector.extract_strided_slice %458 {offsets = [0, 0], sizes = [8, 32], strides = [1, 1]} : vector<8x96xf32> to vector<8x32xf32>
    %461 = arith.addf %459, %460 : vector<8x32xf32>
    %462 = arith.negf %461 : vector<8x32xf32>
    %463 = math.exp %462 : vector<8x32xf32>
    %cst_93 = arith.constant 1.000000e+00 : f32
    %464 = vector.broadcast %cst_93 : f32 to vector<8x32xf32>
    %465 = arith.addf %464, %463 : vector<8x32xf32>
    %466 = arith.divf %464, %465 : vector<8x32xf32>
    %467 = vector.extract_strided_slice %457 {offsets = [0, 32], sizes = [8, 32], strides = [1, 1]} : vector<8x96xf32> to vector<8x32xf32>
    %468 = vector.extract_strided_slice %458 {offsets = [0, 32], sizes = [8, 32], strides = [1, 1]} : vector<8x96xf32> to vector<8x32xf32>
    %469 = arith.addf %467, %468 : vector<8x32xf32>
    %470 = arith.negf %469 : vector<8x32xf32>
    %471 = math.exp %470 : vector<8x32xf32>
    %cst_94 = arith.constant 1.000000e+00 : f32
    %472 = vector.broadcast %cst_94 : f32 to vector<8x32xf32>
    %473 = arith.addf %472, %471 : vector<8x32xf32>
    %474 = arith.divf %472, %473 : vector<8x32xf32>
    %475 = vector.extract_strided_slice %457 {offsets = [0, 64], sizes = [8, 32], strides = [1, 1]} : vector<8x96xf32> to vector<8x32xf32>
    %476 = vector.extract_strided_slice %458 {offsets = [0, 64], sizes = [8, 32], strides = [1, 1]} : vector<8x96xf32> to vector<8x32xf32>
    %477 = vector.broadcast %13 : vector<1x32xf32> to vector<8x32xf32>
    %478 = arith.addf %476, %477 : vector<8x32xf32>
    %479 = arith.mulf %466, %478 : vector<8x32xf32>
    %480 = arith.addf %475, %479 : vector<8x32xf32>
    %481 = math.tanh %480 : vector<8x32xf32>
    %cst_95 = arith.constant 1.000000e+00 : f32
    %482 = vector.broadcast %cst_95 : f32 to vector<8x32xf32>
    %483 = arith.subf %482, %474 : vector<8x32xf32>
    %484 = arith.mulf %483, %481 : vector<8x32xf32>
    %485 = arith.mulf %474, %452 : vector<8x32xf32>
    %486 = arith.addf %484, %485 : vector<8x32xf32>
    %c13 = arith.constant 13 : index
    %c0_96 = arith.constant 0 : index
    %c0_97 = arith.constant 0 : index
    %487 = vector.load %arg6[%c13, %c0_96, %c0_97] : memref<16x8x32xf32, #tpu.memory_space<vmem>>, vector<1x8x32xf32>
    %488 = vector.shape_cast %487 : vector<1x8x32xf32> to vector<8x32xf32>
    %489 = vector.shape_cast %486 : vector<8x32xf32> to vector<1x8x32xf32>
    tpu.vector_store %arg6[%c13, %c0_96, %c0_97], %489 {strides = array<i32>} : memref<16x8x32xf32, #tpu.memory_space<vmem>>, vector<1x8x32xf32>,
    %490 = vector.extract_strided_slice %11 {offsets = [14, 0, 0], sizes = [1, 8, 96], strides = [1, 1, 1]} : vector<16x8x96xf32> to vector<1x8x96xf32>
    %491 = vector.shape_cast %490 : vector<1x8x96xf32> to vector<8x96xf32>
    %cst_98 = arith.constant dense<0.000000e+00> : vector<8x96xf32>
    %492 = tpu.matmul %486, %12, %cst_98 {dimension_numbers = #tpu.dot_dimension_numbers<[1], [0], [0], [1], [0, 0, 1, 1], [], []>} : vector<8x32xf32>, vector<32x96xf32>, vector<8x96xf32> -> vector<8x96xf32>
    %493 = vector.extract_strided_slice %491 {offsets = [0, 0], sizes = [8, 32], strides = [1, 1]} : vector<8x96xf32> to vector<8x32xf32>
    %494 = vector.extract_strided_slice %492 {offsets = [0, 0], sizes = [8, 32], strides = [1, 1]} : vector<8x96xf32> to vector<8x32xf32>
    %495 = arith.addf %493, %494 : vector<8x32xf32>
    %496 = arith.negf %495 : vector<8x32xf32>
    %497 = math.exp %496 : vector<8x32xf32>
    %cst_99 = arith.constant 1.000000e+00 : f32
    %498 = vector.broadcast %cst_99 : f32 to vector<8x32xf32>
    %499 = arith.addf %498, %497 : vector<8x32xf32>
    %500 = arith.divf %498, %499 : vector<8x32xf32>
    %501 = vector.extract_strided_slice %491 {offsets = [0, 32], sizes = [8, 32], strides = [1, 1]} : vector<8x96xf32> to vector<8x32xf32>
    %502 = vector.extract_strided_slice %492 {offsets = [0, 32], sizes = [8, 32], strides = [1, 1]} : vector<8x96xf32> to vector<8x32xf32>
    %503 = arith.addf %501, %502 : vector<8x32xf32>
    %504 = arith.negf %503 : vector<8x32xf32>
    %505 = math.exp %504 : vector<8x32xf32>
    %cst_100 = arith.constant 1.000000e+00 : f32
    %506 = vector.broadcast %cst_100 : f32 to vector<8x32xf32>
    %507 = arith.addf %506, %505 : vector<8x32xf32>
    %508 = arith.divf %506, %507 : vector<8x32xf32>
    %509 = vector.extract_strided_slice %491 {offsets = [0, 64], sizes = [8, 32], strides = [1, 1]} : vector<8x96xf32> to vector<8x32xf32>
    %510 = vector.extract_strided_slice %492 {offsets = [0, 64], sizes = [8, 32], strides = [1, 1]} : vector<8x96xf32> to vector<8x32xf32>
    %511 = vector.broadcast %13 : vector<1x32xf32> to vector<8x32xf32>
    %512 = arith.addf %510, %511 : vector<8x32xf32>
    %513 = arith.mulf %500, %512 : vector<8x32xf32>
    %514 = arith.addf %509, %513 : vector<8x32xf32>
    %515 = math.tanh %514 : vector<8x32xf32>
    %cst_101 = arith.constant 1.000000e+00 : f32
    %516 = vector.broadcast %cst_101 : f32 to vector<8x32xf32>
    %517 = arith.subf %516, %508 : vector<8x32xf32>
    %518 = arith.mulf %517, %515 : vector<8x32xf32>
    %519 = arith.mulf %508, %486 : vector<8x32xf32>
    %520 = arith.addf %518, %519 : vector<8x32xf32>
    %c14 = arith.constant 14 : index
    %c0_102 = arith.constant 0 : index
    %c0_103 = arith.constant 0 : index
    %521 = vector.load %arg6[%c14, %c0_102, %c0_103] : memref<16x8x32xf32, #tpu.memory_space<vmem>>, vector<1x8x32xf32>
    %522 = vector.shape_cast %521 : vector<1x8x32xf32> to vector<8x32xf32>
    %523 = vector.shape_cast %520 : vector<8x32xf32> to vector<1x8x32xf32>
    tpu.vector_store %arg6[%c14, %c0_102, %c0_103], %523 {strides = array<i32>} : memref<16x8x32xf32, #tpu.memory_space<vmem>>, vector<1x8x32xf32>,
    %524 = vector.extract_strided_slice %11 {offsets = [15, 0, 0], sizes = [1, 8, 96], strides = [1, 1, 1]} : vector<16x8x96xf32> to vector<1x8x96xf32>
    %525 = vector.shape_cast %524 : vector<1x8x96xf32> to vector<8x96xf32>
    %cst_104 = arith.constant dense<0.000000e+00> : vector<8x96xf32>
    %526 = tpu.matmul %520, %12, %cst_104 {dimension_numbers = #tpu.dot_dimension_numbers<[1], [0], [0], [1], [0, 0, 1, 1], [], []>} : vector<8x32xf32>, vector<32x96xf32>, vector<8x96xf32> -> vector<8x96xf32>
    %527 = vector.extract_strided_slice %525 {offsets = [0, 0], sizes = [8, 32], strides = [1, 1]} : vector<8x96xf32> to vector<8x32xf32>
    %528 = vector.extract_strided_slice %526 {offsets = [0, 0], sizes = [8, 32], strides = [1, 1]} : vector<8x96xf32> to vector<8x32xf32>
    %529 = arith.addf %527, %528 : vector<8x32xf32>
    %530 = arith.negf %529 : vector<8x32xf32>
    %531 = math.exp %530 : vector<8x32xf32>
    %cst_105 = arith.constant 1.000000e+00 : f32
    %532 = vector.broadcast %cst_105 : f32 to vector<8x32xf32>
    %533 = arith.addf %532, %531 : vector<8x32xf32>
    %534 = arith.divf %532, %533 : vector<8x32xf32>
    %535 = vector.extract_strided_slice %525 {offsets = [0, 32], sizes = [8, 32], strides = [1, 1]} : vector<8x96xf32> to vector<8x32xf32>
    %536 = vector.extract_strided_slice %526 {offsets = [0, 32], sizes = [8, 32], strides = [1, 1]} : vector<8x96xf32> to vector<8x32xf32>
    %537 = arith.addf %535, %536 : vector<8x32xf32>
    %538 = arith.negf %537 : vector<8x32xf32>
    %539 = math.exp %538 : vector<8x32xf32>
    %cst_106 = arith.constant 1.000000e+00 : f32
    %540 = vector.broadcast %cst_106 : f32 to vector<8x32xf32>
    %541 = arith.addf %540, %539 : vector<8x32xf32>
    %542 = arith.divf %540, %541 : vector<8x32xf32>
    %543 = vector.extract_strided_slice %525 {offsets = [0, 64], sizes = [8, 32], strides = [1, 1]} : vector<8x96xf32> to vector<8x32xf32>
    %544 = vector.extract_strided_slice %526 {offsets = [0, 64], sizes = [8, 32], strides = [1, 1]} : vector<8x96xf32> to vector<8x32xf32>
    %545 = vector.broadcast %13 : vector<1x32xf32> to vector<8x32xf32>
    %546 = arith.addf %544, %545 : vector<8x32xf32>
    %547 = arith.mulf %534, %546 : vector<8x32xf32>
    %548 = arith.addf %543, %547 : vector<8x32xf32>
    %549 = math.tanh %548 : vector<8x32xf32>
    %cst_107 = arith.constant 1.000000e+00 : f32
    %550 = vector.broadcast %cst_107 : f32 to vector<8x32xf32>
    %551 = arith.subf %550, %542 : vector<8x32xf32>
    %552 = arith.mulf %551, %549 : vector<8x32xf32>
    %553 = arith.mulf %542, %520 : vector<8x32xf32>
    %554 = arith.addf %552, %553 : vector<8x32xf32>
    %c15 = arith.constant 15 : index
    %c0_108 = arith.constant 0 : index
    %c0_109 = arith.constant 0 : index
    %555 = vector.load %arg6[%c15, %c0_108, %c0_109] : memref<16x8x32xf32, #tpu.memory_space<vmem>>, vector<1x8x32xf32>
    %556 = vector.shape_cast %555 : vector<1x8x32xf32> to vector<8x32xf32>
    %557 = vector.shape_cast %554 : vector<8x32xf32> to vector<1x8x32xf32>
    tpu.vector_store %arg6[%c15, %c0_108, %c0_109], %557 {strides = array<i32>} : memref<16x8x32xf32, #tpu.memory_space<vmem>>, vector<1x8x32xf32>,
    %c0_110 = arith.constant 0 : index
    %c0_111 = arith.constant 0 : index
    %558 = vector.load %arg7[%c0_110, %c0_111] : memref<8x32xf32, #tpu.memory_space<vmem>>, vector<8x32xf32>
    tpu.vector_store %arg7[%c0_110, %c0_111], %554 {strides = array<i32>} : memref<8x32xf32, #tpu.memory_space<vmem>>, vector<8x32xf32>,
    return
  }
  func.func @transform_0(%arg0: i32) -> (i32, i32, i32) {
    %c0_i32 = arith.constant 0 : i32
    %c0_i32_0 = arith.constant 0 : i32
    %c0_i32_1 = arith.constant 0 : i32
    return %arg0, %c0_i32, %c0_i32_0 : i32, i32, i32
  }
  func.func @transform_1(%arg0: i32) -> (i32, i32) {
    %c0_i32 = arith.constant 0 : i32
    %c0_i32_0 = arith.constant 0 : i32
    %c0_i32_1 = arith.constant 0 : i32
    return %c0_i32, %c0_i32_0 : i32, i32
  }
  func.func @transform_2(%arg0: i32) -> (i32, i32) {
    %c0_i32 = arith.constant 0 : i32
    %c0_i32_0 = arith.constant 0 : i32
    %c0_i32_1 = arith.constant 0 : i32
    return %c0_i32, %c0_i32_0 : i32, i32
  }
  func.func @transform_3(%arg0: i32) -> (i32, i32) {
    %c0_i32 = arith.constant 0 : i32
    %c0_i32_0 = arith.constant 0 : i32
    %c0_i32_1 = arith.constant 0 : i32
    return %c0_i32, %c0_i32_0 : i32, i32
  }
  func.func @transform_4(%arg0: i32) -> (i32, i32) {
    %c0_i32 = arith.constant 0 : i32
    %c0_i32_0 = arith.constant 0 : i32
    %c0_i32_1 = arith.constant 0 : i32
    return %c0_i32, %c0_i32_0 : i32, i32
  }
  func.func @transform_5(%arg0: i32) -> (i32, i32, i32) {
    %c0_i32 = arith.constant 0 : i32
    %c0_i32_0 = arith.constant 0 : i32
    %c0_i32_1 = arith.constant 0 : i32
    return %arg0, %c0_i32, %c0_i32_0 : i32, i32, i32
  }
}

module attributes {stable_mosaic.version = 11 : i64} {
  func.func @gru_last_layer_head_kernel(%arg0: i32, %arg1: memref<16x8x32xf32, #tpu.memory_space<vmem>>, %arg2: memref<32x96xf32, #tpu.memory_space<vmem>>, %arg3: memref<1x96xf32, #tpu.memory_space<vmem>>, %arg4: memref<32x96xf32, #tpu.memory_space<vmem>>, %arg5: memref<1x32xf32, #tpu.memory_space<vmem>>, %arg6: memref<32x5xf32, #tpu.memory_space<vmem>>, %arg7: memref<1x5xf32, #tpu.memory_space<vmem>>, %arg8: memref<5x1xf32, #tpu.memory_space<vmem>>, %arg9: memref<1x1xf32, #tpu.memory_space<vmem>>, %arg10: memref<8x1xf32, #tpu.memory_space<vmem>>, %arg11: memref<8x32xf32, #tpu.memory_space<vmem>>) attributes {dimension_semantics = [#tpu.dimension_semantics<arbitrary>], iteration_bounds = array<i64: 2>, scalar_prefetch = 0 : i64, scratch_operands = 1 : i64, tpu.core_type = #tpu.core_type<tc>, window_params = [{transform_indices = @transform_0, window_bounds = array<i64: 16, 8, 32>}, {pipeline_mode = #tpu.pipeline_mode<synchronous>, transform_indices = @transform_1, window_bounds = array<i64: 32, 96>}, {pipeline_mode = #tpu.pipeline_mode<synchronous>, transform_indices = @transform_2, window_bounds = array<i64: 1, 96>}, {pipeline_mode = #tpu.pipeline_mode<synchronous>, transform_indices = @transform_3, window_bounds = array<i64: 32, 96>}, {pipeline_mode = #tpu.pipeline_mode<synchronous>, transform_indices = @transform_4, window_bounds = array<i64: 1, 32>}, {pipeline_mode = #tpu.pipeline_mode<synchronous>, transform_indices = @transform_5, window_bounds = array<i64: 32, 5>}, {pipeline_mode = #tpu.pipeline_mode<synchronous>, transform_indices = @transform_6, window_bounds = array<i64: 1, 5>}, {pipeline_mode = #tpu.pipeline_mode<synchronous>, transform_indices = @transform_7, window_bounds = array<i64: 5, 1>}, {pipeline_mode = #tpu.pipeline_mode<synchronous>, transform_indices = @transform_8, window_bounds = array<i64: 1, 1>}, {pipeline_mode = #tpu.pipeline_mode<synchronous>, transform_indices = @transform_9, window_bounds = array<i64: 8, 1>}]} {
    %c0_i32 = arith.constant 0 : i32
    %0 = arith.cmpi eq, %arg0, %c0_i32 : i32
    %1 = arith.extui %0 : i1 to i32
    %c0_i32_0 = arith.constant 0 : i32
    %2 = arith.cmpi ne, %1, %c0_i32_0 : i32
    scf.if %2 {
      %cst_80 = arith.constant 0.000000e+00 : f32
      %514 = vector.broadcast %cst_80 : f32 to vector<8x32xf32>
      %c0_81 = arith.constant 0 : index
      %c0_82 = arith.constant 0 : index
      %515 = vector.load %arg11[%c0_81, %c0_82] : memref<8x32xf32, #tpu.memory_space<vmem>>, vector<8x32xf32>
      tpu.vector_store %arg11[%c0_81, %c0_82], %514 {strides = array<i32>} : memref<8x32xf32, #tpu.memory_space<vmem>>, vector<8x32xf32>,
    } else {
    }
    %c0 = arith.constant 0 : index
    %c0_1 = arith.constant 0 : index
    %3 = vector.load %arg11[%c0, %c0_1] : memref<8x32xf32, #tpu.memory_space<vmem>>, vector<8x32xf32>
    %c0_2 = arith.constant 0 : index
    %c0_3 = arith.constant 0 : index
    %c0_4 = arith.constant 0 : index
    %4 = vector.load %arg1[%c0_2, %c0_3, %c0_4] : memref<16x8x32xf32, #tpu.memory_space<vmem>>, vector<16x8x32xf32>
    %5 = vector.shape_cast %4 : vector<16x8x32xf32> to vector<128x32xf32>
    %c0_5 = arith.constant 0 : index
    %c0_6 = arith.constant 0 : index
    %6 = vector.load %arg2[%c0_5, %c0_6] : memref<32x96xf32, #tpu.memory_space<vmem>>, vector<32x96xf32>
    %cst = arith.constant dense<0.000000e+00> : vector<128x96xf32>
    %7 = tpu.matmul %5, %6, %cst {dimension_numbers = #tpu.dot_dimension_numbers<[1], [0], [0], [1], [0, 0, 1, 1], [], []>} : vector<128x32xf32>, vector<32x96xf32>, vector<128x96xf32> -> vector<128x96xf32>
    %c0_7 = arith.constant 0 : index
    %c0_8 = arith.constant 0 : index
    %8 = vector.load %arg3[%c0_7, %c0_8] : memref<1x96xf32, #tpu.memory_space<vmem>>, vector<1x96xf32>
    %9 = vector.broadcast %8 : vector<1x96xf32> to vector<128x96xf32>
    %10 = arith.addf %7, %9 : vector<128x96xf32>
    %11 = vector.shape_cast %10 : vector<128x96xf32> to vector<16x8x96xf32>
    %c0_9 = arith.constant 0 : index
    %c0_10 = arith.constant 0 : index
    %12 = vector.load %arg4[%c0_9, %c0_10] : memref<32x96xf32, #tpu.memory_space<vmem>>, vector<32x96xf32>
    %c0_11 = arith.constant 0 : index
    %c0_12 = arith.constant 0 : index
    %13 = vector.load %arg5[%c0_11, %c0_12] : memref<1x32xf32, #tpu.memory_space<vmem>>, vector<1x32xf32>
    %14 = vector.extract_strided_slice %11 {offsets = [0, 0, 0], sizes = [1, 8, 96], strides = [1, 1, 1]} : vector<16x8x96xf32> to vector<1x8x96xf32>
    %15 = vector.shape_cast %14 : vector<1x8x96xf32> to vector<8x96xf32>
    %cst_13 = arith.constant dense<0.000000e+00> : vector<8x96xf32>
    %16 = tpu.matmul %3, %12, %cst_13 {dimension_numbers = #tpu.dot_dimension_numbers<[1], [0], [0], [1], [0, 0, 1, 1], [], []>} : vector<8x32xf32>, vector<32x96xf32>, vector<8x96xf32> -> vector<8x96xf32>
    %17 = vector.extract_strided_slice %15 {offsets = [0, 0], sizes = [8, 32], strides = [1, 1]} : vector<8x96xf32> to vector<8x32xf32>
    %18 = vector.extract_strided_slice %16 {offsets = [0, 0], sizes = [8, 32], strides = [1, 1]} : vector<8x96xf32> to vector<8x32xf32>
    %19 = arith.addf %17, %18 : vector<8x32xf32>
    %20 = arith.negf %19 : vector<8x32xf32>
    %21 = math.exp %20 : vector<8x32xf32>
    %cst_14 = arith.constant 1.000000e+00 : f32
    %22 = vector.broadcast %cst_14 : f32 to vector<8x32xf32>
    %23 = arith.addf %22, %21 : vector<8x32xf32>
    %24 = arith.divf %22, %23 : vector<8x32xf32>
    %25 = vector.extract_strided_slice %15 {offsets = [0, 32], sizes = [8, 32], strides = [1, 1]} : vector<8x96xf32> to vector<8x32xf32>
    %26 = vector.extract_strided_slice %16 {offsets = [0, 32], sizes = [8, 32], strides = [1, 1]} : vector<8x96xf32> to vector<8x32xf32>
    %27 = arith.addf %25, %26 : vector<8x32xf32>
    %28 = arith.negf %27 : vector<8x32xf32>
    %29 = math.exp %28 : vector<8x32xf32>
    %cst_15 = arith.constant 1.000000e+00 : f32
    %30 = vector.broadcast %cst_15 : f32 to vector<8x32xf32>
    %31 = arith.addf %30, %29 : vector<8x32xf32>
    %32 = arith.divf %30, %31 : vector<8x32xf32>
    %33 = vector.extract_strided_slice %15 {offsets = [0, 64], sizes = [8, 32], strides = [1, 1]} : vector<8x96xf32> to vector<8x32xf32>
    %34 = vector.extract_strided_slice %16 {offsets = [0, 64], sizes = [8, 32], strides = [1, 1]} : vector<8x96xf32> to vector<8x32xf32>
    %35 = vector.broadcast %13 : vector<1x32xf32> to vector<8x32xf32>
    %36 = arith.addf %34, %35 : vector<8x32xf32>
    %37 = arith.mulf %24, %36 : vector<8x32xf32>
    %38 = arith.addf %33, %37 : vector<8x32xf32>
    %39 = math.tanh %38 : vector<8x32xf32>
    %cst_16 = arith.constant 1.000000e+00 : f32
    %40 = vector.broadcast %cst_16 : f32 to vector<8x32xf32>
    %41 = arith.subf %40, %32 : vector<8x32xf32>
    %42 = arith.mulf %41, %39 : vector<8x32xf32>
    %43 = arith.mulf %32, %3 : vector<8x32xf32>
    %44 = arith.addf %42, %43 : vector<8x32xf32>
    %45 = vector.extract_strided_slice %11 {offsets = [1, 0, 0], sizes = [1, 8, 96], strides = [1, 1, 1]} : vector<16x8x96xf32> to vector<1x8x96xf32>
    %46 = vector.shape_cast %45 : vector<1x8x96xf32> to vector<8x96xf32>
    %cst_17 = arith.constant dense<0.000000e+00> : vector<8x96xf32>
    %47 = tpu.matmul %44, %12, %cst_17 {dimension_numbers = #tpu.dot_dimension_numbers<[1], [0], [0], [1], [0, 0, 1, 1], [], []>} : vector<8x32xf32>, vector<32x96xf32>, vector<8x96xf32> -> vector<8x96xf32>
    %48 = vector.extract_strided_slice %46 {offsets = [0, 0], sizes = [8, 32], strides = [1, 1]} : vector<8x96xf32> to vector<8x32xf32>
    %49 = vector.extract_strided_slice %47 {offsets = [0, 0], sizes = [8, 32], strides = [1, 1]} : vector<8x96xf32> to vector<8x32xf32>
    %50 = arith.addf %48, %49 : vector<8x32xf32>
    %51 = arith.negf %50 : vector<8x32xf32>
    %52 = math.exp %51 : vector<8x32xf32>
    %cst_18 = arith.constant 1.000000e+00 : f32
    %53 = vector.broadcast %cst_18 : f32 to vector<8x32xf32>
    %54 = arith.addf %53, %52 : vector<8x32xf32>
    %55 = arith.divf %53, %54 : vector<8x32xf32>
    %56 = vector.extract_strided_slice %46 {offsets = [0, 32], sizes = [8, 32], strides = [1, 1]} : vector<8x96xf32> to vector<8x32xf32>
    %57 = vector.extract_strided_slice %47 {offsets = [0, 32], sizes = [8, 32], strides = [1, 1]} : vector<8x96xf32> to vector<8x32xf32>
    %58 = arith.addf %56, %57 : vector<8x32xf32>
    %59 = arith.negf %58 : vector<8x32xf32>
    %60 = math.exp %59 : vector<8x32xf32>
    %cst_19 = arith.constant 1.000000e+00 : f32
    %61 = vector.broadcast %cst_19 : f32 to vector<8x32xf32>
    %62 = arith.addf %61, %60 : vector<8x32xf32>
    %63 = arith.divf %61, %62 : vector<8x32xf32>
    %64 = vector.extract_strided_slice %46 {offsets = [0, 64], sizes = [8, 32], strides = [1, 1]} : vector<8x96xf32> to vector<8x32xf32>
    %65 = vector.extract_strided_slice %47 {offsets = [0, 64], sizes = [8, 32], strides = [1, 1]} : vector<8x96xf32> to vector<8x32xf32>
    %66 = vector.broadcast %13 : vector<1x32xf32> to vector<8x32xf32>
    %67 = arith.addf %65, %66 : vector<8x32xf32>
    %68 = arith.mulf %55, %67 : vector<8x32xf32>
    %69 = arith.addf %64, %68 : vector<8x32xf32>
    %70 = math.tanh %69 : vector<8x32xf32>
    %cst_20 = arith.constant 1.000000e+00 : f32
    %71 = vector.broadcast %cst_20 : f32 to vector<8x32xf32>
    %72 = arith.subf %71, %63 : vector<8x32xf32>
    %73 = arith.mulf %72, %70 : vector<8x32xf32>
    %74 = arith.mulf %63, %44 : vector<8x32xf32>
    %75 = arith.addf %73, %74 : vector<8x32xf32>
    %76 = vector.extract_strided_slice %11 {offsets = [2, 0, 0], sizes = [1, 8, 96], strides = [1, 1, 1]} : vector<16x8x96xf32> to vector<1x8x96xf32>
    %77 = vector.shape_cast %76 : vector<1x8x96xf32> to vector<8x96xf32>
    %cst_21 = arith.constant dense<0.000000e+00> : vector<8x96xf32>
    %78 = tpu.matmul %75, %12, %cst_21 {dimension_numbers = #tpu.dot_dimension_numbers<[1], [0], [0], [1], [0, 0, 1, 1], [], []>} : vector<8x32xf32>, vector<32x96xf32>, vector<8x96xf32> -> vector<8x96xf32>
    %79 = vector.extract_strided_slice %77 {offsets = [0, 0], sizes = [8, 32], strides = [1, 1]} : vector<8x96xf32> to vector<8x32xf32>
    %80 = vector.extract_strided_slice %78 {offsets = [0, 0], sizes = [8, 32], strides = [1, 1]} : vector<8x96xf32> to vector<8x32xf32>
    %81 = arith.addf %79, %80 : vector<8x32xf32>
    %82 = arith.negf %81 : vector<8x32xf32>
    %83 = math.exp %82 : vector<8x32xf32>
    %cst_22 = arith.constant 1.000000e+00 : f32
    %84 = vector.broadcast %cst_22 : f32 to vector<8x32xf32>
    %85 = arith.addf %84, %83 : vector<8x32xf32>
    %86 = arith.divf %84, %85 : vector<8x32xf32>
    %87 = vector.extract_strided_slice %77 {offsets = [0, 32], sizes = [8, 32], strides = [1, 1]} : vector<8x96xf32> to vector<8x32xf32>
    %88 = vector.extract_strided_slice %78 {offsets = [0, 32], sizes = [8, 32], strides = [1, 1]} : vector<8x96xf32> to vector<8x32xf32>
    %89 = arith.addf %87, %88 : vector<8x32xf32>
    %90 = arith.negf %89 : vector<8x32xf32>
    %91 = math.exp %90 : vector<8x32xf32>
    %cst_23 = arith.constant 1.000000e+00 : f32
    %92 = vector.broadcast %cst_23 : f32 to vector<8x32xf32>
    %93 = arith.addf %92, %91 : vector<8x32xf32>
    %94 = arith.divf %92, %93 : vector<8x32xf32>
    %95 = vector.extract_strided_slice %77 {offsets = [0, 64], sizes = [8, 32], strides = [1, 1]} : vector<8x96xf32> to vector<8x32xf32>
    %96 = vector.extract_strided_slice %78 {offsets = [0, 64], sizes = [8, 32], strides = [1, 1]} : vector<8x96xf32> to vector<8x32xf32>
    %97 = vector.broadcast %13 : vector<1x32xf32> to vector<8x32xf32>
    %98 = arith.addf %96, %97 : vector<8x32xf32>
    %99 = arith.mulf %86, %98 : vector<8x32xf32>
    %100 = arith.addf %95, %99 : vector<8x32xf32>
    %101 = math.tanh %100 : vector<8x32xf32>
    %cst_24 = arith.constant 1.000000e+00 : f32
    %102 = vector.broadcast %cst_24 : f32 to vector<8x32xf32>
    %103 = arith.subf %102, %94 : vector<8x32xf32>
    %104 = arith.mulf %103, %101 : vector<8x32xf32>
    %105 = arith.mulf %94, %75 : vector<8x32xf32>
    %106 = arith.addf %104, %105 : vector<8x32xf32>
    %107 = vector.extract_strided_slice %11 {offsets = [3, 0, 0], sizes = [1, 8, 96], strides = [1, 1, 1]} : vector<16x8x96xf32> to vector<1x8x96xf32>
    %108 = vector.shape_cast %107 : vector<1x8x96xf32> to vector<8x96xf32>
    %cst_25 = arith.constant dense<0.000000e+00> : vector<8x96xf32>
    %109 = tpu.matmul %106, %12, %cst_25 {dimension_numbers = #tpu.dot_dimension_numbers<[1], [0], [0], [1], [0, 0, 1, 1], [], []>} : vector<8x32xf32>, vector<32x96xf32>, vector<8x96xf32> -> vector<8x96xf32>
    %110 = vector.extract_strided_slice %108 {offsets = [0, 0], sizes = [8, 32], strides = [1, 1]} : vector<8x96xf32> to vector<8x32xf32>
    %111 = vector.extract_strided_slice %109 {offsets = [0, 0], sizes = [8, 32], strides = [1, 1]} : vector<8x96xf32> to vector<8x32xf32>
    %112 = arith.addf %110, %111 : vector<8x32xf32>
    %113 = arith.negf %112 : vector<8x32xf32>
    %114 = math.exp %113 : vector<8x32xf32>
    %cst_26 = arith.constant 1.000000e+00 : f32
    %115 = vector.broadcast %cst_26 : f32 to vector<8x32xf32>
    %116 = arith.addf %115, %114 : vector<8x32xf32>
    %117 = arith.divf %115, %116 : vector<8x32xf32>
    %118 = vector.extract_strided_slice %108 {offsets = [0, 32], sizes = [8, 32], strides = [1, 1]} : vector<8x96xf32> to vector<8x32xf32>
    %119 = vector.extract_strided_slice %109 {offsets = [0, 32], sizes = [8, 32], strides = [1, 1]} : vector<8x96xf32> to vector<8x32xf32>
    %120 = arith.addf %118, %119 : vector<8x32xf32>
    %121 = arith.negf %120 : vector<8x32xf32>
    %122 = math.exp %121 : vector<8x32xf32>
    %cst_27 = arith.constant 1.000000e+00 : f32
    %123 = vector.broadcast %cst_27 : f32 to vector<8x32xf32>
    %124 = arith.addf %123, %122 : vector<8x32xf32>
    %125 = arith.divf %123, %124 : vector<8x32xf32>
    %126 = vector.extract_strided_slice %108 {offsets = [0, 64], sizes = [8, 32], strides = [1, 1]} : vector<8x96xf32> to vector<8x32xf32>
    %127 = vector.extract_strided_slice %109 {offsets = [0, 64], sizes = [8, 32], strides = [1, 1]} : vector<8x96xf32> to vector<8x32xf32>
    %128 = vector.broadcast %13 : vector<1x32xf32> to vector<8x32xf32>
    %129 = arith.addf %127, %128 : vector<8x32xf32>
    %130 = arith.mulf %117, %129 : vector<8x32xf32>
    %131 = arith.addf %126, %130 : vector<8x32xf32>
    %132 = math.tanh %131 : vector<8x32xf32>
    %cst_28 = arith.constant 1.000000e+00 : f32
    %133 = vector.broadcast %cst_28 : f32 to vector<8x32xf32>
    %134 = arith.subf %133, %125 : vector<8x32xf32>
    %135 = arith.mulf %134, %132 : vector<8x32xf32>
    %136 = arith.mulf %125, %106 : vector<8x32xf32>
    %137 = arith.addf %135, %136 : vector<8x32xf32>
    %138 = vector.extract_strided_slice %11 {offsets = [4, 0, 0], sizes = [1, 8, 96], strides = [1, 1, 1]} : vector<16x8x96xf32> to vector<1x8x96xf32>
    %139 = vector.shape_cast %138 : vector<1x8x96xf32> to vector<8x96xf32>
    %cst_29 = arith.constant dense<0.000000e+00> : vector<8x96xf32>
    %140 = tpu.matmul %137, %12, %cst_29 {dimension_numbers = #tpu.dot_dimension_numbers<[1], [0], [0], [1], [0, 0, 1, 1], [], []>} : vector<8x32xf32>, vector<32x96xf32>, vector<8x96xf32> -> vector<8x96xf32>
    %141 = vector.extract_strided_slice %139 {offsets = [0, 0], sizes = [8, 32], strides = [1, 1]} : vector<8x96xf32> to vector<8x32xf32>
    %142 = vector.extract_strided_slice %140 {offsets = [0, 0], sizes = [8, 32], strides = [1, 1]} : vector<8x96xf32> to vector<8x32xf32>
    %143 = arith.addf %141, %142 : vector<8x32xf32>
    %144 = arith.negf %143 : vector<8x32xf32>
    %145 = math.exp %144 : vector<8x32xf32>
    %cst_30 = arith.constant 1.000000e+00 : f32
    %146 = vector.broadcast %cst_30 : f32 to vector<8x32xf32>
    %147 = arith.addf %146, %145 : vector<8x32xf32>
    %148 = arith.divf %146, %147 : vector<8x32xf32>
    %149 = vector.extract_strided_slice %139 {offsets = [0, 32], sizes = [8, 32], strides = [1, 1]} : vector<8x96xf32> to vector<8x32xf32>
    %150 = vector.extract_strided_slice %140 {offsets = [0, 32], sizes = [8, 32], strides = [1, 1]} : vector<8x96xf32> to vector<8x32xf32>
    %151 = arith.addf %149, %150 : vector<8x32xf32>
    %152 = arith.negf %151 : vector<8x32xf32>
    %153 = math.exp %152 : vector<8x32xf32>
    %cst_31 = arith.constant 1.000000e+00 : f32
    %154 = vector.broadcast %cst_31 : f32 to vector<8x32xf32>
    %155 = arith.addf %154, %153 : vector<8x32xf32>
    %156 = arith.divf %154, %155 : vector<8x32xf32>
    %157 = vector.extract_strided_slice %139 {offsets = [0, 64], sizes = [8, 32], strides = [1, 1]} : vector<8x96xf32> to vector<8x32xf32>
    %158 = vector.extract_strided_slice %140 {offsets = [0, 64], sizes = [8, 32], strides = [1, 1]} : vector<8x96xf32> to vector<8x32xf32>
    %159 = vector.broadcast %13 : vector<1x32xf32> to vector<8x32xf32>
    %160 = arith.addf %158, %159 : vector<8x32xf32>
    %161 = arith.mulf %148, %160 : vector<8x32xf32>
    %162 = arith.addf %157, %161 : vector<8x32xf32>
    %163 = math.tanh %162 : vector<8x32xf32>
    %cst_32 = arith.constant 1.000000e+00 : f32
    %164 = vector.broadcast %cst_32 : f32 to vector<8x32xf32>
    %165 = arith.subf %164, %156 : vector<8x32xf32>
    %166 = arith.mulf %165, %163 : vector<8x32xf32>
    %167 = arith.mulf %156, %137 : vector<8x32xf32>
    %168 = arith.addf %166, %167 : vector<8x32xf32>
    %169 = vector.extract_strided_slice %11 {offsets = [5, 0, 0], sizes = [1, 8, 96], strides = [1, 1, 1]} : vector<16x8x96xf32> to vector<1x8x96xf32>
    %170 = vector.shape_cast %169 : vector<1x8x96xf32> to vector<8x96xf32>
    %cst_33 = arith.constant dense<0.000000e+00> : vector<8x96xf32>
    %171 = tpu.matmul %168, %12, %cst_33 {dimension_numbers = #tpu.dot_dimension_numbers<[1], [0], [0], [1], [0, 0, 1, 1], [], []>} : vector<8x32xf32>, vector<32x96xf32>, vector<8x96xf32> -> vector<8x96xf32>
    %172 = vector.extract_strided_slice %170 {offsets = [0, 0], sizes = [8, 32], strides = [1, 1]} : vector<8x96xf32> to vector<8x32xf32>
    %173 = vector.extract_strided_slice %171 {offsets = [0, 0], sizes = [8, 32], strides = [1, 1]} : vector<8x96xf32> to vector<8x32xf32>
    %174 = arith.addf %172, %173 : vector<8x32xf32>
    %175 = arith.negf %174 : vector<8x32xf32>
    %176 = math.exp %175 : vector<8x32xf32>
    %cst_34 = arith.constant 1.000000e+00 : f32
    %177 = vector.broadcast %cst_34 : f32 to vector<8x32xf32>
    %178 = arith.addf %177, %176 : vector<8x32xf32>
    %179 = arith.divf %177, %178 : vector<8x32xf32>
    %180 = vector.extract_strided_slice %170 {offsets = [0, 32], sizes = [8, 32], strides = [1, 1]} : vector<8x96xf32> to vector<8x32xf32>
    %181 = vector.extract_strided_slice %171 {offsets = [0, 32], sizes = [8, 32], strides = [1, 1]} : vector<8x96xf32> to vector<8x32xf32>
    %182 = arith.addf %180, %181 : vector<8x32xf32>
    %183 = arith.negf %182 : vector<8x32xf32>
    %184 = math.exp %183 : vector<8x32xf32>
    %cst_35 = arith.constant 1.000000e+00 : f32
    %185 = vector.broadcast %cst_35 : f32 to vector<8x32xf32>
    %186 = arith.addf %185, %184 : vector<8x32xf32>
    %187 = arith.divf %185, %186 : vector<8x32xf32>
    %188 = vector.extract_strided_slice %170 {offsets = [0, 64], sizes = [8, 32], strides = [1, 1]} : vector<8x96xf32> to vector<8x32xf32>
    %189 = vector.extract_strided_slice %171 {offsets = [0, 64], sizes = [8, 32], strides = [1, 1]} : vector<8x96xf32> to vector<8x32xf32>
    %190 = vector.broadcast %13 : vector<1x32xf32> to vector<8x32xf32>
    %191 = arith.addf %189, %190 : vector<8x32xf32>
    %192 = arith.mulf %179, %191 : vector<8x32xf32>
    %193 = arith.addf %188, %192 : vector<8x32xf32>
    %194 = math.tanh %193 : vector<8x32xf32>
    %cst_36 = arith.constant 1.000000e+00 : f32
    %195 = vector.broadcast %cst_36 : f32 to vector<8x32xf32>
    %196 = arith.subf %195, %187 : vector<8x32xf32>
    %197 = arith.mulf %196, %194 : vector<8x32xf32>
    %198 = arith.mulf %187, %168 : vector<8x32xf32>
    %199 = arith.addf %197, %198 : vector<8x32xf32>
    %200 = vector.extract_strided_slice %11 {offsets = [6, 0, 0], sizes = [1, 8, 96], strides = [1, 1, 1]} : vector<16x8x96xf32> to vector<1x8x96xf32>
    %201 = vector.shape_cast %200 : vector<1x8x96xf32> to vector<8x96xf32>
    %cst_37 = arith.constant dense<0.000000e+00> : vector<8x96xf32>
    %202 = tpu.matmul %199, %12, %cst_37 {dimension_numbers = #tpu.dot_dimension_numbers<[1], [0], [0], [1], [0, 0, 1, 1], [], []>} : vector<8x32xf32>, vector<32x96xf32>, vector<8x96xf32> -> vector<8x96xf32>
    %203 = vector.extract_strided_slice %201 {offsets = [0, 0], sizes = [8, 32], strides = [1, 1]} : vector<8x96xf32> to vector<8x32xf32>
    %204 = vector.extract_strided_slice %202 {offsets = [0, 0], sizes = [8, 32], strides = [1, 1]} : vector<8x96xf32> to vector<8x32xf32>
    %205 = arith.addf %203, %204 : vector<8x32xf32>
    %206 = arith.negf %205 : vector<8x32xf32>
    %207 = math.exp %206 : vector<8x32xf32>
    %cst_38 = arith.constant 1.000000e+00 : f32
    %208 = vector.broadcast %cst_38 : f32 to vector<8x32xf32>
    %209 = arith.addf %208, %207 : vector<8x32xf32>
    %210 = arith.divf %208, %209 : vector<8x32xf32>
    %211 = vector.extract_strided_slice %201 {offsets = [0, 32], sizes = [8, 32], strides = [1, 1]} : vector<8x96xf32> to vector<8x32xf32>
    %212 = vector.extract_strided_slice %202 {offsets = [0, 32], sizes = [8, 32], strides = [1, 1]} : vector<8x96xf32> to vector<8x32xf32>
    %213 = arith.addf %211, %212 : vector<8x32xf32>
    %214 = arith.negf %213 : vector<8x32xf32>
    %215 = math.exp %214 : vector<8x32xf32>
    %cst_39 = arith.constant 1.000000e+00 : f32
    %216 = vector.broadcast %cst_39 : f32 to vector<8x32xf32>
    %217 = arith.addf %216, %215 : vector<8x32xf32>
    %218 = arith.divf %216, %217 : vector<8x32xf32>
    %219 = vector.extract_strided_slice %201 {offsets = [0, 64], sizes = [8, 32], strides = [1, 1]} : vector<8x96xf32> to vector<8x32xf32>
    %220 = vector.extract_strided_slice %202 {offsets = [0, 64], sizes = [8, 32], strides = [1, 1]} : vector<8x96xf32> to vector<8x32xf32>
    %221 = vector.broadcast %13 : vector<1x32xf32> to vector<8x32xf32>
    %222 = arith.addf %220, %221 : vector<8x32xf32>
    %223 = arith.mulf %210, %222 : vector<8x32xf32>
    %224 = arith.addf %219, %223 : vector<8x32xf32>
    %225 = math.tanh %224 : vector<8x32xf32>
    %cst_40 = arith.constant 1.000000e+00 : f32
    %226 = vector.broadcast %cst_40 : f32 to vector<8x32xf32>
    %227 = arith.subf %226, %218 : vector<8x32xf32>
    %228 = arith.mulf %227, %225 : vector<8x32xf32>
    %229 = arith.mulf %218, %199 : vector<8x32xf32>
    %230 = arith.addf %228, %229 : vector<8x32xf32>
    %231 = vector.extract_strided_slice %11 {offsets = [7, 0, 0], sizes = [1, 8, 96], strides = [1, 1, 1]} : vector<16x8x96xf32> to vector<1x8x96xf32>
    %232 = vector.shape_cast %231 : vector<1x8x96xf32> to vector<8x96xf32>
    %cst_41 = arith.constant dense<0.000000e+00> : vector<8x96xf32>
    %233 = tpu.matmul %230, %12, %cst_41 {dimension_numbers = #tpu.dot_dimension_numbers<[1], [0], [0], [1], [0, 0, 1, 1], [], []>} : vector<8x32xf32>, vector<32x96xf32>, vector<8x96xf32> -> vector<8x96xf32>
    %234 = vector.extract_strided_slice %232 {offsets = [0, 0], sizes = [8, 32], strides = [1, 1]} : vector<8x96xf32> to vector<8x32xf32>
    %235 = vector.extract_strided_slice %233 {offsets = [0, 0], sizes = [8, 32], strides = [1, 1]} : vector<8x96xf32> to vector<8x32xf32>
    %236 = arith.addf %234, %235 : vector<8x32xf32>
    %237 = arith.negf %236 : vector<8x32xf32>
    %238 = math.exp %237 : vector<8x32xf32>
    %cst_42 = arith.constant 1.000000e+00 : f32
    %239 = vector.broadcast %cst_42 : f32 to vector<8x32xf32>
    %240 = arith.addf %239, %238 : vector<8x32xf32>
    %241 = arith.divf %239, %240 : vector<8x32xf32>
    %242 = vector.extract_strided_slice %232 {offsets = [0, 32], sizes = [8, 32], strides = [1, 1]} : vector<8x96xf32> to vector<8x32xf32>
    %243 = vector.extract_strided_slice %233 {offsets = [0, 32], sizes = [8, 32], strides = [1, 1]} : vector<8x96xf32> to vector<8x32xf32>
    %244 = arith.addf %242, %243 : vector<8x32xf32>
    %245 = arith.negf %244 : vector<8x32xf32>
    %246 = math.exp %245 : vector<8x32xf32>
    %cst_43 = arith.constant 1.000000e+00 : f32
    %247 = vector.broadcast %cst_43 : f32 to vector<8x32xf32>
    %248 = arith.addf %247, %246 : vector<8x32xf32>
    %249 = arith.divf %247, %248 : vector<8x32xf32>
    %250 = vector.extract_strided_slice %232 {offsets = [0, 64], sizes = [8, 32], strides = [1, 1]} : vector<8x96xf32> to vector<8x32xf32>
    %251 = vector.extract_strided_slice %233 {offsets = [0, 64], sizes = [8, 32], strides = [1, 1]} : vector<8x96xf32> to vector<8x32xf32>
    %252 = vector.broadcast %13 : vector<1x32xf32> to vector<8x32xf32>
    %253 = arith.addf %251, %252 : vector<8x32xf32>
    %254 = arith.mulf %241, %253 : vector<8x32xf32>
    %255 = arith.addf %250, %254 : vector<8x32xf32>
    %256 = math.tanh %255 : vector<8x32xf32>
    %cst_44 = arith.constant 1.000000e+00 : f32
    %257 = vector.broadcast %cst_44 : f32 to vector<8x32xf32>
    %258 = arith.subf %257, %249 : vector<8x32xf32>
    %259 = arith.mulf %258, %256 : vector<8x32xf32>
    %260 = arith.mulf %249, %230 : vector<8x32xf32>
    %261 = arith.addf %259, %260 : vector<8x32xf32>
    %262 = vector.extract_strided_slice %11 {offsets = [8, 0, 0], sizes = [1, 8, 96], strides = [1, 1, 1]} : vector<16x8x96xf32> to vector<1x8x96xf32>
    %263 = vector.shape_cast %262 : vector<1x8x96xf32> to vector<8x96xf32>
    %cst_45 = arith.constant dense<0.000000e+00> : vector<8x96xf32>
    %264 = tpu.matmul %261, %12, %cst_45 {dimension_numbers = #tpu.dot_dimension_numbers<[1], [0], [0], [1], [0, 0, 1, 1], [], []>} : vector<8x32xf32>, vector<32x96xf32>, vector<8x96xf32> -> vector<8x96xf32>
    %265 = vector.extract_strided_slice %263 {offsets = [0, 0], sizes = [8, 32], strides = [1, 1]} : vector<8x96xf32> to vector<8x32xf32>
    %266 = vector.extract_strided_slice %264 {offsets = [0, 0], sizes = [8, 32], strides = [1, 1]} : vector<8x96xf32> to vector<8x32xf32>
    %267 = arith.addf %265, %266 : vector<8x32xf32>
    %268 = arith.negf %267 : vector<8x32xf32>
    %269 = math.exp %268 : vector<8x32xf32>
    %cst_46 = arith.constant 1.000000e+00 : f32
    %270 = vector.broadcast %cst_46 : f32 to vector<8x32xf32>
    %271 = arith.addf %270, %269 : vector<8x32xf32>
    %272 = arith.divf %270, %271 : vector<8x32xf32>
    %273 = vector.extract_strided_slice %263 {offsets = [0, 32], sizes = [8, 32], strides = [1, 1]} : vector<8x96xf32> to vector<8x32xf32>
    %274 = vector.extract_strided_slice %264 {offsets = [0, 32], sizes = [8, 32], strides = [1, 1]} : vector<8x96xf32> to vector<8x32xf32>
    %275 = arith.addf %273, %274 : vector<8x32xf32>
    %276 = arith.negf %275 : vector<8x32xf32>
    %277 = math.exp %276 : vector<8x32xf32>
    %cst_47 = arith.constant 1.000000e+00 : f32
    %278 = vector.broadcast %cst_47 : f32 to vector<8x32xf32>
    %279 = arith.addf %278, %277 : vector<8x32xf32>
    %280 = arith.divf %278, %279 : vector<8x32xf32>
    %281 = vector.extract_strided_slice %263 {offsets = [0, 64], sizes = [8, 32], strides = [1, 1]} : vector<8x96xf32> to vector<8x32xf32>
    %282 = vector.extract_strided_slice %264 {offsets = [0, 64], sizes = [8, 32], strides = [1, 1]} : vector<8x96xf32> to vector<8x32xf32>
    %283 = vector.broadcast %13 : vector<1x32xf32> to vector<8x32xf32>
    %284 = arith.addf %282, %283 : vector<8x32xf32>
    %285 = arith.mulf %272, %284 : vector<8x32xf32>
    %286 = arith.addf %281, %285 : vector<8x32xf32>
    %287 = math.tanh %286 : vector<8x32xf32>
    %cst_48 = arith.constant 1.000000e+00 : f32
    %288 = vector.broadcast %cst_48 : f32 to vector<8x32xf32>
    %289 = arith.subf %288, %280 : vector<8x32xf32>
    %290 = arith.mulf %289, %287 : vector<8x32xf32>
    %291 = arith.mulf %280, %261 : vector<8x32xf32>
    %292 = arith.addf %290, %291 : vector<8x32xf32>
    %293 = vector.extract_strided_slice %11 {offsets = [9, 0, 0], sizes = [1, 8, 96], strides = [1, 1, 1]} : vector<16x8x96xf32> to vector<1x8x96xf32>
    %294 = vector.shape_cast %293 : vector<1x8x96xf32> to vector<8x96xf32>
    %cst_49 = arith.constant dense<0.000000e+00> : vector<8x96xf32>
    %295 = tpu.matmul %292, %12, %cst_49 {dimension_numbers = #tpu.dot_dimension_numbers<[1], [0], [0], [1], [0, 0, 1, 1], [], []>} : vector<8x32xf32>, vector<32x96xf32>, vector<8x96xf32> -> vector<8x96xf32>
    %296 = vector.extract_strided_slice %294 {offsets = [0, 0], sizes = [8, 32], strides = [1, 1]} : vector<8x96xf32> to vector<8x32xf32>
    %297 = vector.extract_strided_slice %295 {offsets = [0, 0], sizes = [8, 32], strides = [1, 1]} : vector<8x96xf32> to vector<8x32xf32>
    %298 = arith.addf %296, %297 : vector<8x32xf32>
    %299 = arith.negf %298 : vector<8x32xf32>
    %300 = math.exp %299 : vector<8x32xf32>
    %cst_50 = arith.constant 1.000000e+00 : f32
    %301 = vector.broadcast %cst_50 : f32 to vector<8x32xf32>
    %302 = arith.addf %301, %300 : vector<8x32xf32>
    %303 = arith.divf %301, %302 : vector<8x32xf32>
    %304 = vector.extract_strided_slice %294 {offsets = [0, 32], sizes = [8, 32], strides = [1, 1]} : vector<8x96xf32> to vector<8x32xf32>
    %305 = vector.extract_strided_slice %295 {offsets = [0, 32], sizes = [8, 32], strides = [1, 1]} : vector<8x96xf32> to vector<8x32xf32>
    %306 = arith.addf %304, %305 : vector<8x32xf32>
    %307 = arith.negf %306 : vector<8x32xf32>
    %308 = math.exp %307 : vector<8x32xf32>
    %cst_51 = arith.constant 1.000000e+00 : f32
    %309 = vector.broadcast %cst_51 : f32 to vector<8x32xf32>
    %310 = arith.addf %309, %308 : vector<8x32xf32>
    %311 = arith.divf %309, %310 : vector<8x32xf32>
    %312 = vector.extract_strided_slice %294 {offsets = [0, 64], sizes = [8, 32], strides = [1, 1]} : vector<8x96xf32> to vector<8x32xf32>
    %313 = vector.extract_strided_slice %295 {offsets = [0, 64], sizes = [8, 32], strides = [1, 1]} : vector<8x96xf32> to vector<8x32xf32>
    %314 = vector.broadcast %13 : vector<1x32xf32> to vector<8x32xf32>
    %315 = arith.addf %313, %314 : vector<8x32xf32>
    %316 = arith.mulf %303, %315 : vector<8x32xf32>
    %317 = arith.addf %312, %316 : vector<8x32xf32>
    %318 = math.tanh %317 : vector<8x32xf32>
    %cst_52 = arith.constant 1.000000e+00 : f32
    %319 = vector.broadcast %cst_52 : f32 to vector<8x32xf32>
    %320 = arith.subf %319, %311 : vector<8x32xf32>
    %321 = arith.mulf %320, %318 : vector<8x32xf32>
    %322 = arith.mulf %311, %292 : vector<8x32xf32>
    %323 = arith.addf %321, %322 : vector<8x32xf32>
    %324 = vector.extract_strided_slice %11 {offsets = [10, 0, 0], sizes = [1, 8, 96], strides = [1, 1, 1]} : vector<16x8x96xf32> to vector<1x8x96xf32>
    %325 = vector.shape_cast %324 : vector<1x8x96xf32> to vector<8x96xf32>
    %cst_53 = arith.constant dense<0.000000e+00> : vector<8x96xf32>
    %326 = tpu.matmul %323, %12, %cst_53 {dimension_numbers = #tpu.dot_dimension_numbers<[1], [0], [0], [1], [0, 0, 1, 1], [], []>} : vector<8x32xf32>, vector<32x96xf32>, vector<8x96xf32> -> vector<8x96xf32>
    %327 = vector.extract_strided_slice %325 {offsets = [0, 0], sizes = [8, 32], strides = [1, 1]} : vector<8x96xf32> to vector<8x32xf32>
    %328 = vector.extract_strided_slice %326 {offsets = [0, 0], sizes = [8, 32], strides = [1, 1]} : vector<8x96xf32> to vector<8x32xf32>
    %329 = arith.addf %327, %328 : vector<8x32xf32>
    %330 = arith.negf %329 : vector<8x32xf32>
    %331 = math.exp %330 : vector<8x32xf32>
    %cst_54 = arith.constant 1.000000e+00 : f32
    %332 = vector.broadcast %cst_54 : f32 to vector<8x32xf32>
    %333 = arith.addf %332, %331 : vector<8x32xf32>
    %334 = arith.divf %332, %333 : vector<8x32xf32>
    %335 = vector.extract_strided_slice %325 {offsets = [0, 32], sizes = [8, 32], strides = [1, 1]} : vector<8x96xf32> to vector<8x32xf32>
    %336 = vector.extract_strided_slice %326 {offsets = [0, 32], sizes = [8, 32], strides = [1, 1]} : vector<8x96xf32> to vector<8x32xf32>
    %337 = arith.addf %335, %336 : vector<8x32xf32>
    %338 = arith.negf %337 : vector<8x32xf32>
    %339 = math.exp %338 : vector<8x32xf32>
    %cst_55 = arith.constant 1.000000e+00 : f32
    %340 = vector.broadcast %cst_55 : f32 to vector<8x32xf32>
    %341 = arith.addf %340, %339 : vector<8x32xf32>
    %342 = arith.divf %340, %341 : vector<8x32xf32>
    %343 = vector.extract_strided_slice %325 {offsets = [0, 64], sizes = [8, 32], strides = [1, 1]} : vector<8x96xf32> to vector<8x32xf32>
    %344 = vector.extract_strided_slice %326 {offsets = [0, 64], sizes = [8, 32], strides = [1, 1]} : vector<8x96xf32> to vector<8x32xf32>
    %345 = vector.broadcast %13 : vector<1x32xf32> to vector<8x32xf32>
    %346 = arith.addf %344, %345 : vector<8x32xf32>
    %347 = arith.mulf %334, %346 : vector<8x32xf32>
    %348 = arith.addf %343, %347 : vector<8x32xf32>
    %349 = math.tanh %348 : vector<8x32xf32>
    %cst_56 = arith.constant 1.000000e+00 : f32
    %350 = vector.broadcast %cst_56 : f32 to vector<8x32xf32>
    %351 = arith.subf %350, %342 : vector<8x32xf32>
    %352 = arith.mulf %351, %349 : vector<8x32xf32>
    %353 = arith.mulf %342, %323 : vector<8x32xf32>
    %354 = arith.addf %352, %353 : vector<8x32xf32>
    %355 = vector.extract_strided_slice %11 {offsets = [11, 0, 0], sizes = [1, 8, 96], strides = [1, 1, 1]} : vector<16x8x96xf32> to vector<1x8x96xf32>
    %356 = vector.shape_cast %355 : vector<1x8x96xf32> to vector<8x96xf32>
    %cst_57 = arith.constant dense<0.000000e+00> : vector<8x96xf32>
    %357 = tpu.matmul %354, %12, %cst_57 {dimension_numbers = #tpu.dot_dimension_numbers<[1], [0], [0], [1], [0, 0, 1, 1], [], []>} : vector<8x32xf32>, vector<32x96xf32>, vector<8x96xf32> -> vector<8x96xf32>
    %358 = vector.extract_strided_slice %356 {offsets = [0, 0], sizes = [8, 32], strides = [1, 1]} : vector<8x96xf32> to vector<8x32xf32>
    %359 = vector.extract_strided_slice %357 {offsets = [0, 0], sizes = [8, 32], strides = [1, 1]} : vector<8x96xf32> to vector<8x32xf32>
    %360 = arith.addf %358, %359 : vector<8x32xf32>
    %361 = arith.negf %360 : vector<8x32xf32>
    %362 = math.exp %361 : vector<8x32xf32>
    %cst_58 = arith.constant 1.000000e+00 : f32
    %363 = vector.broadcast %cst_58 : f32 to vector<8x32xf32>
    %364 = arith.addf %363, %362 : vector<8x32xf32>
    %365 = arith.divf %363, %364 : vector<8x32xf32>
    %366 = vector.extract_strided_slice %356 {offsets = [0, 32], sizes = [8, 32], strides = [1, 1]} : vector<8x96xf32> to vector<8x32xf32>
    %367 = vector.extract_strided_slice %357 {offsets = [0, 32], sizes = [8, 32], strides = [1, 1]} : vector<8x96xf32> to vector<8x32xf32>
    %368 = arith.addf %366, %367 : vector<8x32xf32>
    %369 = arith.negf %368 : vector<8x32xf32>
    %370 = math.exp %369 : vector<8x32xf32>
    %cst_59 = arith.constant 1.000000e+00 : f32
    %371 = vector.broadcast %cst_59 : f32 to vector<8x32xf32>
    %372 = arith.addf %371, %370 : vector<8x32xf32>
    %373 = arith.divf %371, %372 : vector<8x32xf32>
    %374 = vector.extract_strided_slice %356 {offsets = [0, 64], sizes = [8, 32], strides = [1, 1]} : vector<8x96xf32> to vector<8x32xf32>
    %375 = vector.extract_strided_slice %357 {offsets = [0, 64], sizes = [8, 32], strides = [1, 1]} : vector<8x96xf32> to vector<8x32xf32>
    %376 = vector.broadcast %13 : vector<1x32xf32> to vector<8x32xf32>
    %377 = arith.addf %375, %376 : vector<8x32xf32>
    %378 = arith.mulf %365, %377 : vector<8x32xf32>
    %379 = arith.addf %374, %378 : vector<8x32xf32>
    %380 = math.tanh %379 : vector<8x32xf32>
    %cst_60 = arith.constant 1.000000e+00 : f32
    %381 = vector.broadcast %cst_60 : f32 to vector<8x32xf32>
    %382 = arith.subf %381, %373 : vector<8x32xf32>
    %383 = arith.mulf %382, %380 : vector<8x32xf32>
    %384 = arith.mulf %373, %354 : vector<8x32xf32>
    %385 = arith.addf %383, %384 : vector<8x32xf32>
    %386 = vector.extract_strided_slice %11 {offsets = [12, 0, 0], sizes = [1, 8, 96], strides = [1, 1, 1]} : vector<16x8x96xf32> to vector<1x8x96xf32>
    %387 = vector.shape_cast %386 : vector<1x8x96xf32> to vector<8x96xf32>
    %cst_61 = arith.constant dense<0.000000e+00> : vector<8x96xf32>
    %388 = tpu.matmul %385, %12, %cst_61 {dimension_numbers = #tpu.dot_dimension_numbers<[1], [0], [0], [1], [0, 0, 1, 1], [], []>} : vector<8x32xf32>, vector<32x96xf32>, vector<8x96xf32> -> vector<8x96xf32>
    %389 = vector.extract_strided_slice %387 {offsets = [0, 0], sizes = [8, 32], strides = [1, 1]} : vector<8x96xf32> to vector<8x32xf32>
    %390 = vector.extract_strided_slice %388 {offsets = [0, 0], sizes = [8, 32], strides = [1, 1]} : vector<8x96xf32> to vector<8x32xf32>
    %391 = arith.addf %389, %390 : vector<8x32xf32>
    %392 = arith.negf %391 : vector<8x32xf32>
    %393 = math.exp %392 : vector<8x32xf32>
    %cst_62 = arith.constant 1.000000e+00 : f32
    %394 = vector.broadcast %cst_62 : f32 to vector<8x32xf32>
    %395 = arith.addf %394, %393 : vector<8x32xf32>
    %396 = arith.divf %394, %395 : vector<8x32xf32>
    %397 = vector.extract_strided_slice %387 {offsets = [0, 32], sizes = [8, 32], strides = [1, 1]} : vector<8x96xf32> to vector<8x32xf32>
    %398 = vector.extract_strided_slice %388 {offsets = [0, 32], sizes = [8, 32], strides = [1, 1]} : vector<8x96xf32> to vector<8x32xf32>
    %399 = arith.addf %397, %398 : vector<8x32xf32>
    %400 = arith.negf %399 : vector<8x32xf32>
    %401 = math.exp %400 : vector<8x32xf32>
    %cst_63 = arith.constant 1.000000e+00 : f32
    %402 = vector.broadcast %cst_63 : f32 to vector<8x32xf32>
    %403 = arith.addf %402, %401 : vector<8x32xf32>
    %404 = arith.divf %402, %403 : vector<8x32xf32>
    %405 = vector.extract_strided_slice %387 {offsets = [0, 64], sizes = [8, 32], strides = [1, 1]} : vector<8x96xf32> to vector<8x32xf32>
    %406 = vector.extract_strided_slice %388 {offsets = [0, 64], sizes = [8, 32], strides = [1, 1]} : vector<8x96xf32> to vector<8x32xf32>
    %407 = vector.broadcast %13 : vector<1x32xf32> to vector<8x32xf32>
    %408 = arith.addf %406, %407 : vector<8x32xf32>
    %409 = arith.mulf %396, %408 : vector<8x32xf32>
    %410 = arith.addf %405, %409 : vector<8x32xf32>
    %411 = math.tanh %410 : vector<8x32xf32>
    %cst_64 = arith.constant 1.000000e+00 : f32
    %412 = vector.broadcast %cst_64 : f32 to vector<8x32xf32>
    %413 = arith.subf %412, %404 : vector<8x32xf32>
    %414 = arith.mulf %413, %411 : vector<8x32xf32>
    %415 = arith.mulf %404, %385 : vector<8x32xf32>
    %416 = arith.addf %414, %415 : vector<8x32xf32>
    %417 = vector.extract_strided_slice %11 {offsets = [13, 0, 0], sizes = [1, 8, 96], strides = [1, 1, 1]} : vector<16x8x96xf32> to vector<1x8x96xf32>
    %418 = vector.shape_cast %417 : vector<1x8x96xf32> to vector<8x96xf32>
    %cst_65 = arith.constant dense<0.000000e+00> : vector<8x96xf32>
    %419 = tpu.matmul %416, %12, %cst_65 {dimension_numbers = #tpu.dot_dimension_numbers<[1], [0], [0], [1], [0, 0, 1, 1], [], []>} : vector<8x32xf32>, vector<32x96xf32>, vector<8x96xf32> -> vector<8x96xf32>
    %420 = vector.extract_strided_slice %418 {offsets = [0, 0], sizes = [8, 32], strides = [1, 1]} : vector<8x96xf32> to vector<8x32xf32>
    %421 = vector.extract_strided_slice %419 {offsets = [0, 0], sizes = [8, 32], strides = [1, 1]} : vector<8x96xf32> to vector<8x32xf32>
    %422 = arith.addf %420, %421 : vector<8x32xf32>
    %423 = arith.negf %422 : vector<8x32xf32>
    %424 = math.exp %423 : vector<8x32xf32>
    %cst_66 = arith.constant 1.000000e+00 : f32
    %425 = vector.broadcast %cst_66 : f32 to vector<8x32xf32>
    %426 = arith.addf %425, %424 : vector<8x32xf32>
    %427 = arith.divf %425, %426 : vector<8x32xf32>
    %428 = vector.extract_strided_slice %418 {offsets = [0, 32], sizes = [8, 32], strides = [1, 1]} : vector<8x96xf32> to vector<8x32xf32>
    %429 = vector.extract_strided_slice %419 {offsets = [0, 32], sizes = [8, 32], strides = [1, 1]} : vector<8x96xf32> to vector<8x32xf32>
    %430 = arith.addf %428, %429 : vector<8x32xf32>
    %431 = arith.negf %430 : vector<8x32xf32>
    %432 = math.exp %431 : vector<8x32xf32>
    %cst_67 = arith.constant 1.000000e+00 : f32
    %433 = vector.broadcast %cst_67 : f32 to vector<8x32xf32>
    %434 = arith.addf %433, %432 : vector<8x32xf32>
    %435 = arith.divf %433, %434 : vector<8x32xf32>
    %436 = vector.extract_strided_slice %418 {offsets = [0, 64], sizes = [8, 32], strides = [1, 1]} : vector<8x96xf32> to vector<8x32xf32>
    %437 = vector.extract_strided_slice %419 {offsets = [0, 64], sizes = [8, 32], strides = [1, 1]} : vector<8x96xf32> to vector<8x32xf32>
    %438 = vector.broadcast %13 : vector<1x32xf32> to vector<8x32xf32>
    %439 = arith.addf %437, %438 : vector<8x32xf32>
    %440 = arith.mulf %427, %439 : vector<8x32xf32>
    %441 = arith.addf %436, %440 : vector<8x32xf32>
    %442 = math.tanh %441 : vector<8x32xf32>
    %cst_68 = arith.constant 1.000000e+00 : f32
    %443 = vector.broadcast %cst_68 : f32 to vector<8x32xf32>
    %444 = arith.subf %443, %435 : vector<8x32xf32>
    %445 = arith.mulf %444, %442 : vector<8x32xf32>
    %446 = arith.mulf %435, %416 : vector<8x32xf32>
    %447 = arith.addf %445, %446 : vector<8x32xf32>
    %448 = vector.extract_strided_slice %11 {offsets = [14, 0, 0], sizes = [1, 8, 96], strides = [1, 1, 1]} : vector<16x8x96xf32> to vector<1x8x96xf32>
    %449 = vector.shape_cast %448 : vector<1x8x96xf32> to vector<8x96xf32>
    %cst_69 = arith.constant dense<0.000000e+00> : vector<8x96xf32>
    %450 = tpu.matmul %447, %12, %cst_69 {dimension_numbers = #tpu.dot_dimension_numbers<[1], [0], [0], [1], [0, 0, 1, 1], [], []>} : vector<8x32xf32>, vector<32x96xf32>, vector<8x96xf32> -> vector<8x96xf32>
    %451 = vector.extract_strided_slice %449 {offsets = [0, 0], sizes = [8, 32], strides = [1, 1]} : vector<8x96xf32> to vector<8x32xf32>
    %452 = vector.extract_strided_slice %450 {offsets = [0, 0], sizes = [8, 32], strides = [1, 1]} : vector<8x96xf32> to vector<8x32xf32>
    %453 = arith.addf %451, %452 : vector<8x32xf32>
    %454 = arith.negf %453 : vector<8x32xf32>
    %455 = math.exp %454 : vector<8x32xf32>
    %cst_70 = arith.constant 1.000000e+00 : f32
    %456 = vector.broadcast %cst_70 : f32 to vector<8x32xf32>
    %457 = arith.addf %456, %455 : vector<8x32xf32>
    %458 = arith.divf %456, %457 : vector<8x32xf32>
    %459 = vector.extract_strided_slice %449 {offsets = [0, 32], sizes = [8, 32], strides = [1, 1]} : vector<8x96xf32> to vector<8x32xf32>
    %460 = vector.extract_strided_slice %450 {offsets = [0, 32], sizes = [8, 32], strides = [1, 1]} : vector<8x96xf32> to vector<8x32xf32>
    %461 = arith.addf %459, %460 : vector<8x32xf32>
    %462 = arith.negf %461 : vector<8x32xf32>
    %463 = math.exp %462 : vector<8x32xf32>
    %cst_71 = arith.constant 1.000000e+00 : f32
    %464 = vector.broadcast %cst_71 : f32 to vector<8x32xf32>
    %465 = arith.addf %464, %463 : vector<8x32xf32>
    %466 = arith.divf %464, %465 : vector<8x32xf32>
    %467 = vector.extract_strided_slice %449 {offsets = [0, 64], sizes = [8, 32], strides = [1, 1]} : vector<8x96xf32> to vector<8x32xf32>
    %468 = vector.extract_strided_slice %450 {offsets = [0, 64], sizes = [8, 32], strides = [1, 1]} : vector<8x96xf32> to vector<8x32xf32>
    %469 = vector.broadcast %13 : vector<1x32xf32> to vector<8x32xf32>
    %470 = arith.addf %468, %469 : vector<8x32xf32>
    %471 = arith.mulf %458, %470 : vector<8x32xf32>
    %472 = arith.addf %467, %471 : vector<8x32xf32>
    %473 = math.tanh %472 : vector<8x32xf32>
    %cst_72 = arith.constant 1.000000e+00 : f32
    %474 = vector.broadcast %cst_72 : f32 to vector<8x32xf32>
    %475 = arith.subf %474, %466 : vector<8x32xf32>
    %476 = arith.mulf %475, %473 : vector<8x32xf32>
    %477 = arith.mulf %466, %447 : vector<8x32xf32>
    %478 = arith.addf %476, %477 : vector<8x32xf32>
    %479 = vector.extract_strided_slice %11 {offsets = [15, 0, 0], sizes = [1, 8, 96], strides = [1, 1, 1]} : vector<16x8x96xf32> to vector<1x8x96xf32>
    %480 = vector.shape_cast %479 : vector<1x8x96xf32> to vector<8x96xf32>
    %cst_73 = arith.constant dense<0.000000e+00> : vector<8x96xf32>
    %481 = tpu.matmul %478, %12, %cst_73 {dimension_numbers = #tpu.dot_dimension_numbers<[1], [0], [0], [1], [0, 0, 1, 1], [], []>} : vector<8x32xf32>, vector<32x96xf32>, vector<8x96xf32> -> vector<8x96xf32>
    %482 = vector.extract_strided_slice %480 {offsets = [0, 0], sizes = [8, 32], strides = [1, 1]} : vector<8x96xf32> to vector<8x32xf32>
    %483 = vector.extract_strided_slice %481 {offsets = [0, 0], sizes = [8, 32], strides = [1, 1]} : vector<8x96xf32> to vector<8x32xf32>
    %484 = arith.addf %482, %483 : vector<8x32xf32>
    %485 = arith.negf %484 : vector<8x32xf32>
    %486 = math.exp %485 : vector<8x32xf32>
    %cst_74 = arith.constant 1.000000e+00 : f32
    %487 = vector.broadcast %cst_74 : f32 to vector<8x32xf32>
    %488 = arith.addf %487, %486 : vector<8x32xf32>
    %489 = arith.divf %487, %488 : vector<8x32xf32>
    %490 = vector.extract_strided_slice %480 {offsets = [0, 32], sizes = [8, 32], strides = [1, 1]} : vector<8x96xf32> to vector<8x32xf32>
    %491 = vector.extract_strided_slice %481 {offsets = [0, 32], sizes = [8, 32], strides = [1, 1]} : vector<8x96xf32> to vector<8x32xf32>
    %492 = arith.addf %490, %491 : vector<8x32xf32>
    %493 = arith.negf %492 : vector<8x32xf32>
    %494 = math.exp %493 : vector<8x32xf32>
    %cst_75 = arith.constant 1.000000e+00 : f32
    %495 = vector.broadcast %cst_75 : f32 to vector<8x32xf32>
    %496 = arith.addf %495, %494 : vector<8x32xf32>
    %497 = arith.divf %495, %496 : vector<8x32xf32>
    %498 = vector.extract_strided_slice %480 {offsets = [0, 64], sizes = [8, 32], strides = [1, 1]} : vector<8x96xf32> to vector<8x32xf32>
    %499 = vector.extract_strided_slice %481 {offsets = [0, 64], sizes = [8, 32], strides = [1, 1]} : vector<8x96xf32> to vector<8x32xf32>
    %500 = vector.broadcast %13 : vector<1x32xf32> to vector<8x32xf32>
    %501 = arith.addf %499, %500 : vector<8x32xf32>
    %502 = arith.mulf %489, %501 : vector<8x32xf32>
    %503 = arith.addf %498, %502 : vector<8x32xf32>
    %504 = math.tanh %503 : vector<8x32xf32>
    %cst_76 = arith.constant 1.000000e+00 : f32
    %505 = vector.broadcast %cst_76 : f32 to vector<8x32xf32>
    %506 = arith.subf %505, %497 : vector<8x32xf32>
    %507 = arith.mulf %506, %504 : vector<8x32xf32>
    %508 = arith.mulf %497, %478 : vector<8x32xf32>
    %509 = arith.addf %507, %508 : vector<8x32xf32>
    %c0_77 = arith.constant 0 : index
    %c0_78 = arith.constant 0 : index
    %510 = vector.load %arg11[%c0_77, %c0_78] : memref<8x32xf32, #tpu.memory_space<vmem>>, vector<8x32xf32>
    tpu.vector_store %arg11[%c0_77, %c0_78], %509 {strides = array<i32>} : memref<8x32xf32, #tpu.memory_space<vmem>>, vector<8x32xf32>,
    %c1_i32 = arith.constant 1 : i32
    %511 = arith.cmpi eq, %arg0, %c1_i32 : i32
    %512 = arith.extui %511 : i1 to i32
    %c0_i32_79 = arith.constant 0 : i32
    %513 = arith.cmpi ne, %512, %c0_i32_79 : i32
    scf.if %513 {
      %c0_80 = arith.constant 0 : index
      %c0_81 = arith.constant 0 : index
      %514 = vector.load %arg6[%c0_80, %c0_81] : memref<32x5xf32, #tpu.memory_space<vmem>>, vector<32x5xf32>
      %cst_82 = arith.constant dense<0.000000e+00> : vector<8x5xf32>
      %515 = tpu.matmul %509, %514, %cst_82 {dimension_numbers = #tpu.dot_dimension_numbers<[1], [0], [0], [1], [0, 0, 1, 1], [], []>} : vector<8x32xf32>, vector<32x5xf32>, vector<8x5xf32> -> vector<8x5xf32>
      %c0_83 = arith.constant 0 : index
      %c0_84 = arith.constant 0 : index
      %516 = vector.load %arg7[%c0_83, %c0_84] : memref<1x5xf32, #tpu.memory_space<vmem>>, vector<1x5xf32>
      %517 = vector.broadcast %516 : vector<1x5xf32> to vector<8x5xf32>
      %518 = arith.addf %515, %517 : vector<8x5xf32>
      %c0_85 = arith.constant 0 : index
      %c0_86 = arith.constant 0 : index
      %519 = vector.load %arg8[%c0_85, %c0_86] : memref<5x1xf32, #tpu.memory_space<vmem>>, vector<5x1xf32>
      %cst_87 = arith.constant dense<0.000000e+00> : vector<8x1xf32>
      %520 = tpu.matmul %518, %519, %cst_87 {dimension_numbers = #tpu.dot_dimension_numbers<[1], [0], [0], [1], [0, 0, 1, 1], [], []>} : vector<8x5xf32>, vector<5x1xf32>, vector<8x1xf32> -> vector<8x1xf32>
      %c0_88 = arith.constant 0 : index
      %c0_89 = arith.constant 0 : index
      %521 = vector.load %arg9[%c0_88, %c0_89] : memref<1x1xf32, #tpu.memory_space<vmem>>, vector<1x1xf32>
      %522 = vector.broadcast %521 : vector<1x1xf32> to vector<8x1xf32>
      %523 = arith.addf %520, %522 : vector<8x1xf32>
      %c0_90 = arith.constant 0 : index
      %c0_91 = arith.constant 0 : index
      %524 = vector.load %arg10[%c0_90, %c0_91] : memref<8x1xf32, #tpu.memory_space<vmem>>, vector<8x1xf32>
      tpu.vector_store %arg10[%c0_90, %c0_91], %523 {strides = array<i32>} : memref<8x1xf32, #tpu.memory_space<vmem>>, vector<8x1xf32>,
    } else {
    }
    return
  }
  func.func @transform_0(%arg0: i32) -> (i32, i32, i32) {
    %c0_i32 = arith.constant 0 : i32
    %c0_i32_0 = arith.constant 0 : i32
    %c0_i32_1 = arith.constant 0 : i32
    return %arg0, %c0_i32, %c0_i32_0 : i32, i32, i32
  }
  func.func @transform_1(%arg0: i32) -> (i32, i32) {
    %c0_i32 = arith.constant 0 : i32
    %c0_i32_0 = arith.constant 0 : i32
    %c0_i32_1 = arith.constant 0 : i32
    return %c0_i32, %c0_i32_0 : i32, i32
  }
  func.func @transform_2(%arg0: i32) -> (i32, i32) {
    %c0_i32 = arith.constant 0 : i32
    %c0_i32_0 = arith.constant 0 : i32
    %c0_i32_1 = arith.constant 0 : i32
    return %c0_i32, %c0_i32_0 : i32, i32
  }
  func.func @transform_3(%arg0: i32) -> (i32, i32) {
    %c0_i32 = arith.constant 0 : i32
    %c0_i32_0 = arith.constant 0 : i32
    %c0_i32_1 = arith.constant 0 : i32
    return %c0_i32, %c0_i32_0 : i32, i32
  }
  func.func @transform_4(%arg0: i32) -> (i32, i32) {
    %c0_i32 = arith.constant 0 : i32
    %c0_i32_0 = arith.constant 0 : i32
    %c0_i32_1 = arith.constant 0 : i32
    return %c0_i32, %c0_i32_0 : i32, i32
  }
  func.func @transform_5(%arg0: i32) -> (i32, i32) {
    %c0_i32 = arith.constant 0 : i32
    %c0_i32_0 = arith.constant 0 : i32
    %c0_i32_1 = arith.constant 0 : i32
    return %c0_i32, %c0_i32_0 : i32, i32
  }
  func.func @transform_6(%arg0: i32) -> (i32, i32) {
    %c0_i32 = arith.constant 0 : i32
    %c0_i32_0 = arith.constant 0 : i32
    %c0_i32_1 = arith.constant 0 : i32
    return %c0_i32, %c0_i32_0 : i32, i32
  }
  func.func @transform_7(%arg0: i32) -> (i32, i32) {
    %c0_i32 = arith.constant 0 : i32
    %c0_i32_0 = arith.constant 0 : i32
    %c0_i32_1 = arith.constant 0 : i32
    return %c0_i32, %c0_i32_0 : i32, i32
  }
  func.func @transform_8(%arg0: i32) -> (i32, i32) {
    %c0_i32 = arith.constant 0 : i32
    %c0_i32_0 = arith.constant 0 : i32
    %c0_i32_1 = arith.constant 0 : i32
    return %c0_i32, %c0_i32_0 : i32, i32
  }
  func.func @transform_9(%arg0: i32) -> (i32, i32) {
    %c0_i32 = arith.constant 0 : i32
    %c0_i32_0 = arith.constant 0 : i32
    %c0_i32_1 = arith.constant 0 : i32
    return %c0_i32, %c0_i32_0 : i32, i32
  }
}

</mosaic_0001>

<llo_original>
// kernel: hal_gru_forward.3
$region0: #{hal_gru_forward.3}
  #allocation0 [shape = 'u32[]', space=smem, size = 0x4, offset = 0x4, fixed_abs, tag = 'smem constant byte address 0x4 - core index']
  #allocation1 [shape = 'u32[72,128]{1,0:T(1,128)}', space=vmem, size = 0x9000, scoped, tag = 'internal scratch']
  #allocation2 [shape = 'f32[8,32]{1,0:T(8,128)}', space=vmem, size = 0x1000, scoped, tag = 'scratch operand']
  #allocation3 [shape = 'f32[1,1]{1,0:T(1,128)S(1)}', space=vmem, size = 0x200, scoped, tag = 'scoped memory for hal_gru_forward.3']
  %s0 = inlined_call_operand.vmem [shape: f32[32,8,32], index: 0, kind: input, shape index: {}]
  %s1 = inlined_call_operand.vmem [shape: f32[32,96], index: 1, kind: input, shape index: {}]
  %s2 = inlined_call_operand.vmem [shape: f32[1,96], index: 2, kind: input, shape index: {}]
  %s3 = inlined_call_operand.vmem [shape: f32[32,96], index: 3, kind: input, shape index: {}]
  %s4 = inlined_call_operand.vmem [shape: f32[1,32], index: 4, kind: input, shape index: {}]
  %s5 = inlined_call_operand.vmem [shape: f32[32,5], index: 5, kind: input, shape index: {}]
  %s6 = inlined_call_operand.vmem [shape: f32[1,5], index: 6, kind: input, shape index: {}]
  %s7 = inlined_call_operand.vmem [shape: f32[5,1], index: 7, kind: input, shape index: {}]
  %s8 = inlined_call_operand.<no memory space> [shape: f32[1,1], index: 8, kind: input, shape index: {}]
  %s9 = inlined_call_operand.vmem [shape: f32[8,1], index: 9, kind: output, shape index: {}]
  %s10 = sld [smem:[#allocation0]]
  $region77: #{hal_gru_forward.3} parent=0
    _
  %s12 = ssub.s32 1, %s10
  %s13 = scalar_select 0, %s12, %s10
  %v14 = vstv %s8
  %15 = vst [vmem:[#allocation3] sm:$0x1] %v14
  loop: start=0, step=1, limit=4
  $region2: #{hal_gru_forward.3} parent=0 // loop_pre_header
    _
  $region3: #{hal_gru_forward.3} parent=0 // loop_header
    %s17 = sphi 0, %s21
    %p18 = scmp.ge.s32.totalorder %s17, 4
    %s27 = sphi 0, %s29
    %s30 = sphi 0, %s27
    %s31 = sphi 0, %s30
    %s47 = sphi 0, %s31
    %s51 = sphi 0, %s51
    %s53 = sphi 0, %s51
    %s54 = sphi 0, %s53
    %s68 = sphi 0, %s54
    %s72 = sphi 0, %s72
    %s74 = sphi 0, %s72
    %s75 = sphi 0, %s74
    %s89 = sphi 0, %s75
    %s93 = sphi 0, %s93
    %s95 = sphi 0, %s93
    %s96 = sphi 0, %s95
    %s110 = sphi 0, %s96
    %s114 = sphi 0, %s114
    %s116 = sphi 0, %s114
    %s117 = sphi 0, %s116
    %s131 = sphi 0, %s117
    %s135 = sphi 0, %s135
    %s137 = sphi 0, %s135
    %s138 = sphi 0, %s137
    %s152 = sphi 0, %s138
    %s156 = sphi 0, %s156
    %s158 = sphi 0, %s156
    %s159 = sphi 0, %s158
    %s173 = sphi 0, %s159
    %s177 = sphi 0, %s177
    %s179 = sphi 0, %s177
    %s180 = sphi 0, %s179
    %s194 = sphi 0, %s180
    %s198 = sphi 0, %s198
    %s200 = sphi 0, %s198
    %s201 = sphi 0, %s200
    %s215 = sphi 0, %s201
    %s219 = sphi 0, %s219
    %s221 = sphi 0, %s219
    %s222 = sphi 0, %s221
    %s236 = sphi 0, %s222
  $region4: #{hal_gru_forward.3} parent=0 // loop_header_branch
    %20 = sbr.rel (%p18) target = $region8
  $region5: #{hal_gru_forward.3} parent=0 // loop_body
    %s22 = ssub.s32 %s17, 1
    %s23 = ssub.s32 %s17, 2
    %s24 = sadd.s32 %s17, 1
    %s25 = ssub.s32 %s17, %s24
    %p26 = scmp.eq.s32.totalorder %s25, 0
    %s28 = sadd.s32 %s27, 1
    %s29 = scalar_select %p26, %s27, %s28
    %p32 = pneg %p26
    %p33 = scmp.eq.s32.totalorder %s17, 1
    %p34 = por %p32, %p33
    %p35 = scmp.ne.s32.totalorder %s27, %s30
    %p36 = scmp.eq.s32.totalorder %s17, 0
    %p37 = por %p35, %p36
    %p38 = scmp.ne.s32.totalorder %s27, %s30
    %p39 = scmp.eq.s32.totalorder %s22, 1
    %p40 = por %p38, %p39
    %p41 = scmp.ne.s32.totalorder %s30, %s31
    %p42 = scmp.eq.s32.totalorder %s22, 0
    %p43 = por %p41, %p42
    %p44 = scmp.ne.s32.totalorder %s30, %s31
    %p45 = scmp.eq.s32.totalorder %s23, 1
    %p46 = por %p44, %p45
    %p48 = scmp.ne.s32.totalorder %s31, %s47
    %p49 = scmp.eq.s32.totalorder %s23, 0
    %p50 = por %p48, %p49
    %s52 = sadd.s32 %s51, 1
    %p55 = scmp.eq.s32.totalorder %s17, 1
    %p56 = scmp.ne.s32.totalorder %s51, %s53
    %p57 = scmp.eq.s32.totalorder %s17, 0
    %p58 = por %p56, %p57
    %p59 = scmp.ne.s32.totalorder %s51, %s53
    %p60 = scmp.eq.s32.totalorder %s22, 1
    %p61 = por %p59, %p60
    %p62 = scmp.ne.s32.totalorder %s53, %s54
    %p63 = scmp.eq.s32.totalorder %s22, 0
    %p64 = por %p62, %p63
    %p65 = scmp.ne.s32.totalorder %s53, %s54
    %p66 = scmp.eq.s32.totalorder %s23, 1
    %p67 = por %p65, %p66
    %p69 = scmp.ne.s32.totalorder %s54, %s68
    %p70 = scmp.eq.s32.totalorder %s23, 0
    %p71 = por %p69, %p70
    %s73 = sadd.s32 %s72, 1
    %p76 = scmp.eq.s32.totalorder %s17, 1
    %p77 = scmp.ne.s32.totalorder %s72, %s74
    %p78 = scmp.eq.s32.totalorder %s17, 0
    %p79 = por %p77, %p78
    %p80 = scmp.ne.s32.totalorder %s72, %s74
    %p81 = scmp.eq.s32.totalorder %s22, 1
    %p82 = por %p80, %p81
    %p83 = scmp.ne.s32.totalorder %s74, %s75
    %p84 = scmp.eq.s32.totalorder %s22, 0
    %p85 = por %p83, %p84
    %p86 = scmp.ne.s32.totalorder %s74, %s75
    %p87 = scmp.eq.s32.totalorder %s23, 1
    %p88 = por %p86, %p87
    %p90 = scmp.ne.s32.totalorder %s75, %s89
    %p91 = scmp.eq.s32.totalorder %s23, 0
    %p92 = por %p90, %p91
    %s94 = sadd.s32 %s93, 1
    %p97 = scmp.eq.s32.totalorder %s17, 1
    %p98 = scmp.ne.s32.totalorder %s93, %s95
    %p99 = scmp.eq.s32.totalorder %s17, 0
    %p100 = por %p98, %p99
    %p101 = scmp.ne.s32.totalorder %s93, %s95
    %p102 = scmp.eq.s32.totalorder %s22, 1
    %p103 = por %p101, %p102
    %p104 = scmp.ne.s32.totalorder %s95, %s96
    %p105 = scmp.eq.s32.totalorder %s22, 0
    %p106 = por %p104, %p105
    %p107 = scmp.ne.s32.totalorder %s95, %s96
    %p108 = scmp.eq.s32.totalorder %s23, 1
    %p109 = por %p107, %p108
    %p111 = scmp.ne.s32.totalorder %s96, %s110
    %p112 = scmp.eq.s32.totalorder %s23, 0
    %p113 = por %p111, %p112
    %s115 = sadd.s32 %s114, 1
    %p118 = scmp.eq.s32.totalorder %s17, 1
    %p119 = scmp.ne.s32.totalorder %s114, %s116
    %p120 = scmp.eq.s32.totalorder %s17, 0
    %p121 = por %p119, %p120
    %p122 = scmp.ne.s32.totalorder %s114, %s116
    %p123 = scmp.eq.s32.totalorder %s22, 1
    %p124 = por %p122, %p123
    %p125 = scmp.ne.s32.totalorder %s116, %s117
    %p126 = scmp.eq.s32.totalorder %s22, 0
    %p127 = por %p125, %p126
    %p128 = scmp.ne.s32.totalorder %s116, %s117
    %p129 = scmp.eq.s32.totalorder %s23, 1
    %p130 = por %p128, %p129
    %p132 = scmp.ne.s32.totalorder %s117, %s131
    %p133 = scmp.eq.s32.totalorder %s23, 0
    %p134 = por %p132, %p133
    %s136 = sadd.s32 %s135, 1
    %p139 = scmp.eq.s32.totalorder %s17, 1
    %p140 = scmp.ne.s32.totalorder %s135, %s137
    %p141 = scmp.eq.s32.totalorder %s17, 0
    %p142 = por %p140, %p141
    %p143 = scmp.ne.s32.totalorder %s135, %s137
    %p144 = scmp.eq.s32.totalorder %s22, 1
    %p145 = por %p143, %p144
    %p146 = scmp.ne.s32.totalorder %s137, %s138
    %p147 = scmp.eq.s32.totalorder %s22, 0
    %p148 = por %p146, %p147
    %p149 = scmp.ne.s32.totalorder %s137, %s138
    %p150 = scmp.eq.s32.totalorder %s23, 1
    %p151 = por %p149, %p150
    %p153 = scmp.ne.s32.totalorder %s138, %s152
    %p154 = scmp.eq.s32.totalorder %s23, 0
    %p155 = por %p153, %p154
    %s157 = sadd.s32 %s156, 1
    %p160 = scmp.eq.s32.totalorder %s17, 1
    %p161 = scmp.ne.s32.totalorder %s156, %s158
    %p162 = scmp.eq.s32.totalorder %s17, 0
    %p163 = por %p161, %p162
    %p164 = scmp.ne.s32.totalorder %s156, %s158
    %p165 = scmp.eq.s32.totalorder %s22, 1
    %p166 = por %p164, %p165
    %p167 = scmp.ne.s32.totalorder %s158, %s159
    %p168 = scmp.eq.s32.totalorder %s22, 0
    %p169 = por %p167, %p168
    %p170 = scmp.ne.s32.totalorder %s158, %s159
    %p171 = scmp.eq.s32.totalorder %s23, 1
    %p172 = por %p170, %p171
    %p174 = scmp.ne.s32.totalorder %s159, %s173
    %p175 = scmp.eq.s32.totalorder %s23, 0
    %p176 = por %p174, %p175
    %s178 = sadd.s32 %s177, 1
    %p181 = scmp.eq.s32.totalorder %s17, 1
    %p182 = scmp.ne.s32.totalorder %s177, %s179
    %p183 = scmp.eq.s32.totalorder %s17, 0
    %p184 = por %p182, %p183
    %p185 = scmp.ne.s32.totalorder %s177, %s179
    %p186 = scmp.eq.s32.totalorder %s22, 1
    %p187 = por %p185, %p186
    %p188 = scmp.ne.s32.totalorder %s179, %s180
    %p189 = scmp.eq.s32.totalorder %s22, 0
    %p190 = por %p188, %p189
    %p191 = scmp.ne.s32.totalorder %s179, %s180
    %p192 = scmp.eq.s32.totalorder %s23, 1
    %p193 = por %p191, %p192
    %p195 = scmp.ne.s32.totalorder %s180, %s194
    %p196 = scmp.eq.s32.totalorder %s23, 0
    %p197 = por %p195, %p196
    %s199 = sadd.s32 %s198, 1
    %p202 = scmp.eq.s32.totalorder %s17, 1
    %p203 = scmp.ne.s32.totalorder %s198, %s200
    %p204 = scmp.eq.s32.totalorder %s17, 0
    %p205 = por %p203, %p204
    %p206 = scmp.ne.s32.totalorder %s198, %s200
    %p207 = scmp.eq.s32.totalorder %s22, 1
    %p208 = por %p206, %p207
    %p209 = scmp.ne.s32.totalorder %s200, %s201
    %p210 = scmp.eq.s32.totalorder %s22, 0
    %p211 = por %p209, %p210
    %p212 = scmp.ne.s32.totalorder %s200, %s201
    %p213 = scmp.eq.s32.totalorder %s23, 1
    %p214 = por %p212, %p213
    %p216 = scmp.ne.s32.totalorder %s201, %s215
    %p217 = scmp.eq.s32.totalorder %s23, 0
    %p218 = por %p216, %p217
    %s220 = sadd.s32 %s219, 1
    %p223 = scmp.eq.s32.totalorder %s17, 1
    %p224 = scmp.ne.s32.totalorder %s219, %s221
    %p225 = scmp.eq.s32.totalorder %s17, 0
    %p226 = por %p224, %p225
    %p227 = scmp.ne.s32.totalorder %s219, %s221
    %p228 = scmp.eq.s32.totalorder %s22, 1
    %p229 = por %p227, %p228
    %p230 = scmp.ne.s32.totalorder %s221, %s222
    %p231 = scmp.eq.s32.totalorder %s22, 0
    %p232 = por %p230, %p231
    %p233 = scmp.ne.s32.totalorder %s221, %s222
    %p234 = scmp.eq.s32.totalorder %s23, 1
    %p235 = por %p233, %p234
    %p237 = scmp.ne.s32.totalorder %s222, %s236
    %p238 = scmp.eq.s32.totalorder %s23, 0
    %p239 = por %p237, %p238
    %p240 = scmp.le.s32.totalorder 1, %s17
    %p241 = scmp.lt.s32.totalorder %s17, 3
    %p242 = pnand %p240, %p241
    %p243 = pneg %p242
    // Predicated region
    $region9: #{hal_gru_forward.3} parent=5 // pred_check
      _
    $region10: #{hal_gru_forward.3} parent=5 // pred_check_branch
      %245 = sbr.rel (%p242) target = $region12
    $region11: #{hal_gru_forward.3} parent=5 // pred_region
      %s246 = ssub.s32 %s17, 1
      // Predicated region
      $region13: #{hal_gru_forward.3} parent=11 // pred_check
        %p247 = pneg %p64
      $region14: #{hal_gru_forward.3} parent=11 // pred_check_branch
        %249 = sbr.rel (%p247) target = $region16
      $region15: #{hal_gru_forward.3} parent=11 // pred_region
        _
      $region16: #{hal_gru_forward.3} parent=11 // pred_fallthru
        _
      // Predicated region
      $region17: #{hal_gru_forward.3} parent=11 // pred_check
        %p250 = pneg %p85
      $region18: #{hal_gru_forward.3} parent=11 // pred_check_branch
        %252 = sbr.rel (%p250) target = $region20
      $region19: #{hal_gru_forward.3} parent=11 // pred_region
        _
      $region20: #{hal_gru_forward.3} parent=11 // pred_fallthru
        _
      // Predicated region
      $region21: #{hal_gru_forward.3} parent=11 // pred_check
        %p253 = pneg %p106
      $region22: #{hal_gru_forward.3} parent=11 // pred_check_branch
        %255 = sbr.rel (%p253) target = $region24
      $region23: #{hal_gru_forward.3} parent=11 // pred_region
        _
      $region24: #{hal_gru_forward.3} parent=11 // pred_fallthru
        _
      // Predicated region
      $region25: #{hal_gru_forward.3} parent=11 // pred_check
        %p256 = pneg %p127
      $region26: #{hal_gru_forward.3} parent=11 // pred_check_branch
        %258 = sbr.rel (%p256) target = $region28
      $region27: #{hal_gru_forward.3} parent=11 // pred_region
        _
      $region28: #{hal_gru_forward.3} parent=11 // pred_fallthru
        _
      // Predicated region
      $region29: #{hal_gru_forward.3} parent=11 // pred_check
        %p259 = pneg %p148
      $region30: #{hal_gru_forward.3} parent=11 // pred_check_branch
        %261 = sbr.rel (%p259) target = $region32
      $region31: #{hal_gru_forward.3} parent=11 // pred_region
        _
      $region32: #{hal_gru_forward.3} parent=11 // pred_fallthru
        _
      // Predicated region
      $region33: #{hal_gru_forward.3} parent=11 // pred_check
        %p262 = pneg %p169
      $region34: #{hal_gru_forward.3} parent=11 // pred_check_branch
        %264 = sbr.rel (%p262) target = $region36
      $region35: #{hal_gru_forward.3} parent=11 // pred_region
        _
      $region36: #{hal_gru_forward.3} parent=11 // pred_fallthru
        _
      // Predicated region
      $region37: #{hal_gru_forward.3} parent=11 // pred_check
        %p265 = pneg %p190
      $region38: #{hal_gru_forward.3} parent=11 // pred_check_branch
        %267 = sbr.rel (%p265) target = $region40
      $region39: #{hal_gru_forward.3} parent=11 // pred_region
        _
      $region40: #{hal_gru_forward.3} parent=11 // pred_fallthru
        _
      // Predicated region
      $region41: #{hal_gru_forward.3} parent=11 // pred_check
        %p268 = pneg %p211
      $region42: #{hal_gru_forward.3} parent=11 // pred_check_branch
        %270 = sbr.rel (%p268) target = $region44
      $region43: #{hal_gru_forward.3} parent=11 // pred_region
        _
      $region44: #{hal_gru_forward.3} parent=11 // pred_fallthru
        _
    $region12: #{hal_gru_forward.3} parent=5 // pred_fallthru
      _
    %p271 = scmp.lt.s32.totalorder %s17, 2
    // Predicated region
    $region45: #{hal_gru_forward.3} parent=5 // pred_check
      %p272 = pneg %p271
    $region46: #{hal_gru_forward.3} parent=5 // pred_check_branch
      %274 = sbr.rel (%p272) target = $region48
    $region47: #{hal_gru_forward.3} parent=5 // pred_region
      // Predicated region
      $region49: #{hal_gru_forward.3} parent=47 // pred_check
        %p275 = pneg %p37
      $region50: #{hal_gru_forward.3} parent=47 // pred_check_branch
        %277 = sbr.rel (%p275) target = $region52
      $region51: #{hal_gru_forward.3} parent=47 // pred_region
        %s278 = smul.u32 16, %s17
        %p279 = scmp.lt.s32.totalorder %s278, 31
        %s280 = scalar_select %p279, %s278, 31
        %s281 = smul.addr %s280, 8
        %s282 = scalar_lea.vmem %s0, %s281
        %s283 = smul.u32 16, %s17
      $region52: #{hal_gru_forward.3} parent=47 // pred_fallthru
        _
    $region48: #{hal_gru_forward.3} parent=5 // pred_fallthru
      _
    %p284 = scmp.le.s32.totalorder 1, %s17
    %p285 = scmp.lt.s32.totalorder %s17, 3
    %p286 = pnand %p284, %p285
    %p287 = pneg %p286
    // Predicated region
    $region53: #{hal_gru_forward.3} parent=5 // pred_check
      _
    $region54: #{hal_gru_forward.3} parent=5 // pred_check_branch
      %289 = sbr.rel (%p286) target = $region56
    $region55: #{hal_gru_forward.3} parent=5 // pred_region
      %s290 = ssub.s32 %s17, 1
      %s291 = smul.u32 16, %s22
      %p292 = scmp.lt.s32.totalorder %s291, 31
      %s293 = scalar_select %p292, %s291, 31
      %s294 = smul.addr %s293, 8
      %s295 = scalar_lea.vmem %s0, %s294
      %p296 = pneg %p43
      %p297 = pneg %p40
      %p298 = pneg %p64
      %p299 = pneg %p61
      %p300 = pneg %p85
      %p301 = pneg %p82
      %p302 = pneg %p106
      %p303 = pneg %p103
      %p304 = pneg %p127
      %p305 = pneg %p124
      %p306 = pneg %p148
      %p307 = pneg %p145
      %p308 = pneg %p169
      %p309 = pneg %p166
      %p310 = pneg %p190
      %p311 = pneg %p187
      %p312 = pneg %p211
      %p313 = pneg %p208
      %p314 = pneg %p232
      %p315 = pneg %p229
      %s316 = smul.u32 16, %s22
      %p317 = scmp.lt.s32.totalorder %s316, 31
      %s318 = scalar_select %p317, %s316, 31
      %s319 = smul.addr %s318, 8
      %s320 = scalar_lea.vmem %s0, %s319
      %s321 = smul.u32 16, %s22
      %p322 = scmp.eq.s32.totalorder %s22, 0
      // Predicated region
      $region57: #{hal_gru_forward.3} parent=55 // pred_check
        %p323 = pneg %p322
      $region58: #{hal_gru_forward.3} parent=55 // pred_check_branch
        %325 = sbr.rel (%p323) target = $region60
      $region59: #{hal_gru_forward.3} parent=55 // pred_region
        %vm326 = vcmask 261120
        %327 = vst.msk [vmem:[#allocation2] sm:$0xff] %vm326, 0.0
      $region60: #{hal_gru_forward.3} parent=55 // pred_fallthru
        _
      %v328 = vld [vmem:[#allocation2] sm:$0xff]
      %v329 = vld [vmem:[%s320] sm:$0xff]
      %v330 = vld [vmem:[%s320 + $0x8] sm:$0xff]
      %v331 = vld [vmem:[%s320 + $0x10] sm:$0xff]
      %v332 = vld [vmem:[%s320 + $0x18] sm:$0xff]
      %v333 = vld [vmem:[%s320 + $0x20] sm:$0xff]
      %v334 = vld [vmem:[%s320 + $0x28] sm:$0xff]
      %v335 = vld [vmem:[%s320 + $0x30] sm:$0xff]
      %v336 = vld [vmem:[%s320 + $0x38] sm:$0xff]
      %v337 = vld [vmem:[%s320 + $0x40] sm:$0xff]
      %v338 = vld [vmem:[%s320 + $0x48] sm:$0xff]
      %v339 = vld [vmem:[%s320 + $0x50] sm:$0xff]
      %v340 = vld [vmem:[%s320 + $0x58] sm:$0xff]
      %v341 = vld [vmem:[%s320 + $0x60] sm:$0xff]
      %v342 = vld [vmem:[%s320 + $0x68] sm:$0xff]
      %v343 = vld [vmem:[%s320 + $0x70] sm:$0xff]
      %v344 = vld [vmem:[%s320 + $0x78] sm:$0xff]
      %v345 = vld [vmem:[%s1] sm:$0xff]
      %v346 = vld [vmem:[%s1 + $0x8] sm:$0xff]
      %v347 = vld [vmem:[%s1 + $0x10] sm:$0xff]
      %v348 = vld [vmem:[%s1 + $0x18] sm:$0xff]
      %v349 = vld [vmem:[%s2] sm:$0x1]
      %v351 = vperm.slane %v349, 0
      %vm353 = vcmask 261120
      %v355 = vsel %vm353, %v329, 0
      %v358 = vsel %vm353, %v330, 0
      %v361 = vsel %vm353, %v331, 0
      %v364 = vsel %vm353, %v332, 0
      %v367 = vsel %vm353, %v333, 0
      %v370 = vsel %vm353, %v334, 0
      %v373 = vsel %vm353, %v335, 0
      %v376 = vsel %vm353, %v336, 0
      %v379 = vsel %vm353, %v337, 0
      %v382 = vsel %vm353, %v338, 0
      %v385 = vsel %vm353, %v339, 0
      %v388 = vsel %vm353, %v340, 0
      %v391 = vsel %vm353, %v341, 0
      %v394 = vsel %vm353, %v342, 0
      %v397 = vsel %vm353, %v343, 0
      %v400 = vsel %vm353, %v344, 0
      %402 = vmatpush.msra.mxu0 0.0
      %403 = vmatpush.msra.mxu0 0.0
      %404 = vmatpush.msra.mxu0 0.0
      %405 = vmatpush.msra.mxu0 0.0
      %406 = vmatpush.msra.mxu0 0.0
      %407 = vmatpush.msra.mxu0 0.0
      %408 = vmatpush.msra.mxu0 0.0
      %409 = vmatpush.msra.mxu0 0.0
      %410 = vmatpush.msra.mxu0 0.0
      %411 = vmatpush.msra.mxu0 0.0
      %412 = vmatpush.msra.mxu0 0.0
      %413 = vmatpush.msra.mxu0 0.0
      %414 = vmatpush.msra.mxu0 %v348
      %415 = vmatpush.msra.mxu0 %v347
      %416 = vmatpush.msra.mxu0 %v346
      %417 = vmatpush.msra.mxu0 %v345
      %418 = vmatmul.f32.gmra.mxu0 %v355
      %v419 = vpop.f32.mrf.mxu0
      %v420 = vadd.f32 %v351, %v419
      %421 = vmatmul.f32.gmra.mxu0 %v358
      %v422 = vpop.f32.mrf.mxu0
      %v423 = vadd.f32 %v351, %v422
      %424 = vmatmul.f32.gmra.mxu0 %v361
      %v425 = vpop.f32.mrf.mxu0
      %v426 = vadd.f32 %v351, %v425
      %427 = vmatmul.f32.gmra.mxu0 %v364
      %v428 = vpop.f32.mrf.mxu0
      %v429 = vadd.f32 %v351, %v428
      %430 = vmatmul.f32.gmra.mxu0 %v367
      %v431 = vpop.f32.mrf.mxu0
      %v432 = vadd.f32 %v351, %v431
      %433 = vmatmul.f32.gmra.mxu0 %v370
      %v434 = vpop.f32.mrf.mxu0
      %v435 = vadd.f32 %v351, %v434
      %436 = vmatmul.f32.gmra.mxu0 %v373
      %v437 = vpop.f32.mrf.mxu0
      %v438 = vadd.f32 %v351, %v437
      %439 = vmatmul.f32.gmra.mxu0 %v376
      %v440 = vpop.f32.mrf.mxu0
      %v441 = vadd.f32 %v351, %v440
      %442 = vmatmul.f32.gmra.mxu0 %v379
      %v443 = vpop.f32.mrf.mxu0
      %v444 = vadd.f32 %v351, %v443
      %445 = vmatmul.f32.gmra.mxu0 %v382
      %v446 = vpop.f32.mrf.mxu0
      %v447 = vadd.f32 %v351, %v446
      %448 = vmatmul.f32.gmra.mxu0 %v385
      %v449 = vpop.f32.mrf.mxu0
      %v450 = vadd.f32 %v351, %v449
      %451 = vmatmul.f32.gmra.mxu0 %v388
      %v452 = vpop.f32.mrf.mxu0
      %v453 = vadd.f32 %v351, %v452
      %454 = vmatmul.f32.gmra.mxu0 %v391
      %v455 = vpop.f32.mrf.mxu0
      %v456 = vadd.f32 %v351, %v455
      %457 = vmatmul.f32.gmra.mxu0 %v394
      %v458 = vpop.f32.mrf.mxu0
      %v459 = vadd.f32 %v351, %v458
      %460 = vmatmul.f32.gmra.mxu0 %v397
      %v461 = vpop.f32.mrf.mxu0
      %v462 = vadd.f32 %v351, %v461
      %463 = vmatmul.f32.gmra.mxu0 %v400
      %v464 = vpop.f32.mrf.mxu0
      %v465 = vadd.f32 %v351, %v464
      %466 = vdwg.mxu0
      %v467 = vld [vmem:[%s3] sm:$0xff]
      %v468 = vld [vmem:[%s3 + $0x8] sm:$0xff]
      %v469 = vld [vmem:[%s3 + $0x10] sm:$0xff]
      %v470 = vld [vmem:[%s3 + $0x18] sm:$0xff]
      %v471 = vld [vmem:[%s4] sm:$0x1]
      %v473 = vsel %vm353, %v328, 0
      %475 = vmatpush.msra.mxu0 0.0
      %476 = vmatpush.msra.mxu0 0.0
      %477 = vmatpush.msra.mxu0 0.0
      %478 = vmatpush.msra.mxu0 0.0
      %479 = vmatpush.msra.mxu0 0.0
      %480 = vmatpush.msra.mxu0 0.0
      %481 = vmatpush.msra.mxu0 0.0
      %482 = vmatpush.msra.mxu0 0.0
      %483 = vmatpush.msra.mxu0 0.0
      %484 = vmatpush.msra.mxu0 0.0
      %485 = vmatpush.msra.mxu0 0.0
      %486 = vmatpush.msra.mxu0 0.0
      %487 = vmatpush.msra.mxu0 %v470
      %488 = vmatpush.msra.mxu0 %v469
      %489 = vmatpush.msra.mxu0 %v468
      %490 = vmatpush.msra.mxu0 %v467
      %491 = vmatmul.f32.gmra.mxu0 %v473
      %v492 = vpop.f32.mrf.mxu0
      %v493 = vadd.f32 0.0, %v492
      %494 = vdwg.mxu0
      %v495 = vadd.f32 %v420, %v493
      %v496 = vxor.u32 %v495, 2147483648
      %v497 = vmul.f32 %v496, 1.442695
      %v498 = vpow.pop %v497
      %v499 = vadd.f32 %v498, 1.0
      %v500 = vrcp.pop %v499
      %v501 = vmul.f32 %v499, %v500
      %v502 = vsub.f32 1.0, %v501
      %v503 = vmul.f32 %v500, %v502
      %v504 = vadd.f32 %v500, %v503
      %vm505 = vweird.f32 %v499
      %vm506 = vweird.f32 %v500
      %vm507 = vmor %vm505, %vm506
      %v508 = vsel %vm507, %v500, %v504
      %v509 = vand.u32 2147483647, %v499
      %vm510 = vcmp.eq.f32.partialorder %v509, 8.507059e+37
      %v511 = vand.u32 %v499, 2147483648
      %v512 = vor.u32 1.1754944e-38, %v511
      %v513 = vsel %vm510, %v512, %v508
      %v514 = vmul.f32 1.0, %v513
      %v516 = vperm.slane %v471, 0
      %517 = vrot.lane.b32.xlu0 %v516, 64
      %v518 = vpop.permute.xlu0 %517
      %v520 = vadd.f32 %v493, %v518
      %522 = vrot.lane.b32.xlu0 %v520, 64
      %v523 = vpop.permute.xlu0 %522
      %v525 = vmul.f32 %v514, %v523
      %527 = vrot.lane.b32.xlu0 %v525, 64
      %v528 = vpop.permute.xlu0 %527
      %v530 = vadd.f32 %v420, %v528
      %v531 = vtanh.pop %v530
      %v532 = vsub.f32 1.0, %v514
      %534 = vrot.lane.b32.xlu0 %v531, 96
      %v535 = vpop.permute.xlu0 %534
      %v537 = vmul.f32 %v532, %v535
      %538 = vrot.lane.b32.xlu0 %v328, 32
      %v539 = vpop.permute.xlu0 %538
      %v541 = vmul.f32 %v514, %v539
      %v542 = vadd.f32 %v537, %v541
      %544 = vrot.lane.b32.xlu0 %v542, 96
      %v545 = vpop.permute.xlu0 %544
      %v546 = vsel %vm353, %v545, 0
      %548 = vmatpush.msra.mxu0 0.0
      %549 = vmatpush.msra.mxu0 0.0
      %550 = vmatpush.msra.mxu0 0.0
      %551 = vmatpush.msra.mxu0 0.0
      %552 = vmatpush.msra.mxu0 0.0
      %553 = vmatpush.msra.mxu0 0.0
      %554 = vmatpush.msra.mxu0 0.0
      %555 = vmatpush.msra.mxu0 0.0
      %556 = vmatpush.msra.mxu0 0.0
      %557 = vmatpush.msra.mxu0 0.0
      %558 = vmatpush.msra.mxu0 0.0
      %559 = vmatpush.msra.mxu0 0.0
      %560 = vmatpush.msra.mxu0 %v470
      %561 = vmatpush.msra.mxu0 %v469
      %562 = vmatpush.msra.mxu0 %v468
      %563 = vmatpush.msra.mxu0 %v467
      %564 = vmatmul.f32.gmra.mxu0 %v546
      %v565 = vpop.f32.mrf.mxu0
      %v566 = vadd.f32 0.0, %v565
      %567 = vdwg.mxu0
      %v568 = vadd.f32 %v423, %v566
      %v569 = vxor.u32 %v568, 2147483648
      %v570 = vmul.f32 %v569, 1.442695
      %v571 = vpow.pop %v570
      %v572 = vadd.f32 %v571, 1.0
      %v573 = vrcp.pop %v572
      %v574 = vmul.f32 %v572, %v573
      %v575 = vsub.f32 1.0, %v574
      %v576 = vmul.f32 %v573, %v575
      %v577 = vadd.f32 %v573, %v576
      %vm578 = vweird.f32 %v572
      %vm579 = vweird.f32 %v573
      %vm580 = vmor %vm578, %vm579
      %v581 = vsel %vm580, %v573, %v577
      %v582 = vand.u32 2147483647, %v572
      %vm583 = vcmp.eq.f32.partialorder %v582, 8.507059e+37
      %v584 = vand.u32 %v572, 2147483648
      %v585 = vor.u32 1.1754944e-38, %v584
      %v586 = vsel %vm583, %v585, %v581
      %v587 = vmul.f32 1.0, %v586
      %v588 = vadd.f32 %v566, %v518
      %590 = vrot.lane.b32.xlu0 %v588, 64
      %v591 = vpop.permute.xlu0 %590
      %v593 = vmul.f32 %v587, %v591
      %595 = vrot.lane.b32.xlu0 %v593, 64
      %v596 = vpop.permute.xlu0 %595
      %v598 = vadd.f32 %v423, %v596
      %v599 = vtanh.pop %v598
      %v600 = vsub.f32 1.0, %v587
      %602 = vrot.lane.b32.xlu0 %v599, 96
      %v603 = vpop.permute.xlu0 %602
      %v605 = vmul.f32 %v600, %v603
      %v606 = vmul.f32 %v587, %v542
      %v607 = vadd.f32 %v605, %v606
      %609 = vrot.lane.b32.xlu0 %v607, 96
      %v610 = vpop.permute.xlu0 %609
      %v611 = vsel %vm353, %v610, 0
      %613 = vmatpush.msra.mxu0 0.0
      %614 = vmatpush.msra.mxu0 0.0
      %615 = vmatpush.msra.mxu0 0.0
      %616 = vmatpush.msra.mxu0 0.0
      %617 = vmatpush.msra.mxu0 0.0
      %618 = vmatpush.msra.mxu0 0.0
      %619 = vmatpush.msra.mxu0 0.0
      %620 = vmatpush.msra.mxu0 0.0
      %621 = vmatpush.msra.mxu0 0.0
      %622 = vmatpush.msra.mxu0 0.0
      %623 = vmatpush.msra.mxu0 0.0
      %624 = vmatpush.msra.mxu0 0.0
      %625 = vmatpush.msra.mxu0 %v470
      %626 = vmatpush.msra.mxu0 %v469
      %627 = vmatpush.msra.mxu0 %v468
      %628 = vmatpush.msra.mxu0 %v467
      %629 = vmatmul.f32.gmra.mxu0 %v611
      %v630 = vpop.f32.mrf.mxu0
      %v631 = vadd.f32 0.0, %v630
      %632 = vdwg.mxu0
      %v633 = vadd.f32 %v426, %v631
      %v634 = vxor.u32 %v633, 2147483648
      %v635 = vmul.f32 %v634, 1.442695
      %v636 = vpow.pop %v635
      %v637 = vadd.f32 %v636, 1.0
      %v638 = vrcp.pop %v637
      %v639 = vmul.f32 %v637, %v638
      %v640 = vsub.f32 1.0, %v639
      %v641 = vmul.f32 %v638, %v640
      %v642 = vadd.f32 %v638, %v641
      %vm643 = vweird.f32 %v637
      %vm644 = vweird.f32 %v638
      %vm645 = vmor %vm643, %vm644
      %v646 = vsel %vm645, %v638, %v642
      %v647 = vand.u32 2147483647, %v637
      %vm648 = vcmp.eq.f32.partialorder %v647, 8.507059e+37
      %v649 = vand.u32 %v637, 2147483648
      %v650 = vor.u32 1.1754944e-38, %v649
      %v651 = vsel %vm648, %v650, %v646
      %v652 = vmul.f32 1.0, %v651
      %v653 = vadd.f32 %v631, %v518
      %655 = vrot.lane.b32.xlu0 %v653, 64
      %v656 = vpop.permute.xlu0 %655
      %v658 = vmul.f32 %v652, %v656
      %660 = vrot.lane.b32.xlu0 %v658, 64
      %v661 = vpop.permute.xlu0 %660
      %v663 = vadd.f32 %v426, %v661
      %v664 = vtanh.pop %v663
      %v665 = vsub.f32 1.0, %v652
      %667 = vrot.lane.b32.xlu0 %v664, 96
      %v668 = vpop.permute.xlu0 %667
      %v670 = vmul.f32 %v665, %v668
      %v671 = vmul.f32 %v652, %v607
      %v672 = vadd.f32 %v670, %v671
      %674 = vrot.lane.b32.xlu0 %v672, 96
      %v675 = vpop.permute.xlu0 %674
      %v676 = vsel %vm353, %v675, 0
      %678 = vmatpush.msra.mxu0 0.0
      %679 = vmatpush.msra.mxu0 0.0
      %680 = vmatpush.msra.mxu0 0.0
      %681 = vmatpush.msra.mxu0 0.0
      %682 = vmatpush.msra.mxu0 0.0
      %683 = vmatpush.msra.mxu0 0.0
      %684 = vmatpush.msra.mxu0 0.0
      %685 = vmatpush.msra.mxu0 0.0
      %686 = vmatpush.msra.mxu0 0.0
      %687 = vmatpush.msra.mxu0 0.0
      %688 = vmatpush.msra.mxu0 0.0
      %689 = vmatpush.msra.mxu0 0.0
      %690 = vmatpush.msra.mxu0 %v470
      %691 = vmatpush.msra.mxu0 %v469
      %692 = vmatpush.msra.mxu0 %v468
      %693 = vmatpush.msra.mxu0 %v467
      %694 = vmatmul.f32.gmra.mxu0 %v676
      %v695 = vpop.f32.mrf.mxu0
      %v696 = vadd.f32 0.0, %v695
      %697 = vdwg.mxu0
      %v698 = vadd.f32 %v429, %v696
      %v699 = vxor.u32 %v698, 2147483648
      %v700 = vmul.f32 %v699, 1.442695
      %v701 = vpow.pop %v700
      %v702 = vadd.f32 %v701, 1.0
      %v703 = vrcp.pop %v702
      %v704 = vmul.f32 %v702, %v703
      %v705 = vsub.f32 1.0, %v704
      %v706 = vmul.f32 %v703, %v705
      %v707 = vadd.f32 %v703, %v706
      %vm708 = vweird.f32 %v702
      %vm709 = vweird.f32 %v703
      %vm710 = vmor %vm708, %vm709
      %v711 = vsel %vm710, %v703, %v707
      %v712 = vand.u32 2147483647, %v702
      %vm713 = vcmp.eq.f32.partialorder %v712, 8.507059e+37
      %v714 = vand.u32 %v702, 2147483648
      %v715 = vor.u32 1.1754944e-38, %v714
      %v716 = vsel %vm713, %v715, %v711
      %v717 = vmul.f32 1.0, %v716
      %v718 = vadd.f32 %v696, %v518
      %720 = vrot.lane.b32.xlu0 %v718, 64
      %v721 = vpop.permute.xlu0 %720
      %v723 = vmul.f32 %v717, %v721
      %725 = vrot.lane.b32.xlu0 %v723, 64
      %v726 = vpop.permute.xlu0 %725
      %v728 = vadd.f32 %v429, %v726
      %v729 = vtanh.pop %v728
      %v730 = vsub.f32 1.0, %v717
      %732 = vrot.lane.b32.xlu0 %v729, 96
      %v733 = vpop.permute.xlu0 %732
      %v735 = vmul.f32 %v730, %v733
      %v736 = vmul.f32 %v717, %v672
      %v737 = vadd.f32 %v735, %v736
      %739 = vrot.lane.b32.xlu0 %v737, 96
      %v740 = vpop.permute.xlu0 %739
      %v741 = vsel %vm353, %v740, 0
      %743 = vmatpush.msra.mxu0 0.0
      %744 = vmatpush.msra.mxu0 0.0
      %745 = vmatpush.msra.mxu0 0.0
      %746 = vmatpush.msra.mxu0 0.0
      %747 = vmatpush.msra.mxu0 0.0
      %748 = vmatpush.msra.mxu0 0.0
      %749 = vmatpush.msra.mxu0 0.0
      %750 = vmatpush.msra.mxu0 0.0
      %751 = vmatpush.msra.mxu0 0.0
      %752 = vmatpush.msra.mxu0 0.0
      %753 = vmatpush.msra.mxu0 0.0
      %754 = vmatpush.msra.mxu0 0.0
      %755 = vmatpush.msra.mxu0 %v470
      %756 = vmatpush.msra.mxu0 %v469
      %757 = vmatpush.msra.mxu0 %v468
      %758 = vmatpush.msra.mxu0 %v467
      %759 = vmatmul.f32.gmra.mxu0 %v741
      %v760 = vpop.f32.mrf.mxu0
      %v761 = vadd.f32 0.0, %v760
      %762 = vdwg.mxu0
      %v763 = vadd.f32 %v432, %v761
      %v764 = vxor.u32 %v763, 2147483648
      %v765 = vmul.f32 %v764, 1.442695
      %v766 = vpow.pop %v765
      %v767 = vadd.f32 %v766, 1.0
      %v768 = vrcp.pop %v767
      %v769 = vmul.f32 %v767, %v768
      %v770 = vsub.f32 1.0, %v769
      %v771 = vmul.f32 %v768, %v770
      %v772 = vadd.f32 %v768, %v771
      %vm773 = vweird.f32 %v767
      %vm774 = vweird.f32 %v768
      %vm775 = vmor %vm773, %vm774
      %v776 = vsel %vm775, %v768, %v772
      %v777 = vand.u32 2147483647, %v767
      %vm778 = vcmp.eq.f32.partialorder %v777, 8.507059e+37
      %v779 = vand.u32 %v767, 2147483648
      %v780 = vor.u32 1.1754944e-38, %v779
      %v781 = vsel %vm778, %v780, %v776
      %v782 = vmul.f32 1.0, %v781
      %v783 = vadd.f32 %v761, %v518
      %785 = vrot.lane.b32.xlu0 %v783, 64
      %v786 = vpop.permute.xlu0 %785
      %v788 = vmul.f32 %v782, %v786
      %790 = vrot.lane.b32.xlu0 %v788, 64
      %v791 = vpop.permute.xlu0 %790
      %v793 = vadd.f32 %v432, %v791
      %v794 = vtanh.pop %v793
      %v795 = vsub.f32 1.0, %v782
      %797 = vrot.lane.b32.xlu0 %v794, 96
      %v798 = vpop.permute.xlu0 %797
      %v800 = vmul.f32 %v795, %v798
      %v801 = vmul.f32 %v782, %v737
      %v802 = vadd.f32 %v800, %v801
      %804 = vrot.lane.b32.xlu0 %v802, 96
      %v805 = vpop.permute.xlu0 %804
      %v806 = vsel %vm353, %v805, 0
      %808 = vmatpush.msra.mxu0 0.0
      %809 = vmatpush.msra.mxu0 0.0
      %810 = vmatpush.msra.mxu0 0.0
      %811 = vmatpush.msra.mxu0 0.0
      %812 = vmatpush.msra.mxu0 0.0
      %813 = vmatpush.msra.mxu0 0.0
      %814 = vmatpush.msra.mxu0 0.0
      %815 = vmatpush.msra.mxu0 0.0
      %816 = vmatpush.msra.mxu0 0.0
      %817 = vmatpush.msra.mxu0 0.0
      %818 = vmatpush.msra.mxu0 0.0
      %819 = vmatpush.msra.mxu0 0.0
      %820 = vmatpush.msra.mxu0 %v470
      %821 = vmatpush.msra.mxu0 %v469
      %822 = vmatpush.msra.mxu0 %v468
      %823 = vmatpush.msra.mxu0 %v467
      %824 = vmatmul.f32.gmra.mxu0 %v806
      %v825 = vpop.f32.mrf.mxu0
      %v826 = vadd.f32 0.0, %v825
      %827 = vdwg.mxu0
      %v828 = vadd.f32 %v435, %v826
      %v829 = vxor.u32 %v828, 2147483648
      %v830 = vmul.f32 %v829, 1.442695
      %v831 = vpow.pop %v830
      %v832 = vadd.f32 %v831, 1.0
      %v833 = vrcp.pop %v832
      %v834 = vmul.f32 %v832, %v833
      %v835 = vsub.f32 1.0, %v834
      %v836 = vmul.f32 %v833, %v835
      %v837 = vadd.f32 %v833, %v836
      %vm838 = vweird.f32 %v832
      %vm839 = vweird.f32 %v833
      %vm840 = vmor %vm838, %vm839
      %v841 = vsel %vm840, %v833, %v837
      %v842 = vand.u32 2147483647, %v832
      %vm843 = vcmp.eq.f32.partialorder %v842, 8.507059e+37
      %v844 = vand.u32 %v832, 2147483648
      %v845 = vor.u32 1.1754944e-38, %v844
      %v846 = vsel %vm843, %v845, %v841
      %v847 = vmul.f32 1.0, %v846
      %v848 = vadd.f32 %v826, %v518
      %850 = vrot.lane.b32.xlu0 %v848, 64
      %v851 = vpop.permute.xlu0 %850
      %v853 = vmul.f32 %v847, %v851
      %855 = vrot.lane.b32.xlu0 %v853, 64
      %v856 = vpop.permute.xlu0 %855
      %v858 = vadd.f32 %v435, %v856
      %v859 = vtanh.pop %v858
      %v860 = vsub.f32 1.0, %v847
      %862 = vrot.lane.b32.xlu0 %v859, 96
      %v863 = vpop.permute.xlu0 %862
      %v865 = vmul.f32 %v860, %v863
      %v866 = vmul.f32 %v847, %v802
      %v867 = vadd.f32 %v865, %v866
      %869 = vrot.lane.b32.xlu0 %v867, 96
      %v870 = vpop.permute.xlu0 %869
      %v871 = vsel %vm353, %v870, 0
      %873 = vmatpush.msra.mxu0 0.0
      %874 = vmatpush.msra.mxu0 0.0
      %875 = vmatpush.msra.mxu0 0.0
      %876 = vmatpush.msra.mxu0 0.0
      %877 = vmatpush.msra.mxu0 0.0
      %878 = vmatpush.msra.mxu0 0.0
      %879 = vmatpush.msra.mxu0 0.0
      %880 = vmatpush.msra.mxu0 0.0
      %881 = vmatpush.msra.mxu0 0.0
      %882 = vmatpush.msra.mxu0 0.0
      %883 = vmatpush.msra.mxu0 0.0
      %884 = vmatpush.msra.mxu0 0.0
      %885 = vmatpush.msra.mxu0 %v470
      %886 = vmatpush.msra.mxu0 %v469
      %887 = vmatpush.msra.mxu0 %v468
      %888 = vmatpush.msra.mxu0 %v467
      %889 = vmatmul.f32.gmra.mxu0 %v871
      %v890 = vpop.f32.mrf.mxu0
      %v891 = vadd.f32 0.0, %v890
      %892 = vdwg.mxu0
      %v893 = vadd.f32 %v438, %v891
      %v894 = vxor.u32 %v893, 2147483648
      %v895 = vmul.f32 %v894, 1.442695
      %v896 = vpow.pop %v895
      %v897 = vadd.f32 %v896, 1.0
      %v898 = vrcp.pop %v897
      %v899 = vmul.f32 %v897, %v898
      %v900 = vsub.f32 1.0, %v899
      %v901 = vmul.f32 %v898, %v900
      %v902 = vadd.f32 %v898, %v901
      %vm903 = vweird.f32 %v897
      %vm904 = vweird.f32 %v898
      %vm905 = vmor %vm903, %vm904
      %v906 = vsel %vm905, %v898, %v902
      %v907 = vand.u32 2147483647, %v897
      %vm908 = vcmp.eq.f32.partialorder %v907, 8.507059e+37
      %v909 = vand.u32 %v897, 2147483648
      %v910 = vor.u32 1.1754944e-38, %v909
      %v911 = vsel %vm908, %v910, %v906
      %v912 = vmul.f32 1.0, %v911
      %v913 = vadd.f32 %v891, %v518
      %915 = vrot.lane.b32.xlu0 %v913, 64
      %v916 = vpop.permute.xlu0 %915
      %v918 = vmul.f32 %v912, %v916
      %920 = vrot.lane.b32.xlu0 %v918, 64
      %v921 = vpop.permute.xlu0 %920
      %v923 = vadd.f32 %v438, %v921
      %v924 = vtanh.pop %v923
      %v925 = vsub.f32 1.0, %v912
      %927 = vrot.lane.b32.xlu0 %v924, 96
      %v928 = vpop.permute.xlu0 %927
      %v930 = vmul.f32 %v925, %v928
      %v931 = vmul.f32 %v912, %v867
      %v932 = vadd.f32 %v930, %v931
      %934 = vrot.lane.b32.xlu0 %v932, 96
      %v935 = vpop.permute.xlu0 %934
      %v936 = vsel %vm353, %v935, 0
      %938 = vmatpush.msra.mxu0 0.0
      %939 = vmatpush.msra.mxu0 0.0
      %940 = vmatpush.msra.mxu0 0.0
      %941 = vmatpush.msra.mxu0 0.0
      %942 = vmatpush.msra.mxu0 0.0
      %943 = vmatpush.msra.mxu0 0.0
      %944 = vmatpush.msra.mxu0 0.0
      %945 = vmatpush.msra.mxu0 0.0
      %946 = vmatpush.msra.mxu0 0.0
      %947 = vmatpush.msra.mxu0 0.0
      %948 = vmatpush.msra.mxu0 0.0
      %949 = vmatpush.msra.mxu0 0.0
      %950 = vmatpush.msra.mxu0 %v470
      %951 = vmatpush.msra.mxu0 %v469
      %952 = vmatpush.msra.mxu0 %v468
      %953 = vmatpush.msra.mxu0 %v467
      %954 = vmatmul.f32.gmra.mxu0 %v936
      %v955 = vpop.f32.mrf.mxu0
      %v956 = vadd.f32 0.0, %v955
      %957 = vdwg.mxu0
      %v958 = vadd.f32 %v441, %v956
      %v959 = vxor.u32 %v958, 2147483648
      %v960 = vmul.f32 %v959, 1.442695
      %v961 = vpow.pop %v960
      %v962 = vadd.f32 %v961, 1.0
      %v963 = vrcp.pop %v962
      %v964 = vmul.f32 %v962, %v963
      %v965 = vsub.f32 1.0, %v964
      %v966 = vmul.f32 %v963, %v965
      %v967 = vadd.f32 %v963, %v966
      %vm968 = vweird.f32 %v962
      %vm969 = vweird.f32 %v963
      %vm970 = vmor %vm968, %vm969
      %v971 = vsel %vm970, %v963, %v967
      %v972 = vand.u32 2147483647, %v962
      %vm973 = vcmp.eq.f32.partialorder %v972, 8.507059e+37
      %v974 = vand.u32 %v962, 2147483648
      %v975 = vor.u32 1.1754944e-38, %v974
      %v976 = vsel %vm973, %v975, %v971
      %v977 = vmul.f32 1.0, %v976
      %v978 = vadd.f32 %v956, %v518
      %980 = vrot.lane.b32.xlu0 %v978, 64
      %v981 = vpop.permute.xlu0 %980
      %v983 = vmul.f32 %v977, %v981
      %985 = vrot.lane.b32.xlu0 %v983, 64
      %v986 = vpop.permute.xlu0 %985
      %v988 = vadd.f32 %v441, %v986
      %v989 = vtanh.pop %v988
      %v990 = vsub.f32 1.0, %v977
      %992 = vrot.lane.b32.xlu0 %v989, 96
      %v993 = vpop.permute.xlu0 %992
      %v995 = vmul.f32 %v990, %v993
      %v996 = vmul.f32 %v977, %v932
      %v997 = vadd.f32 %v995, %v996
      %999 = vrot.lane.b32.xlu0 %v997, 96
      %v1000 = vpop.permute.xlu0 %999
      %v1001 = vsel %vm353, %v1000, 0
      %1003 = vmatpush.msra.mxu0 0.0
      %1004 = vmatpush.msra.mxu0 0.0
      %1005 = vmatpush.msra.mxu0 0.0
      %1006 = vmatpush.msra.mxu0 0.0
      %1007 = vmatpush.msra.mxu0 0.0
      %1008 = vmatpush.msra.mxu0 0.0
      %1009 = vmatpush.msra.mxu0 0.0
      %1010 = vmatpush.msra.mxu0 0.0
      %1011 = vmatpush.msra.mxu0 0.0
      %1012 = vmatpush.msra.mxu0 0.0
      %1013 = vmatpush.msra.mxu0 0.0
      %1014 = vmatpush.msra.mxu0 0.0
      %1015 = vmatpush.msra.mxu0 %v470
      %1016 = vmatpush.msra.mxu0 %v469
      %1017 = vmatpush.msra.mxu0 %v468
      %1018 = vmatpush.msra.mxu0 %v467
      %1019 = vmatmul.f32.gmra.mxu0 %v1001
      %v1020 = vpop.f32.mrf.mxu0
      %v1021 = vadd.f32 0.0, %v1020
      %1022 = vdwg.mxu0
      %v1023 = vadd.f32 %v444, %v1021
      %v1024 = vxor.u32 %v1023, 2147483648
      %v1025 = vmul.f32 %v1024, 1.442695
      %v1026 = vpow.pop %v1025
      %v1027 = vadd.f32 %v1026, 1.0
      %v1028 = vrcp.pop %v1027
      %v1029 = vmul.f32 %v1027, %v1028
      %v1030 = vsub.f32 1.0, %v1029
      %v1031 = vmul.f32 %v1028, %v1030
      %v1032 = vadd.f32 %v1028, %v1031
      %vm1033 = vweird.f32 %v1027
      %vm1034 = vweird.f32 %v1028
      %vm1035 = vmor %vm1033, %vm1034
      %v1036 = vsel %vm1035, %v1028, %v1032
      %v1037 = vand.u32 2147483647, %v1027
      %vm1038 = vcmp.eq.f32.partialorder %v1037, 8.507059e+37
      %v1039 = vand.u32 %v1027, 2147483648
      %v1040 = vor.u32 1.1754944e-38, %v1039
      %v1041 = vsel %vm1038, %v1040, %v1036
      %v1042 = vmul.f32 1.0, %v1041
      %v1043 = vadd.f32 %v1021, %v518
      %1045 = vrot.lane.b32.xlu0 %v1043, 64
      %v1046 = vpop.permute.xlu0 %1045
      %v1048 = vmul.f32 %v1042, %v1046
      %1050 = vrot.lane.b32.xlu0 %v1048, 64
      %v1051 = vpop.permute.xlu0 %1050
      %v1053 = vadd.f32 %v444, %v1051
      %v1054 = vtanh.pop %v1053
      %v1055 = vsub.f32 1.0, %v1042
      %1057 = vrot.lane.b32.xlu0 %v1054, 96
      %v1058 = vpop.permute.xlu0 %1057
      %v1060 = vmul.f32 %v1055, %v1058
      %v1061 = vmul.f32 %v1042, %v997
      %v1062 = vadd.f32 %v1060, %v1061
      %1064 = vrot.lane.b32.xlu0 %v1062, 96
      %v1065 = vpop.permute.xlu0 %1064
      %v1066 = vsel %vm353, %v1065, 0
      %1068 = vmatpush.msra.mxu0 0.0
      %1069 = vmatpush.msra.mxu0 0.0
      %1070 = vmatpush.msra.mxu0 0.0
      %1071 = vmatpush.msra.mxu0 0.0
      %1072 = vmatpush.msra.mxu0 0.0
      %1073 = vmatpush.msra.mxu0 0.0
      %1074 = vmatpush.msra.mxu0 0.0
      %1075 = vmatpush.msra.mxu0 0.0
      %1076 = vmatpush.msra.mxu0 0.0
      %1077 = vmatpush.msra.mxu0 0.0
      %1078 = vmatpush.msra.mxu0 0.0
      %1079 = vmatpush.msra.mxu0 0.0
      %1080 = vmatpush.msra.mxu0 %v470
      %1081 = vmatpush.msra.mxu0 %v469
      %1082 = vmatpush.msra.mxu0 %v468
      %1083 = vmatpush.msra.mxu0 %v467
      %1084 = vmatmul.f32.gmra.mxu0 %v1066
      %v1085 = vpop.f32.mrf.mxu0
      %v1086 = vadd.f32 0.0, %v1085
      %1087 = vdwg.mxu0
      %v1088 = vadd.f32 %v447, %v1086
      %v1089 = vxor.u32 %v1088, 2147483648
      %v1090 = vmul.f32 %v1089, 1.442695
      %v1091 = vpow.pop %v1090
      %v1092 = vadd.f32 %v1091, 1.0
      %v1093 = vrcp.pop %v1092
      %v1094 = vmul.f32 %v1092, %v1093
      %v1095 = vsub.f32 1.0, %v1094
      %v1096 = vmul.f32 %v1093, %v1095
      %v1097 = vadd.f32 %v1093, %v1096
      %vm1098 = vweird.f32 %v1092
      %vm1099 = vweird.f32 %v1093
      %vm1100 = vmor %vm1098, %vm1099
      %v1101 = vsel %vm1100, %v1093, %v1097
      %v1102 = vand.u32 2147483647, %v1092
      %vm1103 = vcmp.eq.f32.partialorder %v1102, 8.507059e+37
      %v1104 = vand.u32 %v1092, 2147483648
      %v1105 = vor.u32 1.1754944e-38, %v1104
      %v1106 = vsel %vm1103, %v1105, %v1101
      %v1107 = vmul.f32 1.0, %v1106
      %v1108 = vadd.f32 %v1086, %v518
      %1110 = vrot.lane.b32.xlu0 %v1108, 64
      %v1111 = vpop.permute.xlu0 %1110
      %v1113 = vmul.f32 %v1107, %v1111
      %1115 = vrot.lane.b32.xlu0 %v1113, 64
      %v1116 = vpop.permute.xlu0 %1115
      %v1118 = vadd.f32 %v447, %v1116
      %v1119 = vtanh.pop %v1118
      %v1120 = vsub.f32 1.0, %v1107
      %1122 = vrot.lane.b32.xlu0 %v1119, 96
      %v1123 = vpop.permute.xlu0 %1122
      %v1125 = vmul.f32 %v1120, %v1123
      %v1126 = vmul.f32 %v1107, %v1062
      %v1127 = vadd.f32 %v1125, %v1126
      %1129 = vrot.lane.b32.xlu0 %v1127, 96
      %v1130 = vpop.permute.xlu0 %1129
      %v1131 = vsel %vm353, %v1130, 0
      %1133 = vmatpush.msra.mxu0 0.0
      %1134 = vmatpush.msra.mxu0 0.0
      %1135 = vmatpush.msra.mxu0 0.0
      %1136 = vmatpush.msra.mxu0 0.0
      %1137 = vmatpush.msra.mxu0 0.0
      %1138 = vmatpush.msra.mxu0 0.0
      %1139 = vmatpush.msra.mxu0 0.0
      %1140 = vmatpush.msra.mxu0 0.0
      %1141 = vmatpush.msra.mxu0 0.0
      %1142 = vmatpush.msra.mxu0 0.0
      %1143 = vmatpush.msra.mxu0 0.0
      %1144 = vmatpush.msra.mxu0 0.0
      %1145 = vmatpush.msra.mxu0 %v470
      %1146 = vmatpush.msra.mxu0 %v469
      %1147 = vmatpush.msra.mxu0 %v468
      %1148 = vmatpush.msra.mxu0 %v467
      %1149 = vmatmul.f32.gmra.mxu0 %v1131
      %v1150 = vpop.f32.mrf.mxu0
      %v1151 = vadd.f32 0.0, %v1150
      %1152 = vdwg.mxu0
      %v1153 = vadd.f32 %v450, %v1151
      %v1154 = vxor.u32 %v1153, 2147483648
      %v1155 = vmul.f32 %v1154, 1.442695
      %v1156 = vpow.pop %v1155
      %v1157 = vadd.f32 %v1156, 1.0
      %v1158 = vrcp.pop %v1157
      %v1159 = vmul.f32 %v1157, %v1158
      %v1160 = vsub.f32 1.0, %v1159
      %v1161 = vmul.f32 %v1158, %v1160
      %v1162 = vadd.f32 %v1158, %v1161
      %vm1163 = vweird.f32 %v1157
      %vm1164 = vweird.f32 %v1158
      %vm1165 = vmor %vm1163, %vm1164
      %v1166 = vsel %vm1165, %v1158, %v1162
      %v1167 = vand.u32 2147483647, %v1157
      %vm1168 = vcmp.eq.f32.partialorder %v1167, 8.507059e+37
      %v1169 = vand.u32 %v1157, 2147483648
      %v1170 = vor.u32 1.1754944e-38, %v1169
      %v1171 = vsel %vm1168, %v1170, %v1166
      %v1172 = vmul.f32 1.0, %v1171
      %v1173 = vadd.f32 %v1151, %v518
      %1175 = vrot.lane.b32.xlu0 %v1173, 64
      %v1176 = vpop.permute.xlu0 %1175
      %v1178 = vmul.f32 %v1172, %v1176
      %1180 = vrot.lane.b32.xlu0 %v1178, 64
      %v1181 = vpop.permute.xlu0 %1180
      %v1183 = vadd.f32 %v450, %v1181
      %v1184 = vtanh.pop %v1183
      %v1185 = vsub.f32 1.0, %v1172
      %1187 = vrot.lane.b32.xlu0 %v1184, 96
      %v1188 = vpop.permute.xlu0 %1187
      %v1190 = vmul.f32 %v1185, %v1188
      %v1191 = vmul.f32 %v1172, %v1127
      %v1192 = vadd.f32 %v1190, %v1191
      %1194 = vrot.lane.b32.xlu0 %v1192, 96
      %v1195 = vpop.permute.xlu0 %1194
      %v1196 = vsel %vm353, %v1195, 0
      %1198 = vmatpush.msra.mxu0 0.0
      %1199 = vmatpush.msra.mxu0 0.0
      %1200 = vmatpush.msra.mxu0 0.0
      %1201 = vmatpush.msra.mxu0 0.0
      %1202 = vmatpush.msra.mxu0 0.0
      %1203 = vmatpush.msra.mxu0 0.0
      %1204 = vmatpush.msra.mxu0 0.0
      %1205 = vmatpush.msra.mxu0 0.0
      %1206 = vmatpush.msra.mxu0 0.0
      %1207 = vmatpush.msra.mxu0 0.0
      %1208 = vmatpush.msra.mxu0 0.0
      %1209 = vmatpush.msra.mxu0 0.0
      %1210 = vmatpush.msra.mxu0 %v470
      %1211 = vmatpush.msra.mxu0 %v469
      %1212 = vmatpush.msra.mxu0 %v468
      %1213 = vmatpush.msra.mxu0 %v467
      %1214 = vmatmul.f32.gmra.mxu0 %v1196
      %v1215 = vpop.f32.mrf.mxu0
      %v1216 = vadd.f32 0.0, %v1215
      %1217 = vdwg.mxu0
      %v1218 = vadd.f32 %v453, %v1216
      %v1219 = vxor.u32 %v1218, 2147483648
      %v1220 = vmul.f32 %v1219, 1.442695
      %v1221 = vpow.pop %v1220
      %v1222 = vadd.f32 %v1221, 1.0
      %v1223 = vrcp.pop %v1222
      %v1224 = vmul.f32 %v1222, %v1223
      %v1225 = vsub.f32 1.0, %v1224
      %v1226 = vmul.f32 %v1223, %v1225
      %v1227 = vadd.f32 %v1223, %v1226
      %vm1228 = vweird.f32 %v1222
      %vm1229 = vweird.f32 %v1223
      %vm1230 = vmor %vm1228, %vm1229
      %v1231 = vsel %vm1230, %v1223, %v1227
      %v1232 = vand.u32 2147483647, %v1222
      %vm1233 = vcmp.eq.f32.partialorder %v1232, 8.507059e+37
      %v1234 = vand.u32 %v1222, 2147483648
      %v1235 = vor.u32 1.1754944e-38, %v1234
      %v1236 = vsel %vm1233, %v1235, %v1231
      %v1237 = vmul.f32 1.0, %v1236
      %v1238 = vadd.f32 %v1216, %v518
      %1240 = vrot.lane.b32.xlu0 %v1238, 64
      %v1241 = vpop.permute.xlu0 %1240
      %v1243 = vmul.f32 %v1237, %v1241
      %1245 = vrot.lane.b32.xlu0 %v1243, 64
      %v1246 = vpop.permute.xlu0 %1245
      %v1248 = vadd.f32 %v453, %v1246
      %v1249 = vtanh.pop %v1248
      %v1250 = vsub.f32 1.0, %v1237
      %1252 = vrot.lane.b32.xlu0 %v1249, 96
      %v1253 = vpop.permute.xlu0 %1252
      %v1255 = vmul.f32 %v1250, %v1253
      %v1256 = vmul.f32 %v1237, %v1192
      %v1257 = vadd.f32 %v1255, %v1256
      %1259 = vrot.lane.b32.xlu0 %v1257, 96
      %v1260 = vpop.permute.xlu0 %1259
      %v1261 = vsel %vm353, %v1260, 0
      %1263 = vmatpush.msra.mxu0 0.0
      %1264 = vmatpush.msra.mxu0 0.0
      %1265 = vmatpush.msra.mxu0 0.0
      %1266 = vmatpush.msra.mxu0 0.0
      %1267 = vmatpush.msra.mxu0 0.0
      %1268 = vmatpush.msra.mxu0 0.0
      %1269 = vmatpush.msra.mxu0 0.0
      %1270 = vmatpush.msra.mxu0 0.0
      %1271 = vmatpush.msra.mxu0 0.0
      %1272 = vmatpush.msra.mxu0 0.0
      %1273 = vmatpush.msra.mxu0 0.0
      %1274 = vmatpush.msra.mxu0 0.0
      %1275 = vmatpush.msra.mxu0 %v470
      %1276 = vmatpush.msra.mxu0 %v469
      %1277 = vmatpush.msra.mxu0 %v468
      %1278 = vmatpush.msra.mxu0 %v467
      %1279 = vmatmul.f32.gmra.mxu0 %v1261
      %v1280 = vpop.f32.mrf.mxu0
      %v1281 = vadd.f32 0.0, %v1280
      %1282 = vdwg.mxu0
      %v1283 = vadd.f32 %v456, %v1281
      %v1284 = vxor.u32 %v1283, 2147483648
      %v1285 = vmul.f32 %v1284, 1.442695
      %v1286 = vpow.pop %v1285
      %v1287 = vadd.f32 %v1286, 1.0
      %v1288 = vrcp.pop %v1287
      %v1289 = vmul.f32 %v1287, %v1288
      %v1290 = vsub.f32 1.0, %v1289
      %v1291 = vmul.f32 %v1288, %v1290
      %v1292 = vadd.f32 %v1288, %v1291
      %vm1293 = vweird.f32 %v1287
      %vm1294 = vweird.f32 %v1288
      %vm1295 = vmor %vm1293, %vm1294
      %v1296 = vsel %vm1295, %v1288, %v1292
      %v1297 = vand.u32 2147483647, %v1287
      %vm1298 = vcmp.eq.f32.partialorder %v1297, 8.507059e+37
      %v1299 = vand.u32 %v1287, 2147483648
      %v1300 = vor.u32 1.1754944e-38, %v1299
      %v1301 = vsel %vm1298, %v1300, %v1296
      %v1302 = vmul.f32 1.0, %v1301
      %v1303 = vadd.f32 %v1281, %v518
      %1305 = vrot.lane.b32.xlu0 %v1303, 64
      %v1306 = vpop.permute.xlu0 %1305
      %v1308 = vmul.f32 %v1302, %v1306
      %1310 = vrot.lane.b32.xlu0 %v1308, 64
      %v1311 = vpop.permute.xlu0 %1310
      %v1313 = vadd.f32 %v456, %v1311
      %v1314 = vtanh.pop %v1313
      %v1315 = vsub.f32 1.0, %v1302
      %1317 = vrot.lane.b32.xlu0 %v1314, 96
      %v1318 = vpop.permute.xlu0 %1317
      %v1320 = vmul.f32 %v1315, %v1318
      %v1321 = vmul.f32 %v1302, %v1257
      %v1322 = vadd.f32 %v1320, %v1321
      %1324 = vrot.lane.b32.xlu0 %v1322, 96
      %v1325 = vpop.permute.xlu0 %1324
      %v1326 = vsel %vm353, %v1325, 0
      %1328 = vmatpush.msra.mxu0 0.0
      %1329 = vmatpush.msra.mxu0 0.0
      %1330 = vmatpush.msra.mxu0 0.0
      %1331 = vmatpush.msra.mxu0 0.0
      %1332 = vmatpush.msra.mxu0 0.0
      %1333 = vmatpush.msra.mxu0 0.0
      %1334 = vmatpush.msra.mxu0 0.0
      %1335 = vmatpush.msra.mxu0 0.0
      %1336 = vmatpush.msra.mxu0 0.0
      %1337 = vmatpush.msra.mxu0 0.0
      %1338 = vmatpush.msra.mxu0 0.0
      %1339 = vmatpush.msra.mxu0 0.0
      %1340 = vmatpush.msra.mxu0 %v470
      %1341 = vmatpush.msra.mxu0 %v469
      %1342 = vmatpush.msra.mxu0 %v468
      %1343 = vmatpush.msra.mxu0 %v467
      %1344 = vmatmul.f32.gmra.mxu0 %v1326
      %v1345 = vpop.f32.mrf.mxu0
      %v1346 = vadd.f32 0.0, %v1345
      %1347 = vdwg.mxu0
      %v1348 = vadd.f32 %v459, %v1346
      %v1349 = vxor.u32 %v1348, 2147483648
      %v1350 = vmul.f32 %v1349, 1.442695
      %v1351 = vpow.pop %v1350
      %v1352 = vadd.f32 %v1351, 1.0
      %v1353 = vrcp.pop %v1352
      %v1354 = vmul.f32 %v1352, %v1353
      %v1355 = vsub.f32 1.0, %v1354
      %v1356 = vmul.f32 %v1353, %v1355
      %v1357 = vadd.f32 %v1353, %v1356
      %vm1358 = vweird.f32 %v1352
      %vm1359 = vweird.f32 %v1353
      %vm1360 = vmor %vm1358, %vm1359
      %v1361 = vsel %vm1360, %v1353, %v1357
      %v1362 = vand.u32 2147483647, %v1352
      %vm1363 = vcmp.eq.f32.partialorder %v1362, 8.507059e+37
      %v1364 = vand.u32 %v1352, 2147483648
      %v1365 = vor.u32 1.1754944e-38, %v1364
      %v1366 = vsel %vm1363, %v1365, %v1361
      %v1367 = vmul.f32 1.0, %v1366
      %v1368 = vadd.f32 %v1346, %v518
      %1370 = vrot.lane.b32.xlu0 %v1368, 64
      %v1371 = vpop.permute.xlu0 %1370
      %v1373 = vmul.f32 %v1367, %v1371
      %1375 = vrot.lane.b32.xlu0 %v1373, 64
      %v1376 = vpop.permute.xlu0 %1375
      %v1378 = vadd.f32 %v459, %v1376
      %v1379 = vtanh.pop %v1378
      %v1380 = vsub.f32 1.0, %v1367
      %1382 = vrot.lane.b32.xlu0 %v1379, 96
      %v1383 = vpop.permute.xlu0 %1382
      %v1385 = vmul.f32 %v1380, %v1383
      %v1386 = vmul.f32 %v1367, %v1322
      %v1387 = vadd.f32 %v1385, %v1386
      %1389 = vrot.lane.b32.xlu0 %v1387, 96
      %v1390 = vpop.permute.xlu0 %1389
      %v1391 = vsel %vm353, %v1390, 0
      %1393 = vmatpush.msra.mxu0 0.0
      %1394 = vmatpush.msra.mxu0 0.0
      %1395 = vmatpush.msra.mxu0 0.0
      %1396 = vmatpush.msra.mxu0 0.0
      %1397 = vmatpush.msra.mxu0 0.0
      %1398 = vmatpush.msra.mxu0 0.0
      %1399 = vmatpush.msra.mxu0 0.0
      %1400 = vmatpush.msra.mxu0 0.0
      %1401 = vmatpush.msra.mxu0 0.0
      %1402 = vmatpush.msra.mxu0 0.0
      %1403 = vmatpush.msra.mxu0 0.0
      %1404 = vmatpush.msra.mxu0 0.0
      %1405 = vmatpush.msra.mxu0 %v470
      %1406 = vmatpush.msra.mxu0 %v469
      %1407 = vmatpush.msra.mxu0 %v468
      %1408 = vmatpush.msra.mxu0 %v467
      %1409 = vmatmul.f32.gmra.mxu0 %v1391
      %v1410 = vpop.f32.mrf.mxu0
      %v1411 = vadd.f32 0.0, %v1410
      %1412 = vdwg.mxu0
      %v1413 = vadd.f32 %v462, %v1411
      %v1414 = vxor.u32 %v1413, 2147483648
      %v1415 = vmul.f32 %v1414, 1.442695
      %v1416 = vpow.pop %v1415
      %v1417 = vadd.f32 %v1416, 1.0
      %v1418 = vrcp.pop %v1417
      %v1419 = vmul.f32 %v1417, %v1418
      %v1420 = vsub.f32 1.0, %v1419
      %v1421 = vmul.f32 %v1418, %v1420
      %v1422 = vadd.f32 %v1418, %v1421
      %vm1423 = vweird.f32 %v1417
      %vm1424 = vweird.f32 %v1418
      %vm1425 = vmor %vm1423, %vm1424
      %v1426 = vsel %vm1425, %v1418, %v1422
      %v1427 = vand.u32 2147483647, %v1417
      %vm1428 = vcmp.eq.f32.partialorder %v1427, 8.507059e+37
      %v1429 = vand.u32 %v1417, 2147483648
      %v1430 = vor.u32 1.1754944e-38, %v1429
      %v1431 = vsel %vm1428, %v1430, %v1426
      %v1432 = vmul.f32 1.0, %v1431
      %v1433 = vadd.f32 %v1411, %v518
      %1435 = vrot.lane.b32.xlu0 %v1433, 64
      %v1436 = vpop.permute.xlu0 %1435
      %v1438 = vmul.f32 %v1432, %v1436
      %1440 = vrot.lane.b32.xlu0 %v1438, 64
      %v1441 = vpop.permute.xlu0 %1440
      %v1443 = vadd.f32 %v462, %v1441
      %v1444 = vtanh.pop %v1443
      %v1445 = vsub.f32 1.0, %v1432
      %1447 = vrot.lane.b32.xlu0 %v1444, 96
      %v1448 = vpop.permute.xlu0 %1447
      %v1450 = vmul.f32 %v1445, %v1448
      %v1451 = vmul.f32 %v1432, %v1387
      %v1452 = vadd.f32 %v1450, %v1451
      %1454 = vrot.lane.b32.xlu0 %v1452, 96
      %v1455 = vpop.permute.xlu0 %1454
      %v1456 = vsel %vm353, %v1455, 0
      %1458 = vmatpush.msra.mxu0 0.0
      %1459 = vmatpush.msra.mxu0 0.0
      %1460 = vmatpush.msra.mxu0 0.0
      %1461 = vmatpush.msra.mxu0 0.0
      %1462 = vmatpush.msra.mxu0 0.0
      %1463 = vmatpush.msra.mxu0 0.0
      %1464 = vmatpush.msra.mxu0 0.0
      %1465 = vmatpush.msra.mxu0 0.0
      %1466 = vmatpush.msra.mxu0 0.0
      %1467 = vmatpush.msra.mxu0 0.0
      %1468 = vmatpush.msra.mxu0 0.0
      %1469 = vmatpush.msra.mxu0 0.0
      %1470 = vmatpush.msra.mxu0 %v470
      %1471 = vmatpush.msra.mxu0 %v469
      %1472 = vmatpush.msra.mxu0 %v468
      %1473 = vmatpush.msra.mxu0 %v467
      %1474 = vmatmul.f32.gmra.mxu0 %v1456
      %v1475 = vpop.f32.mrf.mxu0
      %v1476 = vadd.f32 0.0, %v1475
      %1477 = vdwg.mxu0
      %v1478 = vadd.f32 %v465, %v1476
      %v1479 = vxor.u32 %v1478, 2147483648
      %v1480 = vmul.f32 %v1479, 1.442695
      %v1481 = vpow.pop %v1480
      %v1482 = vadd.f32 %v1481, 1.0
      %v1483 = vrcp.pop %v1482
      %v1484 = vmul.f32 %v1482, %v1483
      %v1485 = vsub.f32 1.0, %v1484
      %v1486 = vmul.f32 %v1483, %v1485
      %v1487 = vadd.f32 %v1483, %v1486
      %vm1488 = vweird.f32 %v1482
      %vm1489 = vweird.f32 %v1483
      %vm1490 = vmor %vm1488, %vm1489
      %v1491 = vsel %vm1490, %v1483, %v1487
      %v1492 = vand.u32 2147483647, %v1482
      %vm1493 = vcmp.eq.f32.partialorder %v1492, 8.507059e+37
      %v1494 = vand.u32 %v1482, 2147483648
      %v1495 = vor.u32 1.1754944e-38, %v1494
      %v1496 = vsel %vm1493, %v1495, %v1491
      %v1497 = vmul.f32 1.0, %v1496
      %v1498 = vadd.f32 %v1476, %v518
      %1500 = vrot.lane.b32.xlu0 %v1498, 64
      %v1501 = vpop.permute.xlu0 %1500
      %v1503 = vmul.f32 %v1497, %v1501
      %1505 = vrot.lane.b32.xlu0 %v1503, 64
      %v1506 = vpop.permute.xlu0 %1505
      %v1508 = vadd.f32 %v465, %v1506
      %v1509 = vtanh.pop %v1508
      %v1510 = vsub.f32 1.0, %v1497
      %1512 = vrot.lane.b32.xlu0 %v1509, 96
      %v1513 = vpop.permute.xlu0 %1512
      %v1515 = vmul.f32 %v1510, %v1513
      %v1516 = vmul.f32 %v1497, %v1452
      %v1517 = vadd.f32 %v1515, %v1516
      %1519 = vrot.lane.b32.xlu0 %v1517, 96
      %v1520 = vpop.permute.xlu0 %1519
      %1522 = vst.msk [vmem:[#allocation2] sm:$0xff] %vm353, %v1520
      %p1523 = scmp.eq.s32.totalorder %s22, 1
      // Predicated region
      $region61: #{hal_gru_forward.3} parent=55 // pred_check
        %p1524 = pneg %p1523
      $region62: #{hal_gru_forward.3} parent=55 // pred_check_branch
        %1526 = sbr.rel (%p1524) target = $region64
      $region63: #{hal_gru_forward.3} parent=55 // pred_region
        %v1527 = vld [vmem:[%s5] sm:$0xff]
        %v1528 = vld [vmem:[%s5 + $0x8] sm:$0xff]
        %v1529 = vld [vmem:[%s5 + $0x10] sm:$0xff]
        %v1530 = vld [vmem:[%s5 + $0x18] sm:$0xff]
        %v1531 = vld [vmem:[%s6] sm:$0x1]
        %v1533 = vperm.slane %v1531, 0
        %v1535 = vsel %vm353, %v1520, 0
        %1537 = vmatpush.msra.mxu0 0.0
        %1538 = vmatpush.msra.mxu0 0.0
        %1539 = vmatpush.msra.mxu0 0.0
        %1540 = vmatpush.msra.mxu0 0.0
        %1541 = vmatpush.msra.mxu0 0.0
        %1542 = vmatpush.msra.mxu0 0.0
        %1543 = vmatpush.msra.mxu0 0.0
        %1544 = vmatpush.msra.mxu0 0.0
        %1545 = vmatpush.msra.mxu0 0.0
        %1546 = vmatpush.msra.mxu0 0.0
        %1547 = vmatpush.msra.mxu0 0.0
        %1548 = vmatpush.msra.mxu0 0.0
        %1549 = vmatpush.msra.mxu0 %v1530
        %1550 = vmatpush.msra.mxu0 %v1529
        %1551 = vmatpush.msra.mxu0 %v1528
        %1552 = vmatpush.msra.mxu0 %v1527
        %1553 = vmatmul.f32.gmra.mxu0 %v1535
        %v1554 = vpop.f32.mrf.mxu0
        %v1555 = vadd.f32 %v1533, %v1554
        %1556 = vdwg.mxu0
        %v1557 = vld [vmem:[%s7] sm:$0x1f]
        %v1558 = vld [vmem:[#allocation3] sm:$0x1]
        %v1560 = vperm.slane %v1558, 0
        %vm1562 = vcmask 39936
        %v1564 = vsel %vm1562, %v1555, 0
        %vm1566 = vcmask 1044480
        %v1568 = vsel %vm1566, %v1557, 0
        %1570 = vmatpush.msra.mxu0 0.0
        %1571 = vmatpush.msra.mxu0 0.0
        %1572 = vmatpush.msra.mxu0 0.0
        %1573 = vmatpush.msra.mxu0 0.0
        %1574 = vmatpush.msra.mxu0 0.0
        %1575 = vmatpush.msra.mxu0 0.0
        %1576 = vmatpush.msra.mxu0 0.0
        %1577 = vmatpush.msra.mxu0 0.0
        %1578 = vmatpush.msra.mxu0 0.0
        %1579 = vmatpush.msra.mxu0 0.0
        %1580 = vmatpush.msra.mxu0 0.0
        %1581 = vmatpush.msra.mxu0 0.0
        %1582 = vmatpush.msra.mxu0 0.0
        %1583 = vmatpush.msra.mxu0 0.0
        %1584 = vmatpush.msra.mxu0 0.0
        %1585 = vmatpush.msra.mxu0 %v1568
        %1586 = vmatmul.f32.gmra.mxu0 %v1564
        %v1587 = vpop.f32.mrf.mxu0
        %v1588 = vadd.f32 %v1560, %v1587
        %1589 = vdwg.mxu0
        %vm1590 = vcmask 7168
        %1591 = vst.msk [vmem:[%s9] sm:$0xff] %vm1590, %v1588
      $region64: #{hal_gru_forward.3} parent=55 // pred_fallthru
        _
      // Predicated region
      $region65: #{hal_gru_forward.3} parent=55 // pred_check
        %p1592 = pneg %p229
      $region66: #{hal_gru_forward.3} parent=55 // pred_check_branch
        %1594 = sbr.rel (%p1592) target = $region68
      $region67: #{hal_gru_forward.3} parent=55 // pred_region
        _
      $region68: #{hal_gru_forward.3} parent=55 // pred_fallthru
        _
      // Predicated region
      $region69: #{hal_gru_forward.3} parent=55 // pred_check
        %p1595 = pneg %p229
      $region70: #{hal_gru_forward.3} parent=55 // pred_check_branch
        %1597 = sbr.rel (%p1595) target = $region72
      $region71: #{hal_gru_forward.3} parent=55 // pred_region
        _
      $region72: #{hal_gru_forward.3} parent=55 // pred_fallthru
        _
    $region56: #{hal_gru_forward.3} parent=5 // pred_fallthru
      _
    %p1598 = scmp.le.s32.totalorder 2, %s17
    // Predicated region
    $region73: #{hal_gru_forward.3} parent=5 // pred_check
      %p1599 = pneg %p1598
    $region74: #{hal_gru_forward.3} parent=5 // pred_check_branch
      %1601 = sbr.rel (%p1599) target = $region76
    $region75: #{hal_gru_forward.3} parent=5 // pred_region
      %s1602 = ssub.s32 %s17, 2
    $region76: #{hal_gru_forward.3} parent=5 // pred_fallthru
      _
  $region6: #{hal_gru_forward.3} parent=0 // loop_footer
    %s21 = sadd.s32 1, %s17
  $region7: #{hal_gru_forward.3} parent=0 // loop_footer_branch
    %16 = sbr.rel target = $region3
  $region8: #{hal_gru_forward.3} parent=0 // loop_exit
    _

// kernel: hal_gru_forward.2
$region0: #{hal_gru_forward.2}
  #allocation0 [shape = 'u32[]', space=smem, size = 0x4, offset = 0x4, fixed_abs, tag = 'smem constant byte address 0x4 - core index']
  #allocation1 [shape = 'u32[72,128]{1,0:T(1,128)}', space=vmem, size = 0x9000, scoped, tag = 'internal scratch']
  #allocation2 [shape = 'f32[8,32]{1,0:T(8,128)}', space=vmem, size = 0x1000, scoped, tag = 'scratch operand']
  %s0 = inlined_call_operand.vmem [shape: f32[32,8,16], index: 0, kind: input, shape index: {}]
  %s1 = inlined_call_operand.vmem [shape: f32[16,96], index: 1, kind: input, shape index: {}]
  %s2 = inlined_call_operand.vmem [shape: f32[1,96], index: 2, kind: input, shape index: {}]
  %s3 = inlined_call_operand.vmem [shape: f32[32,96], index: 3, kind: input, shape index: {}]
  %s4 = inlined_call_operand.vmem [shape: f32[1,32], index: 4, kind: input, shape index: {}]
  %s5 = inlined_call_operand.vmem [shape: f32[32,8,32], index: 5, kind: output, shape index: {}]
  %s6 = sld [smem:[#allocation0]]
  $region57: #{hal_gru_forward.2} parent=0
    _
  %s8 = ssub.s32 1, %s6
  %s9 = scalar_select 0, %s8, %s6
  loop: start=0, step=1, limit=4
  $region2: #{hal_gru_forward.2} parent=0 // loop_pre_header
    _
  $region3: #{hal_gru_forward.2} parent=0 // loop_header
    %s11 = sphi 0, %s15
    %p12 = scmp.ge.s32.totalorder %s11, 4
    %s21 = sphi 0, %s23
    %s24 = sphi 0, %s21
    %s25 = sphi 0, %s24
    %s41 = sphi 0, %s25
    %s45 = sphi 0, %s45
    %s47 = sphi 0, %s45
    %s48 = sphi 0, %s47
    %s62 = sphi 0, %s48
    %s66 = sphi 0, %s66
    %s68 = sphi 0, %s66
    %s69 = sphi 0, %s68
    %s83 = sphi 0, %s69
    %s87 = sphi 0, %s87
    %s89 = sphi 0, %s87
    %s90 = sphi 0, %s89
    %s104 = sphi 0, %s90
    %s108 = sphi 0, %s108
    %s110 = sphi 0, %s108
    %s111 = sphi 0, %s110
    %s125 = sphi 0, %s111
    %s131 = sphi 0, %s133
    %s134 = sphi 0, %s131
    %s135 = sphi 0, %s134
    %s151 = sphi 0, %s135
  $region4: #{hal_gru_forward.2} parent=0 // loop_header_branch
    %14 = sbr.rel (%p12) target = $region8
  $region5: #{hal_gru_forward.2} parent=0 // loop_body
    %s16 = ssub.s32 %s11, 1
    %s17 = ssub.s32 %s11, 2
    %s18 = sadd.s32 %s11, 1
    %s19 = ssub.s32 %s11, %s18
    %p20 = scmp.eq.s32.totalorder %s19, 0
    %s22 = sadd.s32 %s21, 1
    %s23 = scalar_select %p20, %s21, %s22
    %p26 = pneg %p20
    %p27 = scmp.eq.s32.totalorder %s11, 1
    %p28 = por %p26, %p27
    %p29 = scmp.ne.s32.totalorder %s21, %s24
    %p30 = scmp.eq.s32.totalorder %s11, 0
    %p31 = por %p29, %p30
    %p32 = scmp.ne.s32.totalorder %s21, %s24
    %p33 = scmp.eq.s32.totalorder %s16, 1
    %p34 = por %p32, %p33
    %p35 = scmp.ne.s32.totalorder %s24, %s25
    %p36 = scmp.eq.s32.totalorder %s16, 0
    %p37 = por %p35, %p36
    %p38 = scmp.ne.s32.totalorder %s24, %s25
    %p39 = scmp.eq.s32.totalorder %s17, 1
    %p40 = por %p38, %p39
    %p42 = scmp.ne.s32.totalorder %s25, %s41
    %p43 = scmp.eq.s32.totalorder %s17, 0
    %p44 = por %p42, %p43
    %s46 = sadd.s32 %s45, 1
    %p49 = scmp.eq.s32.totalorder %s11, 1
    %p50 = scmp.ne.s32.totalorder %s45, %s47
    %p51 = scmp.eq.s32.totalorder %s11, 0
    %p52 = por %p50, %p51
    %p53 = scmp.ne.s32.totalorder %s45, %s47
    %p54 = scmp.eq.s32.totalorder %s16, 1
    %p55 = por %p53, %p54
    %p56 = scmp.ne.s32.totalorder %s47, %s48
    %p57 = scmp.eq.s32.totalorder %s16, 0
    %p58 = por %p56, %p57
    %p59 = scmp.ne.s32.totalorder %s47, %s48
    %p60 = scmp.eq.s32.totalorder %s17, 1
    %p61 = por %p59, %p60
    %p63 = scmp.ne.s32.totalorder %s48, %s62
    %p64 = scmp.eq.s32.totalorder %s17, 0
    %p65 = por %p63, %p64
    %s67 = sadd.s32 %s66, 1
    %p70 = scmp.eq.s32.totalorder %s11, 1
    %p71 = scmp.ne.s32.totalorder %s66, %s68
    %p72 = scmp.eq.s32.totalorder %s11, 0
    %p73 = por %p71, %p72
    %p74 = scmp.ne.s32.totalorder %s66, %s68
    %p75 = scmp.eq.s32.totalorder %s16, 1
    %p76 = por %p74, %p75
    %p77 = scmp.ne.s32.totalorder %s68, %s69
    %p78 = scmp.eq.s32.totalorder %s16, 0
    %p79 = por %p77, %p78
    %p80 = scmp.ne.s32.totalorder %s68, %s69
    %p81 = scmp.eq.s32.totalorder %s17, 1
    %p82 = por %p80, %p81
    %p84 = scmp.ne.s32.totalorder %s69, %s83
    %p85 = scmp.eq.s32.totalorder %s17, 0
    %p86 = por %p84, %p85
    %s88 = sadd.s32 %s87, 1
    %p91 = scmp.eq.s32.totalorder %s11, 1
    %p92 = scmp.ne.s32.totalorder %s87, %s89
    %p93 = scmp.eq.s32.totalorder %s11, 0
    %p94 = por %p92, %p93
    %p95 = scmp.ne.s32.totalorder %s87, %s89
    %p96 = scmp.eq.s32.totalorder %s16, 1
    %p97 = por %p95, %p96
    %p98 = scmp.ne.s32.totalorder %s89, %s90
    %p99 = scmp.eq.s32.totalorder %s16, 0
    %p100 = por %p98, %p99
    %p101 = scmp.ne.s32.totalorder %s89, %s90
    %p102 = scmp.eq.s32.totalorder %s17, 1
    %p103 = por %p101, %p102
    %p105 = scmp.ne.s32.totalorder %s90, %s104
    %p106 = scmp.eq.s32.totalorder %s17, 0
    %p107 = por %p105, %p106
    %s109 = sadd.s32 %s108, 1
    %p112 = scmp.eq.s32.totalorder %s11, 1
    %p113 = scmp.ne.s32.totalorder %s108, %s110
    %p114 = scmp.eq.s32.totalorder %s11, 0
    %p115 = por %p113, %p114
    %p116 = scmp.ne.s32.totalorder %s108, %s110
    %p117 = scmp.eq.s32.totalorder %s16, 1
    %p118 = por %p116, %p117
    %p119 = scmp.ne.s32.totalorder %s110, %s111
    %p120 = scmp.eq.s32.totalorder %s16, 0
    %p121 = por %p119, %p120
    %p122 = scmp.ne.s32.totalorder %s110, %s111
    %p123 = scmp.eq.s32.totalorder %s17, 1
    %p124 = por %p122, %p123
    %p126 = scmp.ne.s32.totalorder %s111, %s125
    %p127 = scmp.eq.s32.totalorder %s17, 0
    %p128 = por %p126, %p127
    %s129 = ssub.s32 %s11, %s18
    %p130 = scmp.eq.s32.totalorder %s129, 0
    %s132 = sadd.s32 %s131, 1
    %s133 = scalar_select %p130, %s131, %s132
    %p136 = pneg %p130
    %p137 = scmp.eq.s32.totalorder %s11, 1
    %p138 = por %p136, %p137
    %p139 = scmp.ne.s32.totalorder %s131, %s134
    %p140 = scmp.eq.s32.totalorder %s11, 0
    %p141 = por %p139, %p140
    %p142 = scmp.ne.s32.totalorder %s131, %s134
    %p143 = scmp.eq.s32.totalorder %s16, 1
    %p144 = por %p142, %p143
    %p145 = scmp.ne.s32.totalorder %s134, %s135
    %p146 = scmp.eq.s32.totalorder %s16, 0
    %p147 = por %p145, %p146
    %p148 = scmp.ne.s32.totalorder %s134, %s135
    %p149 = scmp.eq.s32.totalorder %s17, 1
    %p150 = por %p148, %p149
    %p152 = scmp.ne.s32.totalorder %s135, %s151
    %p153 = scmp.eq.s32.totalorder %s17, 0
    %p154 = por %p152, %p153
    %p155 = scmp.le.s32.totalorder 1, %s11
    %p156 = scmp.lt.s32.totalorder %s11, 3
    %p157 = pnand %p155, %p156
    %p158 = pneg %p157
    // Predicated region
    $region9: #{hal_gru_forward.2} parent=5 // pred_check
      _
    $region10: #{hal_gru_forward.2} parent=5 // pred_check_branch
      %160 = sbr.rel (%p157) target = $region12
    $region11: #{hal_gru_forward.2} parent=5 // pred_region
      %s161 = ssub.s32 %s11, 1
      // Predicated region
      $region13: #{hal_gru_forward.2} parent=11 // pred_check
        %p162 = pneg %p58
      $region14: #{hal_gru_forward.2} parent=11 // pred_check_branch
        %164 = sbr.rel (%p162) target = $region16
      $region15: #{hal_gru_forward.2} parent=11 // pred_region
        _
      $region16: #{hal_gru_forward.2} parent=11 // pred_fallthru
        _
      // Predicated region
      $region17: #{hal_gru_forward.2} parent=11 // pred_check
        %p165 = pneg %p79
      $region18: #{hal_gru_forward.2} parent=11 // pred_check_branch
        %167 = sbr.rel (%p165) target = $region20
      $region19: #{hal_gru_forward.2} parent=11 // pred_region
        _
      $region20: #{hal_gru_forward.2} parent=11 // pred_fallthru
        _
      // Predicated region
      $region21: #{hal_gru_forward.2} parent=11 // pred_check
        %p168 = pneg %p100
      $region22: #{hal_gru_forward.2} parent=11 // pred_check_branch
        %170 = sbr.rel (%p168) target = $region24
      $region23: #{hal_gru_forward.2} parent=11 // pred_region
        _
      $region24: #{hal_gru_forward.2} parent=11 // pred_fallthru
        _
      // Predicated region
      $region25: #{hal_gru_forward.2} parent=11 // pred_check
        %p171 = pneg %p121
      $region26: #{hal_gru_forward.2} parent=11 // pred_check_branch
        %173 = sbr.rel (%p171) target = $region28
      $region27: #{hal_gru_forward.2} parent=11 // pred_region
        _
      $region28: #{hal_gru_forward.2} parent=11 // pred_fallthru
        _
    $region12: #{hal_gru_forward.2} parent=5 // pred_fallthru
      _
    %p174 = scmp.lt.s32.totalorder %s11, 2
    // Predicated region
    $region29: #{hal_gru_forward.2} parent=5 // pred_check
      %p175 = pneg %p174
    $region30: #{hal_gru_forward.2} parent=5 // pred_check_branch
      %177 = sbr.rel (%p175) target = $region32
    $region31: #{hal_gru_forward.2} parent=5 // pred_region
      // Predicated region
      $region33: #{hal_gru_forward.2} parent=31 // pred_check
        %p178 = pneg %p31
      $region34: #{hal_gru_forward.2} parent=31 // pred_check_branch
        %180 = sbr.rel (%p178) target = $region36
      $region35: #{hal_gru_forward.2} parent=31 // pred_region
        %s181 = smul.u32 16, %s11
        %p182 = scmp.lt.s32.totalorder %s181, 31
        %s183 = scalar_select %p182, %s181, 31
        %s184 = smul.addr %s183, 8
        %s185 = scalar_lea.vmem %s0, %s184
        %s186 = smul.u32 16, %s11
      $region36: #{hal_gru_forward.2} parent=31 // pred_fallthru
        _
    $region32: #{hal_gru_forward.2} parent=5 // pred_fallthru
      _
    %p187 = scmp.le.s32.totalorder 1, %s11
    %p188 = scmp.lt.s32.totalorder %s11, 3
    %p189 = pnand %p187, %p188
    %p190 = pneg %p189
    // Predicated region
    $region37: #{hal_gru_forward.2} parent=5 // pred_check
      _
    $region38: #{hal_gru_forward.2} parent=5 // pred_check_branch
      %192 = sbr.rel (%p189) target = $region40
    $region39: #{hal_gru_forward.2} parent=5 // pred_region
      %s193 = ssub.s32 %s11, 1
      %s194 = smul.u32 16, %s16
      %p195 = scmp.lt.s32.totalorder %s194, 31
      %s196 = scalar_select %p195, %s194, 31
      %s197 = smul.addr %s196, 8
      %s198 = scalar_lea.vmem %s0, %s197
      %p199 = pneg %p37
      %p200 = pneg %p34
      %p201 = pneg %p58
      %p202 = pneg %p55
      %p203 = pneg %p79
      %p204 = pneg %p76
      %p205 = pneg %p100
      %p206 = pneg %p97
      %p207 = pneg %p121
      %p208 = pneg %p118
      %p209 = pneg %p147
      %p210 = pneg %p144
      %s211 = smul.u32 16, %s16
      %p212 = scmp.lt.s32.totalorder %s211, 31
      %s213 = scalar_select %p212, %s211, 31
      %s214 = smul.addr %s213, 8
      %s215 = scalar_lea.vmem %s5, %s214
      %s216 = smul.u32 16, %s16
      %p217 = scmp.lt.s32.totalorder %s216, 31
      %s218 = scalar_select %p217, %s216, 31
      %s219 = smul.addr %s218, 8
      %s220 = scalar_lea.vmem %s0, %s219
      %s221 = smul.u32 16, %s16
      %s222 = smul.u32 16, %s16
      %p223 = scmp.lt.s32.totalorder %s222, 31
      %s224 = scalar_select %p223, %s222, 31
      %s225 = smul.addr %s224, 8
      %s226 = scalar_lea.vmem %s5, %s225
      %s227 = smul.u32 16, %s16
      %p228 = scmp.eq.s32.totalorder %s16, 0
      // Predicated region
      $region41: #{hal_gru_forward.2} parent=39 // pred_check
        %p229 = pneg %p228
      $region42: #{hal_gru_forward.2} parent=39 // pred_check_branch
        %231 = sbr.rel (%p229) target = $region44
      $region43: #{hal_gru_forward.2} parent=39 // pred_region
        %vm232 = vcmask 261120
        %233 = vst.msk [vmem:[#allocation2] sm:$0xff] %vm232, 0.0
      $region44: #{hal_gru_forward.2} parent=39 // pred_fallthru
        _
      %v234 = vld [vmem:[#allocation2] sm:$0xff]
      %v235 = vld [vmem:[%s220] sm:$0xff]
      %v236 = vld [vmem:[%s220 + $0x8] sm:$0xff]
      %v237 = vld [vmem:[%s220 + $0x10] sm:$0xff]
      %v238 = vld [vmem:[%s220 + $0x18] sm:$0xff]
      %v239 = vld [vmem:[%s220 + $0x20] sm:$0xff]
      %v240 = vld [vmem:[%s220 + $0x28] sm:$0xff]
      %v241 = vld [vmem:[%s220 + $0x30] sm:$0xff]
      %v242 = vld [vmem:[%s220 + $0x38] sm:$0xff]
      %v243 = vld [vmem:[%s220 + $0x40] sm:$0xff]
      %v244 = vld [vmem:[%s220 + $0x48] sm:$0xff]
      %v245 = vld [vmem:[%s220 + $0x50] sm:$0xff]
      %v246 = vld [vmem:[%s220 + $0x58] sm:$0xff]
      %v247 = vld [vmem:[%s220 + $0x60] sm:$0xff]
      %v248 = vld [vmem:[%s220 + $0x68] sm:$0xff]
      %v249 = vld [vmem:[%s220 + $0x70] sm:$0xff]
      %v250 = vld [vmem:[%s220 + $0x78] sm:$0xff]
      %v251 = vld [vmem:[%s1] sm:$0xff]
      %v252 = vld [vmem:[%s1 + $0x8] sm:$0xff]
      %v253 = vld [vmem:[%s2] sm:$0x1]
      %v255 = vperm.slane %v253, 0
      %vm257 = vcmask 130048
      %v259 = vsel %vm257, %v235, 0
      %v262 = vsel %vm257, %v236, 0
      %v265 = vsel %vm257, %v237, 0
      %v268 = vsel %vm257, %v238, 0
      %v271 = vsel %vm257, %v239, 0
      %v274 = vsel %vm257, %v240, 0
      %v277 = vsel %vm257, %v241, 0
      %v280 = vsel %vm257, %v242, 0
      %v283 = vsel %vm257, %v243, 0
      %v286 = vsel %vm257, %v244, 0
      %v289 = vsel %vm257, %v245, 0
      %v292 = vsel %vm257, %v246, 0
      %v295 = vsel %vm257, %v247, 0
      %v298 = vsel %vm257, %v248, 0
      %v301 = vsel %vm257, %v249, 0
      %v304 = vsel %vm257, %v250, 0
      %306 = vmatpush.msra.mxu0 0.0
      %307 = vmatpush.msra.mxu0 0.0
      %308 = vmatpush.msra.mxu0 0.0
      %309 = vmatpush.msra.mxu0 0.0
      %310 = vmatpush.msra.mxu0 0.0
      %311 = vmatpush.msra.mxu0 0.0
      %312 = vmatpush.msra.mxu0 0.0
      %313 = vmatpush.msra.mxu0 0.0
      %314 = vmatpush.msra.mxu0 0.0
      %315 = vmatpush.msra.mxu0 0.0
      %316 = vmatpush.msra.mxu0 0.0
      %317 = vmatpush.msra.mxu0 0.0
      %318 = vmatpush.msra.mxu0 0.0
      %319 = vmatpush.msra.mxu0 0.0
      %320 = vmatpush.msra.mxu0 %v252
      %321 = vmatpush.msra.mxu0 %v251
      %322 = vmatmul.f32.gmra.mxu0 %v259
      %v323 = vpop.f32.mrf.mxu0
      %v324 = vadd.f32 %v255, %v323
      %325 = vmatmul.f32.gmra.mxu0 %v262
      %v326 = vpop.f32.mrf.mxu0
      %v327 = vadd.f32 %v255, %v326
      %328 = vmatmul.f32.gmra.mxu0 %v265
      %v329 = vpop.f32.mrf.mxu0
      %v330 = vadd.f32 %v255, %v329
      %331 = vmatmul.f32.gmra.mxu0 %v268
      %v332 = vpop.f32.mrf.mxu0
      %v333 = vadd.f32 %v255, %v332
      %334 = vmatmul.f32.gmra.mxu0 %v271
      %v335 = vpop.f32.mrf.mxu0
      %v336 = vadd.f32 %v255, %v335
      %337 = vmatmul.f32.gmra.mxu0 %v274
      %v338 = vpop.f32.mrf.mxu0
      %v339 = vadd.f32 %v255, %v338
      %340 = vmatmul.f32.gmra.mxu0 %v277
      %v341 = vpop.f32.mrf.mxu0
      %v342 = vadd.f32 %v255, %v341
      %343 = vmatmul.f32.gmra.mxu0 %v280
      %v344 = vpop.f32.mrf.mxu0
      %v345 = vadd.f32 %v255, %v344
      %346 = vmatmul.f32.gmra.mxu0 %v283
      %v347 = vpop.f32.mrf.mxu0
      %v348 = vadd.f32 %v255, %v347
      %349 = vmatmul.f32.gmra.mxu0 %v286
      %v350 = vpop.f32.mrf.mxu0
      %v351 = vadd.f32 %v255, %v350
      %352 = vmatmul.f32.gmra.mxu0 %v289
      %v353 = vpop.f32.mrf.mxu0
      %v354 = vadd.f32 %v255, %v353
      %355 = vmatmul.f32.gmra.mxu0 %v292
      %v356 = vpop.f32.mrf.mxu0
      %v357 = vadd.f32 %v255, %v356
      %358 = vmatmul.f32.gmra.mxu0 %v295
      %v359 = vpop.f32.mrf.mxu0
      %v360 = vadd.f32 %v255, %v359
      %361 = vmatmul.f32.gmra.mxu0 %v298
      %v362 = vpop.f32.mrf.mxu0
      %v363 = vadd.f32 %v255, %v362
      %364 = vmatmul.f32.gmra.mxu0 %v301
      %v365 = vpop.f32.mrf.mxu0
      %v366 = vadd.f32 %v255, %v365
      %367 = vmatmul.f32.gmra.mxu0 %v304
      %v368 = vpop.f32.mrf.mxu0
      %v369 = vadd.f32 %v255, %v368
      %370 = vdwg.mxu0
      %v371 = vld [vmem:[%s3] sm:$0xff]
      %v372 = vld [vmem:[%s3 + $0x8] sm:$0xff]
      %v373 = vld [vmem:[%s3 + $0x10] sm:$0xff]
      %v374 = vld [vmem:[%s3 + $0x18] sm:$0xff]
      %v375 = vld [vmem:[%s4] sm:$0x1]
      %vm376 = vcmask 261120
      %v378 = vsel %vm376, %v234, 0
      %380 = vmatpush.msra.mxu0 0.0
      %381 = vmatpush.msra.mxu0 0.0
      %382 = vmatpush.msra.mxu0 0.0
      %383 = vmatpush.msra.mxu0 0.0
      %384 = vmatpush.msra.mxu0 0.0
      %385 = vmatpush.msra.mxu0 0.0
      %386 = vmatpush.msra.mxu0 0.0
      %387 = vmatpush.msra.mxu0 0.0
      %388 = vmatpush.msra.mxu0 0.0
      %389 = vmatpush.msra.mxu0 0.0
      %390 = vmatpush.msra.mxu0 0.0
      %391 = vmatpush.msra.mxu0 0.0
      %392 = vmatpush.msra.mxu0 %v374
      %393 = vmatpush.msra.mxu0 %v373
      %394 = vmatpush.msra.mxu0 %v372
      %395 = vmatpush.msra.mxu0 %v371
      %396 = vmatmul.f32.gmra.mxu0 %v378
      %v397 = vpop.f32.mrf.mxu0
      %v398 = vadd.f32 0.0, %v397
      %399 = vdwg.mxu0
      %v400 = vadd.f32 %v324, %v398
      %v401 = vxor.u32 %v400, 2147483648
      %v402 = vmul.f32 %v401, 1.442695
      %v403 = vpow.pop %v402
      %v404 = vadd.f32 %v403, 1.0
      %v405 = vrcp.pop %v404
      %v406 = vmul.f32 %v404, %v405
      %v407 = vsub.f32 1.0, %v406
      %v408 = vmul.f32 %v405, %v407
      %v409 = vadd.f32 %v405, %v408
      %vm410 = vweird.f32 %v404
      %vm411 = vweird.f32 %v405
      %vm412 = vmor %vm410, %vm411
      %v413 = vsel %vm412, %v405, %v409
      %v414 = vand.u32 2147483647, %v404
      %vm415 = vcmp.eq.f32.partialorder %v414, 8.507059e+37
      %v416 = vand.u32 %v404, 2147483648
      %v417 = vor.u32 1.1754944e-38, %v416
      %v418 = vsel %vm415, %v417, %v413
      %v419 = vmul.f32 1.0, %v418
      %v421 = vperm.slane %v375, 0
      %422 = vrot.lane.b32.xlu0 %v421, 64
      %v423 = vpop.permute.xlu0 %422
      %v425 = vadd.f32 %v398, %v423
      %427 = vrot.lane.b32.xlu0 %v425, 64
      %v428 = vpop.permute.xlu0 %427
      %v430 = vmul.f32 %v419, %v428
      %432 = vrot.lane.b32.xlu0 %v430, 64
      %v433 = vpop.permute.xlu0 %432
      %v435 = vadd.f32 %v324, %v433
      %v436 = vtanh.pop %v435
      %v437 = vsub.f32 1.0, %v419
      %439 = vrot.lane.b32.xlu0 %v436, 96
      %v440 = vpop.permute.xlu0 %439
      %v442 = vmul.f32 %v437, %v440
      %443 = vrot.lane.b32.xlu0 %v234, 32
      %v444 = vpop.permute.xlu0 %443
      %v446 = vmul.f32 %v419, %v444
      %v447 = vadd.f32 %v442, %v446
      %449 = vrot.lane.b32.xlu0 %v447, 96
      %v450 = vpop.permute.xlu0 %449
      %452 = vst.msk [vmem:[%s226] sm:$0xff] %vm376, %v450
      %v453 = vsel %vm376, %v450, 0
      %455 = vmatpush.msra.mxu0 0.0
      %456 = vmatpush.msra.mxu0 0.0
      %457 = vmatpush.msra.mxu0 0.0
      %458 = vmatpush.msra.mxu0 0.0
      %459 = vmatpush.msra.mxu0 0.0
      %460 = vmatpush.msra.mxu0 0.0
      %461 = vmatpush.msra.mxu0 0.0
      %462 = vmatpush.msra.mxu0 0.0
      %463 = vmatpush.msra.mxu0 0.0
      %464 = vmatpush.msra.mxu0 0.0
      %465 = vmatpush.msra.mxu0 0.0
      %466 = vmatpush.msra.mxu0 0.0
      %467 = vmatpush.msra.mxu0 %v374
      %468 = vmatpush.msra.mxu0 %v373
      %469 = vmatpush.msra.mxu0 %v372
      %470 = vmatpush.msra.mxu0 %v371
      %471 = vmatmul.f32.gmra.mxu0 %v453
      %v472 = vpop.f32.mrf.mxu0
      %v473 = vadd.f32 0.0, %v472
      %474 = vdwg.mxu0
      %v475 = vadd.f32 %v327, %v473
      %v476 = vxor.u32 %v475, 2147483648
      %v477 = vmul.f32 %v476, 1.442695
      %v478 = vpow.pop %v477
      %v479 = vadd.f32 %v478, 1.0
      %v480 = vrcp.pop %v479
      %v481 = vmul.f32 %v479, %v480
      %v482 = vsub.f32 1.0, %v481
      %v483 = vmul.f32 %v480, %v482
      %v484 = vadd.f32 %v480, %v483
      %vm485 = vweird.f32 %v479
      %vm486 = vweird.f32 %v480
      %vm487 = vmor %vm485, %vm486
      %v488 = vsel %vm487, %v480, %v484
      %v489 = vand.u32 2147483647, %v479
      %vm490 = vcmp.eq.f32.partialorder %v489, 8.507059e+37
      %v491 = vand.u32 %v479, 2147483648
      %v492 = vor.u32 1.1754944e-38, %v491
      %v493 = vsel %vm490, %v492, %v488
      %v494 = vmul.f32 1.0, %v493
      %v495 = vadd.f32 %v473, %v423
      %497 = vrot.lane.b32.xlu0 %v495, 64
      %v498 = vpop.permute.xlu0 %497
      %v500 = vmul.f32 %v494, %v498
      %502 = vrot.lane.b32.xlu0 %v500, 64
      %v503 = vpop.permute.xlu0 %502
      %v505 = vadd.f32 %v327, %v503
      %v506 = vtanh.pop %v505
      %v507 = vsub.f32 1.0, %v494
      %509 = vrot.lane.b32.xlu0 %v506, 96
      %v510 = vpop.permute.xlu0 %509
      %v512 = vmul.f32 %v507, %v510
      %v513 = vmul.f32 %v494, %v447
      %v514 = vadd.f32 %v512, %v513
      %516 = vrot.lane.b32.xlu0 %v514, 96
      %v517 = vpop.permute.xlu0 %516
      %s519 = scalar_lea.vmem %s226, 8
      %520 = vst.msk [vmem:[%s519] sm:$0xff] %vm376, %v517
      %v521 = vsel %vm376, %v517, 0
      %523 = vmatpush.msra.mxu0 0.0
      %524 = vmatpush.msra.mxu0 0.0
      %525 = vmatpush.msra.mxu0 0.0
      %526 = vmatpush.msra.mxu0 0.0
      %527 = vmatpush.msra.mxu0 0.0
      %528 = vmatpush.msra.mxu0 0.0
      %529 = vmatpush.msra.mxu0 0.0
      %530 = vmatpush.msra.mxu0 0.0
      %531 = vmatpush.msra.mxu0 0.0
      %532 = vmatpush.msra.mxu0 0.0
      %533 = vmatpush.msra.mxu0 0.0
      %534 = vmatpush.msra.mxu0 0.0
      %535 = vmatpush.msra.mxu0 %v374
      %536 = vmatpush.msra.mxu0 %v373
      %537 = vmatpush.msra.mxu0 %v372
      %538 = vmatpush.msra.mxu0 %v371
      %539 = vmatmul.f32.gmra.mxu0 %v521
      %v540 = vpop.f32.mrf.mxu0
      %v541 = vadd.f32 0.0, %v540
      %542 = vdwg.mxu0
      %v543 = vadd.f32 %v330, %v541
      %v544 = vxor.u32 %v543, 2147483648
      %v545 = vmul.f32 %v544, 1.442695
      %v546 = vpow.pop %v545
      %v547 = vadd.f32 %v546, 1.0
      %v548 = vrcp.pop %v547
      %v549 = vmul.f32 %v547, %v548
      %v550 = vsub.f32 1.0, %v549
      %v551 = vmul.f32 %v548, %v550
      %v552 = vadd.f32 %v548, %v551
      %vm553 = vweird.f32 %v547
      %vm554 = vweird.f32 %v548
      %vm555 = vmor %vm553, %vm554
      %v556 = vsel %vm555, %v548, %v552
      %v557 = vand.u32 2147483647, %v547
      %vm558 = vcmp.eq.f32.partialorder %v557, 8.507059e+37
      %v559 = vand.u32 %v547, 2147483648
      %v560 = vor.u32 1.1754944e-38, %v559
      %v561 = vsel %vm558, %v560, %v556
      %v562 = vmul.f32 1.0, %v561
      %v563 = vadd.f32 %v541, %v423
      %565 = vrot.lane.b32.xlu0 %v563, 64
      %v566 = vpop.permute.xlu0 %565
      %v568 = vmul.f32 %v562, %v566
      %570 = vrot.lane.b32.xlu0 %v568, 64
      %v571 = vpop.permute.xlu0 %570
      %v573 = vadd.f32 %v330, %v571
      %v574 = vtanh.pop %v573
      %v575 = vsub.f32 1.0, %v562
      %577 = vrot.lane.b32.xlu0 %v574, 96
      %v578 = vpop.permute.xlu0 %577
      %v580 = vmul.f32 %v575, %v578
      %v581 = vmul.f32 %v562, %v514
      %v582 = vadd.f32 %v580, %v581
      %584 = vrot.lane.b32.xlu0 %v582, 96
      %v585 = vpop.permute.xlu0 %584
      %s587 = scalar_lea.vmem %s226, 16
      %588 = vst.msk [vmem:[%s587] sm:$0xff] %vm376, %v585
      %v589 = vsel %vm376, %v585, 0
      %591 = vmatpush.msra.mxu0 0.0
      %592 = vmatpush.msra.mxu0 0.0
      %593 = vmatpush.msra.mxu0 0.0
      %594 = vmatpush.msra.mxu0 0.0
      %595 = vmatpush.msra.mxu0 0.0
      %596 = vmatpush.msra.mxu0 0.0
      %597 = vmatpush.msra.mxu0 0.0
      %598 = vmatpush.msra.mxu0 0.0
      %599 = vmatpush.msra.mxu0 0.0
      %600 = vmatpush.msra.mxu0 0.0
      %601 = vmatpush.msra.mxu0 0.0
      %602 = vmatpush.msra.mxu0 0.0
      %603 = vmatpush.msra.mxu0 %v374
      %604 = vmatpush.msra.mxu0 %v373
      %605 = vmatpush.msra.mxu0 %v372
      %606 = vmatpush.msra.mxu0 %v371
      %607 = vmatmul.f32.gmra.mxu0 %v589
      %v608 = vpop.f32.mrf.mxu0
      %v609 = vadd.f32 0.0, %v608
      %610 = vdwg.mxu0
      %v611 = vadd.f32 %v333, %v609
      %v612 = vxor.u32 %v611, 2147483648
      %v613 = vmul.f32 %v612, 1.442695
      %v614 = vpow.pop %v613
      %v615 = vadd.f32 %v614, 1.0
      %v616 = vrcp.pop %v615
      %v617 = vmul.f32 %v615, %v616
      %v618 = vsub.f32 1.0, %v617
      %v619 = vmul.f32 %v616, %v618
      %v620 = vadd.f32 %v616, %v619
      %vm621 = vweird.f32 %v615
      %vm622 = vweird.f32 %v616
      %vm623 = vmor %vm621, %vm622
      %v624 = vsel %vm623, %v616, %v620
      %v625 = vand.u32 2147483647, %v615
      %vm626 = vcmp.eq.f32.partialorder %v625, 8.507059e+37
      %v627 = vand.u32 %v615, 2147483648
      %v628 = vor.u32 1.1754944e-38, %v627
      %v629 = vsel %vm626, %v628, %v624
      %v630 = vmul.f32 1.0, %v629
      %v631 = vadd.f32 %v609, %v423
      %633 = vrot.lane.b32.xlu0 %v631, 64
      %v634 = vpop.permute.xlu0 %633
      %v636 = vmul.f32 %v630, %v634
      %638 = vrot.lane.b32.xlu0 %v636, 64
      %v639 = vpop.permute.xlu0 %638
      %v641 = vadd.f32 %v333, %v639
      %v642 = vtanh.pop %v641
      %v643 = vsub.f32 1.0, %v630
      %645 = vrot.lane.b32.xlu0 %v642, 96
      %v646 = vpop.permute.xlu0 %645
      %v648 = vmul.f32 %v643, %v646
      %v649 = vmul.f32 %v630, %v582
      %v650 = vadd.f32 %v648, %v649
      %652 = vrot.lane.b32.xlu0 %v650, 96
      %v653 = vpop.permute.xlu0 %652
      %s655 = scalar_lea.vmem %s226, 24
      %656 = vst.msk [vmem:[%s655] sm:$0xff] %vm376, %v653
      %v657 = vsel %vm376, %v653, 0
      %659 = vmatpush.msra.mxu0 0.0
      %660 = vmatpush.msra.mxu0 0.0
      %661 = vmatpush.msra.mxu0 0.0
      %662 = vmatpush.msra.mxu0 0.0
      %663 = vmatpush.msra.mxu0 0.0
      %664 = vmatpush.msra.mxu0 0.0
      %665 = vmatpush.msra.mxu0 0.0
      %666 = vmatpush.msra.mxu0 0.0
      %667 = vmatpush.msra.mxu0 0.0
      %668 = vmatpush.msra.mxu0 0.0
      %669 = vmatpush.msra.mxu0 0.0
      %670 = vmatpush.msra.mxu0 0.0
      %671 = vmatpush.msra.mxu0 %v374
      %672 = vmatpush.msra.mxu0 %v373
      %673 = vmatpush.msra.mxu0 %v372
      %674 = vmatpush.msra.mxu0 %v371
      %675 = vmatmul.f32.gmra.mxu0 %v657
      %v676 = vpop.f32.mrf.mxu0
      %v677 = vadd.f32 0.0, %v676
      %678 = vdwg.mxu0
      %v679 = vadd.f32 %v336, %v677
      %v680 = vxor.u32 %v679, 2147483648
      %v681 = vmul.f32 %v680, 1.442695
      %v682 = vpow.pop %v681
      %v683 = vadd.f32 %v682, 1.0
      %v684 = vrcp.pop %v683
      %v685 = vmul.f32 %v683, %v684
      %v686 = vsub.f32 1.0, %v685
      %v687 = vmul.f32 %v684, %v686
      %v688 = vadd.f32 %v684, %v687
      %vm689 = vweird.f32 %v683
      %vm690 = vweird.f32 %v684
      %vm691 = vmor %vm689, %vm690
      %v692 = vsel %vm691, %v684, %v688
      %v693 = vand.u32 2147483647, %v683
      %vm694 = vcmp.eq.f32.partialorder %v693, 8.507059e+37
      %v695 = vand.u32 %v683, 2147483648
      %v696 = vor.u32 1.1754944e-38, %v695
      %v697 = vsel %vm694, %v696, %v692
      %v698 = vmul.f32 1.0, %v697
      %v699 = vadd.f32 %v677, %v423
      %701 = vrot.lane.b32.xlu0 %v699, 64
      %v702 = vpop.permute.xlu0 %701
      %v704 = vmul.f32 %v698, %v702
      %706 = vrot.lane.b32.xlu0 %v704, 64
      %v707 = vpop.permute.xlu0 %706
      %v709 = vadd.f32 %v336, %v707
      %v710 = vtanh.pop %v709
      %v711 = vsub.f32 1.0, %v698
      %713 = vrot.lane.b32.xlu0 %v710, 96
      %v714 = vpop.permute.xlu0 %713
      %v716 = vmul.f32 %v711, %v714
      %v717 = vmul.f32 %v698, %v650
      %v718 = vadd.f32 %v716, %v717
      %720 = vrot.lane.b32.xlu0 %v718, 96
      %v721 = vpop.permute.xlu0 %720
      %s723 = scalar_lea.vmem %s226, 32
      %724 = vst.msk [vmem:[%s723] sm:$0xff] %vm376, %v721
      %v725 = vsel %vm376, %v721, 0
      %727 = vmatpush.msra.mxu0 0.0
      %728 = vmatpush.msra.mxu0 0.0
      %729 = vmatpush.msra.mxu0 0.0
      %730 = vmatpush.msra.mxu0 0.0
      %731 = vmatpush.msra.mxu0 0.0
      %732 = vmatpush.msra.mxu0 0.0
      %733 = vmatpush.msra.mxu0 0.0
      %734 = vmatpush.msra.mxu0 0.0
      %735 = vmatpush.msra.mxu0 0.0
      %736 = vmatpush.msra.mxu0 0.0
      %737 = vmatpush.msra.mxu0 0.0
      %738 = vmatpush.msra.mxu0 0.0
      %739 = vmatpush.msra.mxu0 %v374
      %740 = vmatpush.msra.mxu0 %v373
      %741 = vmatpush.msra.mxu0 %v372
      %742 = vmatpush.msra.mxu0 %v371
      %743 = vmatmul.f32.gmra.mxu0 %v725
      %v744 = vpop.f32.mrf.mxu0
      %v745 = vadd.f32 0.0, %v744
      %746 = vdwg.mxu0
      %v747 = vadd.f32 %v339, %v745
      %v748 = vxor.u32 %v747, 2147483648
      %v749 = vmul.f32 %v748, 1.442695
      %v750 = vpow.pop %v749
      %v751 = vadd.f32 %v750, 1.0
      %v752 = vrcp.pop %v751
      %v753 = vmul.f32 %v751, %v752
      %v754 = vsub.f32 1.0, %v753
      %v755 = vmul.f32 %v752, %v754
      %v756 = vadd.f32 %v752, %v755
      %vm757 = vweird.f32 %v751
      %vm758 = vweird.f32 %v752
      %vm759 = vmor %vm757, %vm758
      %v760 = vsel %vm759, %v752, %v756
      %v761 = vand.u32 2147483647, %v751
      %vm762 = vcmp.eq.f32.partialorder %v761, 8.507059e+37
      %v763 = vand.u32 %v751, 2147483648
      %v764 = vor.u32 1.1754944e-38, %v763
      %v765 = vsel %vm762, %v764, %v760
      %v766 = vmul.f32 1.0, %v765
      %v767 = vadd.f32 %v745, %v423
      %769 = vrot.lane.b32.xlu0 %v767, 64
      %v770 = vpop.permute.xlu0 %769
      %v772 = vmul.f32 %v766, %v770
      %774 = vrot.lane.b32.xlu0 %v772, 64
      %v775 = vpop.permute.xlu0 %774
      %v777 = vadd.f32 %v339, %v775
      %v778 = vtanh.pop %v777
      %v779 = vsub.f32 1.0, %v766
      %781 = vrot.lane.b32.xlu0 %v778, 96
      %v782 = vpop.permute.xlu0 %781
      %v784 = vmul.f32 %v779, %v782
      %v785 = vmul.f32 %v766, %v718
      %v786 = vadd.f32 %v784, %v785
      %788 = vrot.lane.b32.xlu0 %v786, 96
      %v789 = vpop.permute.xlu0 %788
      %s791 = scalar_lea.vmem %s226, 40
      %792 = vst.msk [vmem:[%s791] sm:$0xff] %vm376, %v789
      %v793 = vsel %vm376, %v789, 0
      %795 = vmatpush.msra.mxu0 0.0
      %796 = vmatpush.msra.mxu0 0.0
      %797 = vmatpush.msra.mxu0 0.0
      %798 = vmatpush.msra.mxu0 0.0
      %799 = vmatpush.msra.mxu0 0.0
      %800 = vmatpush.msra.mxu0 0.0
      %801 = vmatpush.msra.mxu0 0.0
      %802 = vmatpush.msra.mxu0 0.0
      %803 = vmatpush.msra.mxu0 0.0
      %804 = vmatpush.msra.mxu0 0.0
      %805 = vmatpush.msra.mxu0 0.0
      %806 = vmatpush.msra.mxu0 0.0
      %807 = vmatpush.msra.mxu0 %v374
      %808 = vmatpush.msra.mxu0 %v373
      %809 = vmatpush.msra.mxu0 %v372
      %810 = vmatpush.msra.mxu0 %v371
      %811 = vmatmul.f32.gmra.mxu0 %v793
      %v812 = vpop.f32.mrf.mxu0
      %v813 = vadd.f32 0.0, %v812
      %814 = vdwg.mxu0
      %v815 = vadd.f32 %v342, %v813
      %v816 = vxor.u32 %v815, 2147483648
      %v817 = vmul.f32 %v816, 1.442695
      %v818 = vpow.pop %v817
      %v819 = vadd.f32 %v818, 1.0
      %v820 = vrcp.pop %v819
      %v821 = vmul.f32 %v819, %v820
      %v822 = vsub.f32 1.0, %v821
      %v823 = vmul.f32 %v820, %v822
      %v824 = vadd.f32 %v820, %v823
      %vm825 = vweird.f32 %v819
      %vm826 = vweird.f32 %v820
      %vm827 = vmor %vm825, %vm826
      %v828 = vsel %vm827, %v820, %v824
      %v829 = vand.u32 2147483647, %v819
      %vm830 = vcmp.eq.f32.partialorder %v829, 8.507059e+37
      %v831 = vand.u32 %v819, 2147483648
      %v832 = vor.u32 1.1754944e-38, %v831
      %v833 = vsel %vm830, %v832, %v828
      %v834 = vmul.f32 1.0, %v833
      %v835 = vadd.f32 %v813, %v423
      %837 = vrot.lane.b32.xlu0 %v835, 64
      %v838 = vpop.permute.xlu0 %837
      %v840 = vmul.f32 %v834, %v838
      %842 = vrot.lane.b32.xlu0 %v840, 64
      %v843 = vpop.permute.xlu0 %842
      %v845 = vadd.f32 %v342, %v843
      %v846 = vtanh.pop %v845
      %v847 = vsub.f32 1.0, %v834
      %849 = vrot.lane.b32.xlu0 %v846, 96
      %v850 = vpop.permute.xlu0 %849
      %v852 = vmul.f32 %v847, %v850
      %v853 = vmul.f32 %v834, %v786
      %v854 = vadd.f32 %v852, %v853
      %856 = vrot.lane.b32.xlu0 %v854, 96
      %v857 = vpop.permute.xlu0 %856
      %s859 = scalar_lea.vmem %s226, 48
      %860 = vst.msk [vmem:[%s859] sm:$0xff] %vm376, %v857
      %v861 = vsel %vm376, %v857, 0
      %863 = vmatpush.msra.mxu0 0.0
      %864 = vmatpush.msra.mxu0 0.0
      %865 = vmatpush.msra.mxu0 0.0
      %866 = vmatpush.msra.mxu0 0.0
      %867 = vmatpush.msra.mxu0 0.0
      %868 = vmatpush.msra.mxu0 0.0
      %869 = vmatpush.msra.mxu0 0.0
      %870 = vmatpush.msra.mxu0 0.0
      %871 = vmatpush.msra.mxu0 0.0
      %872 = vmatpush.msra.mxu0 0.0
      %873 = vmatpush.msra.mxu0 0.0
      %874 = vmatpush.msra.mxu0 0.0
      %875 = vmatpush.msra.mxu0 %v374
      %876 = vmatpush.msra.mxu0 %v373
      %877 = vmatpush.msra.mxu0 %v372
      %878 = vmatpush.msra.mxu0 %v371
      %879 = vmatmul.f32.gmra.mxu0 %v861
      %v880 = vpop.f32.mrf.mxu0
      %v881 = vadd.f32 0.0, %v880
      %882 = vdwg.mxu0
      %v883 = vadd.f32 %v345, %v881
      %v884 = vxor.u32 %v883, 2147483648
      %v885 = vmul.f32 %v884, 1.442695
      %v886 = vpow.pop %v885
      %v887 = vadd.f32 %v886, 1.0
      %v888 = vrcp.pop %v887
      %v889 = vmul.f32 %v887, %v888
      %v890 = vsub.f32 1.0, %v889
      %v891 = vmul.f32 %v888, %v890
      %v892 = vadd.f32 %v888, %v891
      %vm893 = vweird.f32 %v887
      %vm894 = vweird.f32 %v888
      %vm895 = vmor %vm893, %vm894
      %v896 = vsel %vm895, %v888, %v892
      %v897 = vand.u32 2147483647, %v887
      %vm898 = vcmp.eq.f32.partialorder %v897, 8.507059e+37
      %v899 = vand.u32 %v887, 2147483648
      %v900 = vor.u32 1.1754944e-38, %v899
      %v901 = vsel %vm898, %v900, %v896
      %v902 = vmul.f32 1.0, %v901
      %v903 = vadd.f32 %v881, %v423
      %905 = vrot.lane.b32.xlu0 %v903, 64
      %v906 = vpop.permute.xlu0 %905
      %v908 = vmul.f32 %v902, %v906
      %910 = vrot.lane.b32.xlu0 %v908, 64
      %v911 = vpop.permute.xlu0 %910
      %v913 = vadd.f32 %v345, %v911
      %v914 = vtanh.pop %v913
      %v915 = vsub.f32 1.0, %v902
      %917 = vrot.lane.b32.xlu0 %v914, 96
      %v918 = vpop.permute.xlu0 %917
      %v920 = vmul.f32 %v915, %v918
      %v921 = vmul.f32 %v902, %v854
      %v922 = vadd.f32 %v920, %v921
      %924 = vrot.lane.b32.xlu0 %v922, 96
      %v925 = vpop.permute.xlu0 %924
      %s927 = scalar_lea.vmem %s226, 56
      %928 = vst.msk [vmem:[%s927] sm:$0xff] %vm376, %v925
      %v929 = vsel %vm376, %v925, 0
      %931 = vmatpush.msra.mxu0 0.0
      %932 = vmatpush.msra.mxu0 0.0
      %933 = vmatpush.msra.mxu0 0.0
      %934 = vmatpush.msra.mxu0 0.0
      %935 = vmatpush.msra.mxu0 0.0
      %936 = vmatpush.msra.mxu0 0.0
      %937 = vmatpush.msra.mxu0 0.0
      %938 = vmatpush.msra.mxu0 0.0
      %939 = vmatpush.msra.mxu0 0.0
      %940 = vmatpush.msra.mxu0 0.0
      %941 = vmatpush.msra.mxu0 0.0
      %942 = vmatpush.msra.mxu0 0.0
      %943 = vmatpush.msra.mxu0 %v374
      %944 = vmatpush.msra.mxu0 %v373
      %945 = vmatpush.msra.mxu0 %v372
      %946 = vmatpush.msra.mxu0 %v371
      %947 = vmatmul.f32.gmra.mxu0 %v929
      %v948 = vpop.f32.mrf.mxu0
      %v949 = vadd.f32 0.0, %v948
      %950 = vdwg.mxu0
      %v951 = vadd.f32 %v348, %v949
      %v952 = vxor.u32 %v951, 2147483648
      %v953 = vmul.f32 %v952, 1.442695
      %v954 = vpow.pop %v953
      %v955 = vadd.f32 %v954, 1.0
      %v956 = vrcp.pop %v955
      %v957 = vmul.f32 %v955, %v956
      %v958 = vsub.f32 1.0, %v957
      %v959 = vmul.f32 %v956, %v958
      %v960 = vadd.f32 %v956, %v959
      %vm961 = vweird.f32 %v955
      %vm962 = vweird.f32 %v956
      %vm963 = vmor %vm961, %vm962
      %v964 = vsel %vm963, %v956, %v960
      %v965 = vand.u32 2147483647, %v955
      %vm966 = vcmp.eq.f32.partialorder %v965, 8.507059e+37
      %v967 = vand.u32 %v955, 2147483648
      %v968 = vor.u32 1.1754944e-38, %v967
      %v969 = vsel %vm966, %v968, %v964
      %v970 = vmul.f32 1.0, %v969
      %v971 = vadd.f32 %v949, %v423
      %973 = vrot.lane.b32.xlu0 %v971, 64
      %v974 = vpop.permute.xlu0 %973
      %v976 = vmul.f32 %v970, %v974
      %978 = vrot.lane.b32.xlu0 %v976, 64
      %v979 = vpop.permute.xlu0 %978
      %v981 = vadd.f32 %v348, %v979
      %v982 = vtanh.pop %v981
      %v983 = vsub.f32 1.0, %v970
      %985 = vrot.lane.b32.xlu0 %v982, 96
      %v986 = vpop.permute.xlu0 %985
      %v988 = vmul.f32 %v983, %v986
      %v989 = vmul.f32 %v970, %v922
      %v990 = vadd.f32 %v988, %v989
      %992 = vrot.lane.b32.xlu0 %v990, 96
      %v993 = vpop.permute.xlu0 %992
      %s995 = scalar_lea.vmem %s226, 64
      %996 = vst.msk [vmem:[%s995] sm:$0xff] %vm376, %v993
      %v997 = vsel %vm376, %v993, 0
      %999 = vmatpush.msra.mxu0 0.0
      %1000 = vmatpush.msra.mxu0 0.0
      %1001 = vmatpush.msra.mxu0 0.0
      %1002 = vmatpush.msra.mxu0 0.0
      %1003 = vmatpush.msra.mxu0 0.0
      %1004 = vmatpush.msra.mxu0 0.0
      %1005 = vmatpush.msra.mxu0 0.0
      %1006 = vmatpush.msra.mxu0 0.0
      %1007 = vmatpush.msra.mxu0 0.0
      %1008 = vmatpush.msra.mxu0 0.0
      %1009 = vmatpush.msra.mxu0 0.0
      %1010 = vmatpush.msra.mxu0 0.0
      %1011 = vmatpush.msra.mxu0 %v374
      %1012 = vmatpush.msra.mxu0 %v373
      %1013 = vmatpush.msra.mxu0 %v372
      %1014 = vmatpush.msra.mxu0 %v371
      %1015 = vmatmul.f32.gmra.mxu0 %v997
      %v1016 = vpop.f32.mrf.mxu0
      %v1017 = vadd.f32 0.0, %v1016
      %1018 = vdwg.mxu0
      %v1019 = vadd.f32 %v351, %v1017
      %v1020 = vxor.u32 %v1019, 2147483648
      %v1021 = vmul.f32 %v1020, 1.442695
      %v1022 = vpow.pop %v1021
      %v1023 = vadd.f32 %v1022, 1.0
      %v1024 = vrcp.pop %v1023
      %v1025 = vmul.f32 %v1023, %v1024
      %v1026 = vsub.f32 1.0, %v1025
      %v1027 = vmul.f32 %v1024, %v1026
      %v1028 = vadd.f32 %v1024, %v1027
      %vm1029 = vweird.f32 %v1023
      %vm1030 = vweird.f32 %v1024
      %vm1031 = vmor %vm1029, %vm1030
      %v1032 = vsel %vm1031, %v1024, %v1028
      %v1033 = vand.u32 2147483647, %v1023
      %vm1034 = vcmp.eq.f32.partialorder %v1033, 8.507059e+37
      %v1035 = vand.u32 %v1023, 2147483648
      %v1036 = vor.u32 1.1754944e-38, %v1035
      %v1037 = vsel %vm1034, %v1036, %v1032
      %v1038 = vmul.f32 1.0, %v1037
      %v1039 = vadd.f32 %v1017, %v423
      %1041 = vrot.lane.b32.xlu0 %v1039, 64
      %v1042 = vpop.permute.xlu0 %1041
      %v1044 = vmul.f32 %v1038, %v1042
      %1046 = vrot.lane.b32.xlu0 %v1044, 64
      %v1047 = vpop.permute.xlu0 %1046
      %v1049 = vadd.f32 %v351, %v1047
      %v1050 = vtanh.pop %v1049
      %v1051 = vsub.f32 1.0, %v1038
      %1053 = vrot.lane.b32.xlu0 %v1050, 96
      %v1054 = vpop.permute.xlu0 %1053
      %v1056 = vmul.f32 %v1051, %v1054
      %v1057 = vmul.f32 %v1038, %v990
      %v1058 = vadd.f32 %v1056, %v1057
      %1060 = vrot.lane.b32.xlu0 %v1058, 96
      %v1061 = vpop.permute.xlu0 %1060
      %s1063 = scalar_lea.vmem %s226, 72
      %1064 = vst.msk [vmem:[%s1063] sm:$0xff] %vm376, %v1061
      %v1065 = vsel %vm376, %v1061, 0
      %1067 = vmatpush.msra.mxu0 0.0
      %1068 = vmatpush.msra.mxu0 0.0
      %1069 = vmatpush.msra.mxu0 0.0
      %1070 = vmatpush.msra.mxu0 0.0
      %1071 = vmatpush.msra.mxu0 0.0
      %1072 = vmatpush.msra.mxu0 0.0
      %1073 = vmatpush.msra.mxu0 0.0
      %1074 = vmatpush.msra.mxu0 0.0
      %1075 = vmatpush.msra.mxu0 0.0
      %1076 = vmatpush.msra.mxu0 0.0
      %1077 = vmatpush.msra.mxu0 0.0
      %1078 = vmatpush.msra.mxu0 0.0
      %1079 = vmatpush.msra.mxu0 %v374
      %1080 = vmatpush.msra.mxu0 %v373
      %1081 = vmatpush.msra.mxu0 %v372
      %1082 = vmatpush.msra.mxu0 %v371
      %1083 = vmatmul.f32.gmra.mxu0 %v1065
      %v1084 = vpop.f32.mrf.mxu0
      %v1085 = vadd.f32 0.0, %v1084
      %1086 = vdwg.mxu0
      %v1087 = vadd.f32 %v354, %v1085
      %v1088 = vxor.u32 %v1087, 2147483648
      %v1089 = vmul.f32 %v1088, 1.442695
      %v1090 = vpow.pop %v1089
      %v1091 = vadd.f32 %v1090, 1.0
      %v1092 = vrcp.pop %v1091
      %v1093 = vmul.f32 %v1091, %v1092
      %v1094 = vsub.f32 1.0, %v1093
      %v1095 = vmul.f32 %v1092, %v1094
      %v1096 = vadd.f32 %v1092, %v1095
      %vm1097 = vweird.f32 %v1091
      %vm1098 = vweird.f32 %v1092
      %vm1099 = vmor %vm1097, %vm1098
      %v1100 = vsel %vm1099, %v1092, %v1096
      %v1101 = vand.u32 2147483647, %v1091
      %vm1102 = vcmp.eq.f32.partialorder %v1101, 8.507059e+37
      %v1103 = vand.u32 %v1091, 2147483648
      %v1104 = vor.u32 1.1754944e-38, %v1103
      %v1105 = vsel %vm1102, %v1104, %v1100
      %v1106 = vmul.f32 1.0, %v1105
      %v1107 = vadd.f32 %v1085, %v423
      %1109 = vrot.lane.b32.xlu0 %v1107, 64
      %v1110 = vpop.permute.xlu0 %1109
      %v1112 = vmul.f32 %v1106, %v1110
      %1114 = vrot.lane.b32.xlu0 %v1112, 64
      %v1115 = vpop.permute.xlu0 %1114
      %v1117 = vadd.f32 %v354, %v1115
      %v1118 = vtanh.pop %v1117
      %v1119 = vsub.f32 1.0, %v1106
      %1121 = vrot.lane.b32.xlu0 %v1118, 96
      %v1122 = vpop.permute.xlu0 %1121
      %v1124 = vmul.f32 %v1119, %v1122
      %v1125 = vmul.f32 %v1106, %v1058
      %v1126 = vadd.f32 %v1124, %v1125
      %1128 = vrot.lane.b32.xlu0 %v1126, 96
      %v1129 = vpop.permute.xlu0 %1128
      %s1131 = scalar_lea.vmem %s226, 80
      %1132 = vst.msk [vmem:[%s1131] sm:$0xff] %vm376, %v1129
      %v1133 = vsel %vm376, %v1129, 0
      %1135 = vmatpush.msra.mxu0 0.0
      %1136 = vmatpush.msra.mxu0 0.0
      %1137 = vmatpush.msra.mxu0 0.0
      %1138 = vmatpush.msra.mxu0 0.0
      %1139 = vmatpush.msra.mxu0 0.0
      %1140 = vmatpush.msra.mxu0 0.0
      %1141 = vmatpush.msra.mxu0 0.0
      %1142 = vmatpush.msra.mxu0 0.0
      %1143 = vmatpush.msra.mxu0 0.0
      %1144 = vmatpush.msra.mxu0 0.0
      %1145 = vmatpush.msra.mxu0 0.0
      %1146 = vmatpush.msra.mxu0 0.0
      %1147 = vmatpush.msra.mxu0 %v374
      %1148 = vmatpush.msra.mxu0 %v373
      %1149 = vmatpush.msra.mxu0 %v372
      %1150 = vmatpush.msra.mxu0 %v371
      %1151 = vmatmul.f32.gmra.mxu0 %v1133
      %v1152 = vpop.f32.mrf.mxu0
      %v1153 = vadd.f32 0.0, %v1152
      %1154 = vdwg.mxu0
      %v1155 = vadd.f32 %v357, %v1153
      %v1156 = vxor.u32 %v1155, 2147483648
      %v1157 = vmul.f32 %v1156, 1.442695
      %v1158 = vpow.pop %v1157
      %v1159 = vadd.f32 %v1158, 1.0
      %v1160 = vrcp.pop %v1159
      %v1161 = vmul.f32 %v1159, %v1160
      %v1162 = vsub.f32 1.0, %v1161
      %v1163 = vmul.f32 %v1160, %v1162
      %v1164 = vadd.f32 %v1160, %v1163
      %vm1165 = vweird.f32 %v1159
      %vm1166 = vweird.f32 %v1160
      %vm1167 = vmor %vm1165, %vm1166
      %v1168 = vsel %vm1167, %v1160, %v1164
      %v1169 = vand.u32 2147483647, %v1159
      %vm1170 = vcmp.eq.f32.partialorder %v1169, 8.507059e+37
      %v1171 = vand.u32 %v1159, 2147483648
      %v1172 = vor.u32 1.1754944e-38, %v1171
      %v1173 = vsel %vm1170, %v1172, %v1168
      %v1174 = vmul.f32 1.0, %v1173
      %v1175 = vadd.f32 %v1153, %v423
      %1177 = vrot.lane.b32.xlu0 %v1175, 64
      %v1178 = vpop.permute.xlu0 %1177
      %v1180 = vmul.f32 %v1174, %v1178
      %1182 = vrot.lane.b32.xlu0 %v1180, 64
      %v1183 = vpop.permute.xlu0 %1182
      %v1185 = vadd.f32 %v357, %v1183
      %v1186 = vtanh.pop %v1185
      %v1187 = vsub.f32 1.0, %v1174
      %1189 = vrot.lane.b32.xlu0 %v1186, 96
      %v1190 = vpop.permute.xlu0 %1189
      %v1192 = vmul.f32 %v1187, %v1190
      %v1193 = vmul.f32 %v1174, %v1126
      %v1194 = vadd.f32 %v1192, %v1193
      %1196 = vrot.lane.b32.xlu0 %v1194, 96
      %v1197 = vpop.permute.xlu0 %1196
      %s1199 = scalar_lea.vmem %s226, 88
      %1200 = vst.msk [vmem:[%s1199] sm:$0xff] %vm376, %v1197
      %v1201 = vsel %vm376, %v1197, 0
      %1203 = vmatpush.msra.mxu0 0.0
      %1204 = vmatpush.msra.mxu0 0.0
      %1205 = vmatpush.msra.mxu0 0.0
      %1206 = vmatpush.msra.mxu0 0.0
      %1207 = vmatpush.msra.mxu0 0.0
      %1208 = vmatpush.msra.mxu0 0.0
      %1209 = vmatpush.msra.mxu0 0.0
      %1210 = vmatpush.msra.mxu0 0.0
      %1211 = vmatpush.msra.mxu0 0.0
      %1212 = vmatpush.msra.mxu0 0.0
      %1213 = vmatpush.msra.mxu0 0.0
      %1214 = vmatpush.msra.mxu0 0.0
      %1215 = vmatpush.msra.mxu0 %v374
      %1216 = vmatpush.msra.mxu0 %v373
      %1217 = vmatpush.msra.mxu0 %v372
      %1218 = vmatpush.msra.mxu0 %v371
      %1219 = vmatmul.f32.gmra.mxu0 %v1201
      %v1220 = vpop.f32.mrf.mxu0
      %v1221 = vadd.f32 0.0, %v1220
      %1222 = vdwg.mxu0
      %v1223 = vadd.f32 %v360, %v1221
      %v1224 = vxor.u32 %v1223, 2147483648
      %v1225 = vmul.f32 %v1224, 1.442695
      %v1226 = vpow.pop %v1225
      %v1227 = vadd.f32 %v1226, 1.0
      %v1228 = vrcp.pop %v1227
      %v1229 = vmul.f32 %v1227, %v1228
      %v1230 = vsub.f32 1.0, %v1229
      %v1231 = vmul.f32 %v1228, %v1230
      %v1232 = vadd.f32 %v1228, %v1231
      %vm1233 = vweird.f32 %v1227
      %vm1234 = vweird.f32 %v1228
      %vm1235 = vmor %vm1233, %vm1234
      %v1236 = vsel %vm1235, %v1228, %v1232
      %v1237 = vand.u32 2147483647, %v1227
      %vm1238 = vcmp.eq.f32.partialorder %v1237, 8.507059e+37
      %v1239 = vand.u32 %v1227, 2147483648
      %v1240 = vor.u32 1.1754944e-38, %v1239
      %v1241 = vsel %vm1238, %v1240, %v1236
      %v1242 = vmul.f32 1.0, %v1241
      %v1243 = vadd.f32 %v1221, %v423
      %1245 = vrot.lane.b32.xlu0 %v1243, 64
      %v1246 = vpop.permute.xlu0 %1245
      %v1248 = vmul.f32 %v1242, %v1246
      %1250 = vrot.lane.b32.xlu0 %v1248, 64
      %v1251 = vpop.permute.xlu0 %1250
      %v1253 = vadd.f32 %v360, %v1251
      %v1254 = vtanh.pop %v1253
      %v1255 = vsub.f32 1.0, %v1242
      %1257 = vrot.lane.b32.xlu0 %v1254, 96
      %v1258 = vpop.permute.xlu0 %1257
      %v1260 = vmul.f32 %v1255, %v1258
      %v1261 = vmul.f32 %v1242, %v1194
      %v1262 = vadd.f32 %v1260, %v1261
      %1264 = vrot.lane.b32.xlu0 %v1262, 96
      %v1265 = vpop.permute.xlu0 %1264
      %s1267 = scalar_lea.vmem %s226, 96
      %1268 = vst.msk [vmem:[%s1267] sm:$0xff] %vm376, %v1265
      %v1269 = vsel %vm376, %v1265, 0
      %1271 = vmatpush.msra.mxu0 0.0
      %1272 = vmatpush.msra.mxu0 0.0
      %1273 = vmatpush.msra.mxu0 0.0
      %1274 = vmatpush.msra.mxu0 0.0
      %1275 = vmatpush.msra.mxu0 0.0
      %1276 = vmatpush.msra.mxu0 0.0
      %1277 = vmatpush.msra.mxu0 0.0
      %1278 = vmatpush.msra.mxu0 0.0
      %1279 = vmatpush.msra.mxu0 0.0
      %1280 = vmatpush.msra.mxu0 0.0
      %1281 = vmatpush.msra.mxu0 0.0
      %1282 = vmatpush.msra.mxu0 0.0
      %1283 = vmatpush.msra.mxu0 %v374
      %1284 = vmatpush.msra.mxu0 %v373
      %1285 = vmatpush.msra.mxu0 %v372
      %1286 = vmatpush.msra.mxu0 %v371
      %1287 = vmatmul.f32.gmra.mxu0 %v1269
      %v1288 = vpop.f32.mrf.mxu0
      %v1289 = vadd.f32 0.0, %v1288
      %1290 = vdwg.mxu0
      %v1291 = vadd.f32 %v363, %v1289
      %v1292 = vxor.u32 %v1291, 2147483648
      %v1293 = vmul.f32 %v1292, 1.442695
      %v1294 = vpow.pop %v1293
      %v1295 = vadd.f32 %v1294, 1.0
      %v1296 = vrcp.pop %v1295
      %v1297 = vmul.f32 %v1295, %v1296
      %v1298 = vsub.f32 1.0, %v1297
      %v1299 = vmul.f32 %v1296, %v1298
      %v1300 = vadd.f32 %v1296, %v1299
      %vm1301 = vweird.f32 %v1295
      %vm1302 = vweird.f32 %v1296
      %vm1303 = vmor %vm1301, %vm1302
      %v1304 = vsel %vm1303, %v1296, %v1300
      %v1305 = vand.u32 2147483647, %v1295
      %vm1306 = vcmp.eq.f32.partialorder %v1305, 8.507059e+37
      %v1307 = vand.u32 %v1295, 2147483648
      %v1308 = vor.u32 1.1754944e-38, %v1307
      %v1309 = vsel %vm1306, %v1308, %v1304
      %v1310 = vmul.f32 1.0, %v1309
      %v1311 = vadd.f32 %v1289, %v423
      %1313 = vrot.lane.b32.xlu0 %v1311, 64
      %v1314 = vpop.permute.xlu0 %1313
      %v1316 = vmul.f32 %v1310, %v1314
      %1318 = vrot.lane.b32.xlu0 %v1316, 64
      %v1319 = vpop.permute.xlu0 %1318
      %v1321 = vadd.f32 %v363, %v1319
      %v1322 = vtanh.pop %v1321
      %v1323 = vsub.f32 1.0, %v1310
      %1325 = vrot.lane.b32.xlu0 %v1322, 96
      %v1326 = vpop.permute.xlu0 %1325
      %v1328 = vmul.f32 %v1323, %v1326
      %v1329 = vmul.f32 %v1310, %v1262
      %v1330 = vadd.f32 %v1328, %v1329
      %1332 = vrot.lane.b32.xlu0 %v1330, 96
      %v1333 = vpop.permute.xlu0 %1332
      %s1335 = scalar_lea.vmem %s226, 104
      %1336 = vst.msk [vmem:[%s1335] sm:$0xff] %vm376, %v1333
      %v1337 = vsel %vm376, %v1333, 0
      %1339 = vmatpush.msra.mxu0 0.0
      %1340 = vmatpush.msra.mxu0 0.0
      %1341 = vmatpush.msra.mxu0 0.0
      %1342 = vmatpush.msra.mxu0 0.0
      %1343 = vmatpush.msra.mxu0 0.0
      %1344 = vmatpush.msra.mxu0 0.0
      %1345 = vmatpush.msra.mxu0 0.0
      %1346 = vmatpush.msra.mxu0 0.0
      %1347 = vmatpush.msra.mxu0 0.0
      %1348 = vmatpush.msra.mxu0 0.0
      %1349 = vmatpush.msra.mxu0 0.0
      %1350 = vmatpush.msra.mxu0 0.0
      %1351 = vmatpush.msra.mxu0 %v374
      %1352 = vmatpush.msra.mxu0 %v373
      %1353 = vmatpush.msra.mxu0 %v372
      %1354 = vmatpush.msra.mxu0 %v371
      %1355 = vmatmul.f32.gmra.mxu0 %v1337
      %v1356 = vpop.f32.mrf.mxu0
      %v1357 = vadd.f32 0.0, %v1356
      %1358 = vdwg.mxu0
      %v1359 = vadd.f32 %v366, %v1357
      %v1360 = vxor.u32 %v1359, 2147483648
      %v1361 = vmul.f32 %v1360, 1.442695
      %v1362 = vpow.pop %v1361
      %v1363 = vadd.f32 %v1362, 1.0
      %v1364 = vrcp.pop %v1363
      %v1365 = vmul.f32 %v1363, %v1364
      %v1366 = vsub.f32 1.0, %v1365
      %v1367 = vmul.f32 %v1364, %v1366
      %v1368 = vadd.f32 %v1364, %v1367
      %vm1369 = vweird.f32 %v1363
      %vm1370 = vweird.f32 %v1364
      %vm1371 = vmor %vm1369, %vm1370
      %v1372 = vsel %vm1371, %v1364, %v1368
      %v1373 = vand.u32 2147483647, %v1363
      %vm1374 = vcmp.eq.f32.partialorder %v1373, 8.507059e+37
      %v1375 = vand.u32 %v1363, 2147483648
      %v1376 = vor.u32 1.1754944e-38, %v1375
      %v1377 = vsel %vm1374, %v1376, %v1372
      %v1378 = vmul.f32 1.0, %v1377
      %v1379 = vadd.f32 %v1357, %v423
      %1381 = vrot.lane.b32.xlu0 %v1379, 64
      %v1382 = vpop.permute.xlu0 %1381
      %v1384 = vmul.f32 %v1378, %v1382
      %1386 = vrot.lane.b32.xlu0 %v1384, 64
      %v1387 = vpop.permute.xlu0 %1386
      %v1389 = vadd.f32 %v366, %v1387
      %v1390 = vtanh.pop %v1389
      %v1391 = vsub.f32 1.0, %v1378
      %1393 = vrot.lane.b32.xlu0 %v1390, 96
      %v1394 = vpop.permute.xlu0 %1393
      %v1396 = vmul.f32 %v1391, %v1394
      %v1397 = vmul.f32 %v1378, %v1330
      %v1398 = vadd.f32 %v1396, %v1397
      %1400 = vrot.lane.b32.xlu0 %v1398, 96
      %v1401 = vpop.permute.xlu0 %1400
      %s1403 = scalar_lea.vmem %s226, 112
      %1404 = vst.msk [vmem:[%s1403] sm:$0xff] %vm376, %v1401
      %v1405 = vsel %vm376, %v1401, 0
      %1407 = vmatpush.msra.mxu0 0.0
      %1408 = vmatpush.msra.mxu0 0.0
      %1409 = vmatpush.msra.mxu0 0.0
      %1410 = vmatpush.msra.mxu0 0.0
      %1411 = vmatpush.msra.mxu0 0.0
      %1412 = vmatpush.msra.mxu0 0.0
      %1413 = vmatpush.msra.mxu0 0.0
      %1414 = vmatpush.msra.mxu0 0.0
      %1415 = vmatpush.msra.mxu0 0.0
      %1416 = vmatpush.msra.mxu0 0.0
      %1417 = vmatpush.msra.mxu0 0.0
      %1418 = vmatpush.msra.mxu0 0.0
      %1419 = vmatpush.msra.mxu0 %v374
      %1420 = vmatpush.msra.mxu0 %v373
      %1421 = vmatpush.msra.mxu0 %v372
      %1422 = vmatpush.msra.mxu0 %v371
      %1423 = vmatmul.f32.gmra.mxu0 %v1405
      %v1424 = vpop.f32.mrf.mxu0
      %v1425 = vadd.f32 0.0, %v1424
      %1426 = vdwg.mxu0
      %v1427 = vadd.f32 %v369, %v1425
      %v1428 = vxor.u32 %v1427, 2147483648
      %v1429 = vmul.f32 %v1428, 1.442695
      %v1430 = vpow.pop %v1429
      %v1431 = vadd.f32 %v1430, 1.0
      %v1432 = vrcp.pop %v1431
      %v1433 = vmul.f32 %v1431, %v1432
      %v1434 = vsub.f32 1.0, %v1433
      %v1435 = vmul.f32 %v1432, %v1434
      %v1436 = vadd.f32 %v1432, %v1435
      %vm1437 = vweird.f32 %v1431
      %vm1438 = vweird.f32 %v1432
      %vm1439 = vmor %vm1437, %vm1438
      %v1440 = vsel %vm1439, %v1432, %v1436
      %v1441 = vand.u32 2147483647, %v1431
      %vm1442 = vcmp.eq.f32.partialorder %v1441, 8.507059e+37
      %v1443 = vand.u32 %v1431, 2147483648
      %v1444 = vor.u32 1.1754944e-38, %v1443
      %v1445 = vsel %vm1442, %v1444, %v1440
      %v1446 = vmul.f32 1.0, %v1445
      %v1447 = vadd.f32 %v1425, %v423
      %1449 = vrot.lane.b32.xlu0 %v1447, 64
      %v1450 = vpop.permute.xlu0 %1449
      %v1452 = vmul.f32 %v1446, %v1450
      %1454 = vrot.lane.b32.xlu0 %v1452, 64
      %v1455 = vpop.permute.xlu0 %1454
      %v1457 = vadd.f32 %v369, %v1455
      %v1458 = vtanh.pop %v1457
      %v1459 = vsub.f32 1.0, %v1446
      %1461 = vrot.lane.b32.xlu0 %v1458, 96
      %v1462 = vpop.permute.xlu0 %1461
      %v1464 = vmul.f32 %v1459, %v1462
      %v1465 = vmul.f32 %v1446, %v1398
      %v1466 = vadd.f32 %v1464, %v1465
      %1468 = vrot.lane.b32.xlu0 %v1466, 96
      %v1469 = vpop.permute.xlu0 %1468
      %s1471 = scalar_lea.vmem %s226, 120
      %1472 = vst.msk [vmem:[%s1471] sm:$0xff] %vm376, %v1469
      %1473 = vst.msk [vmem:[#allocation2] sm:$0xff] %vm376, %v1469
      %s1474 = smul.u32 16, %s16
      %p1475 = scmp.lt.s32.totalorder %s1474, 31
      %s1476 = scalar_select %p1475, %s1474, 31
      %s1477 = smul.addr %s1476, 8
      %s1478 = scalar_lea.vmem %s5, %s1477
      // Predicated region
      $region45: #{hal_gru_forward.2} parent=39 // pred_check
        %p1479 = pneg %p144
      $region46: #{hal_gru_forward.2} parent=39 // pred_check_branch
        %1481 = sbr.rel (%p1479) target = $region48
      $region47: #{hal_gru_forward.2} parent=39 // pred_region
        %s1482 = smul.u32 16, %s16
      $region48: #{hal_gru_forward.2} parent=39 // pred_fallthru
        _
    $region40: #{hal_gru_forward.2} parent=5 // pred_fallthru
      _
    %p1483 = scmp.le.s32.totalorder 2, %s11
    // Predicated region
    $region49: #{hal_gru_forward.2} parent=5 // pred_check
      %p1484 = pneg %p1483
    $region50: #{hal_gru_forward.2} parent=5 // pred_check_branch
      %1486 = sbr.rel (%p1484) target = $region52
    $region51: #{hal_gru_forward.2} parent=5 // pred_region
      %s1487 = ssub.s32 %s11, 2
      // Predicated region
      $region53: #{hal_gru_forward.2} parent=51 // pred_check
        %p1488 = pneg %p150
      $region54: #{hal_gru_forward.2} parent=51 // pred_check_branch
        %1490 = sbr.rel (%p1488) target = $region56
      $region55: #{hal_gru_forward.2} parent=51 // pred_region
        %s1491 = smul.u32 16, %s17
        %p1492 = scmp.lt.s32.totalorder %s1491, 31
        %s1493 = scalar_select %p1492, %s1491, 31
        %s1494 = smul.addr %s1493, 8
        %s1495 = scalar_lea.vmem %s5, %s1494
      $region56: #{hal_gru_forward.2} parent=51 // pred_fallthru
        _
    $region52: #{hal_gru_forward.2} parent=5 // pred_fallthru
      _
  $region6: #{hal_gru_forward.2} parent=0 // loop_footer
    %s15 = sadd.s32 1, %s11
  $region7: #{hal_gru_forward.2} parent=0 // loop_footer_branch
    %10 = sbr.rel target = $region3
  $region8: #{hal_gru_forward.2} parent=0 // loop_exit
    _

</llo_original>
